<compile_context>
chip_gen: v6e
topology: v6e:2x2x1
jax: 0.10.0
libtpu: 0.0.40
codegen_flags: <defaults>
</compile_context>

<pallas_src>
import functools

import jax
import jax.numpy as jnp
from jax.experimental import pallas as pl
from jax.experimental.pallas import tpu as pltpu

EPS = 1e-5


def _fused_kernel(x_ref, w1_ref, p1_ref, w2_ref, p2_ref, o_ref, *,
                  matmul_dtype):
    # x_ref : (480, HW)           activation, input dtype
    # w1_ref: (160, 480)          conv2d91 weight, already in matmul_dtype
    # w2_ref: (960, 160)          conv2d92 weight, already in matmul_dtype
    # p1_ref: (160, 2)  [:, 0]=gamma1, [:, 1]=beta1   (f32)
    # p2_ref: (960, 2)  [:, 0]=gamma2, [:, 1]=beta2   (f32)
    n = x_ref.shape[-1]                       # static BN reduction size N*H*W
    inv_n = jnp.float32(1.0 / n)

    x = x_ref[...].astype(matmul_dtype)

    # conv2d91 (1x1) == channel-major matmul: (160, 480) @ (480, HW) on MXU.
    y = jnp.dot(w1_ref[...], x, preferred_element_type=jnp.float32)  # f32

    # batchnorm2d53: training-mode batch stats, biased variance, two-pass
    # (centered sum-of-squares) for numerical robustness; fused FMA apply.
    p1 = p1_ref[...]
    g1 = p1[:, 0:1]
    b1 = p1[:, 1:2]
    m1 = jnp.sum(y, axis=-1, keepdims=True) * inv_n
    d1 = y - m1
    var1 = jnp.sum(d1 * d1, axis=-1, keepdims=True) * inv_n
    s1 = g1 * jax.lax.rsqrt(var1 + EPS)
    y = d1 * s1 + b1                                                 # (160, HW)

    # conv2d92 (1x1): (960, 160) @ (160, HW) on MXU.
    z = jnp.dot(w2_ref[...], y.astype(matmul_dtype),
                preferred_element_type=jnp.float32)                  # (960, HW)

    # batchnorm2d54
    p2 = p2_ref[...]
    g2 = p2[:, 0:1]
    b2 = p2[:, 1:2]
    m2 = jnp.sum(z, axis=-1, keepdims=True) * inv_n
    d2 = z - m2
    var2 = jnp.sum(d2 * d2, axis=-1, keepdims=True) * inv_n
    s2 = g2 * jax.lax.rsqrt(var2 + EPS)
    o_ref[...] = (d2 * s2 + b2).astype(o_ref.dtype)


def conv_bn_conv_bn(x_nchw, w1, g1, b1, w2, g2, b2, *,
                    matmul_dtype=jnp.bfloat16, out_dtype=jnp.float32):
    """x_nchw: (N, 480, H, W); w1: (160, 480, 1, 1); w2: (960, 160, 1, 1)."""
    N, C, H, W = x_nchw.shape
    c_mid = w1.shape[0]
    c_out = w2.shape[0]
    hw = N * H * W

    # Channel-major 2D view of the activation.  For N == 1 (the module's
    # shape) this is a pure reshape of contiguous NCHW memory -> no HBM moves.
    if N == 1:
        x2d = x_nchw.reshape(C, hw)
    else:
        # TODO(synk): batched path reintroduces two HBM transposes.
        x2d = jnp.transpose(x_nchw.reshape(N, C, H * W), (1, 0, 2)).reshape(C, hw)

    # Pre-cast weights to the matmul dtype in the wrapper: halves weight HBM
    # traffic on the bf16 path, numerically identical to an in-kernel cast.
    w1_2d = w1.reshape(c_mid, C).astype(matmul_dtype)
    w2_2d = w2.reshape(c_out, c_mid).astype(matmul_dtype)

    # Pack gamma/beta per BN into a single (C, 2) array (dense DMAs).
    p1 = jnp.stack([g1, b1], axis=-1).astype(jnp.float32)   # (160, 2)
    p2 = jnp.stack([g2, b2], axis=-1).astype(jnp.float32)   # (960, 2)

    itemsize = lambda a: jnp.dtype(a.dtype).itemsize
    flops = 2 * hw * (c_mid * C + c_out * c_mid)
    bytes_accessed = (x2d.size * itemsize(x2d)
                      + w1_2d.size * itemsize(w1_2d)
                      + w2_2d.size * itemsize(w2_2d)
                      + p1.size * 4 + p2.size * 4
                      + c_out * hw * jnp.dtype(out_dtype).itemsize)

    kernel = functools.partial(_fused_kernel, matmul_dtype=matmul_dtype)

    out2d = pl.pallas_call(
        kernel,
        out_shape=jax.ShapeDtypeStruct((c_out, hw), out_dtype),
        in_specs=[pl.BlockSpec(memory_space=pltpu.MemorySpace.VMEM)] * 5,
        out_specs=pl.BlockSpec(memory_space=pltpu.MemorySpace.VMEM),
        cost_estimate=pl.CostEstimate(flops=flops,
                                      transcendentals=c_mid + c_out,
                                      bytes_accessed=bytes_accessed),
    )(x2d, w1_2d, p1, w2_2d, p2)

    # (Cout, N*H*W) channel-major output IS the NCHW layout when N == 1.
    if N == 1:
        return out2d.reshape(1, c_out, H, W)
    return jnp.transpose(out2d.reshape(c_out, N, H * W),
                         (1, 0, 2)).reshape(N, c_out, H, W)


def _reference(x_nchw, w1, g1, b1, w2, g2, b2, *, matmul_dtype=jnp.float32):
    """Pure-JAX reference of the same forward (training-mode BN)."""
    def conv1x1(x, w):
        N, C, H, W = x.shape
        co = w.shape[0]
        x2d = jnp.transpose(x, (0, 2, 3, 1)).reshape(-1, C)
        y2d = jnp.dot(x2d.astype(matmul_dtype),
                      w.reshape(co, C).T.astype(matmul_dtype),
                      preferred_element_type=jnp.float32)
        return jnp.transpose(y2d.reshape(N, H, W, co), (0, 3, 1, 2))

    def bn(x, g, b):
        mean = jnp.mean(x, axis=(0, 2, 3), keepdims=True)
        var = jnp.mean((x - mean) ** 2, axis=(0, 2, 3), keepdims=True)
        return (x - mean) * jax.lax.rsqrt(var + EPS) * g.reshape(1, -1, 1, 1) + \
            b.reshape(1, -1, 1, 1)

    y = bn(conv1x1(x_nchw, w1), g1, b1)
    return bn(conv1x1(y, w2), g2, b2)


if __name__ == "__main__":
    key = jax.random.PRNGKey(0)
    k_x, k_w1, k_w2, k_g1, k_b1, k_g2, k_b2 = jax.random.split(key, 7)

    N, C_IN, H, W = 1, 480, 14, 14
    C_MID, C_OUT = 160, 960

    x = jax.random.normal(k_x, (N, C_IN, H, W), dtype=jnp.float32)
    w1 = jax.random.normal(k_w1, (C_MID, C_IN, 1, 1), dtype=jnp.float32) * 0.05
    w2 = jax.random.normal(k_w2, (C_OUT, C_MID, 1, 1), dtype=jnp.float32) * 0.05
    g1 = 1.0 + 0.1 * jax.random.normal(k_g1, (C_MID,), dtype=jnp.float32)
    b1 = 0.1 * jax.random.normal(k_b1, (C_MID,), dtype=jnp.float32)
    g2 = 1.0 + 0.1 * jax.random.normal(k_g2, (C_OUT,), dtype=jnp.float32)
    b2 = 0.1 * jax.random.normal(k_b2, (C_OUT,), dtype=jnp.float32)

    # --- Strict check: f32 MXU operands vs f32 reference (PyTorch semantics).
    out_f32 = jax.block_until_ready(
        conv_bn_conv_bn(x, w1, g1, b1, w2, g2, b2, matmul_dtype=jnp.float32))
    ref_f32 = jax.block_until_ready(_reference(x, w1, g1, b1, w2, g2, b2))
    assert out_f32.shape == (N, C_OUT, H, W), out_f32.shape
    assert jnp.max(jnp.abs(out_f32 - ref_f32)) < 1e-3, \
        float(jnp.max(jnp.abs(out_f32 - ref_f32)))

    # --- Production path (v5e/v6e/v7x): bf16 MXU operands, f32 BN/accumulate.
    out_bf16 = jax.block_until_ready(
        conv_bn_conv_bn(x, w1, g1, b1, w2, g2, b2))     # default bf16 matmul
    ref_bf16 = jax.block_until_ready(
        _reference(x, w1, g1, b1, w2, g2, b2, matmul_dtype=jnp.bfloat16))
    # Same-precision check (kernel vs XLA with identical bf16 operand casts).
    assert jnp.max(jnp.abs(out_bf16 - ref_bf16)) < 5e-3, \
        float(jnp.max(jnp.abs(out_bf16 - ref_bf16)))
    # Loose sanity check against the full-f32 reference (bf16 operand rounding).
    assert jnp.max(jnp.abs(out_bf16 - ref_f32)) < 2e-1, \
        float(jnp.max(jnp.abs(out_bf16 - ref_f32)))

    # --- Optional byte-saving output path: bf16 output (BN math stays f32).
    out_bf16_out = jax.block_until_ready(
        conv_bn_conv_bn(x, w1, g1, b1, w2, g2, b2, out_dtype=jnp.bfloat16))
    assert out_bf16_out.dtype == jnp.bfloat16
    assert jnp.max(jnp.abs(out_bf16_out.astype(jnp.float32) - ref_bf16)) < 1e-1, \
        float(jnp.max(jnp.abs(out_bf16_out.astype(jnp.float32) - ref_bf16)))

    print("KERNEL_OK")
</pallas_src>

<mosaic_0001>
module attributes {stable_mosaic.version = 11 : i64} {
  func.func @_fused_kernel(%arg0: memref<480x196xf32, #tpu.memory_space<vmem>>, %arg1: memref<160x480xf32, #tpu.memory_space<vmem>>, %arg2: memref<160x2xf32, #tpu.memory_space<vmem>>, %arg3: memref<960x160xf32, #tpu.memory_space<vmem>>, %arg4: memref<960x2xf32, #tpu.memory_space<vmem>>, %arg5: memref<960x196xf32, #tpu.memory_space<vmem>>) attributes {dimension_semantics = [], scalar_prefetch = 0 : i64, scratch_operands = 0 : i64, tpu.core_type = #tpu.core_type<tc>} {
    %c0 = arith.constant 0 : index
    %c0_0 = arith.constant 0 : index
    %0 = vector.load %arg0[%c0, %c0_0] : memref<480x196xf32, #tpu.memory_space<vmem>>, vector<480x196xf32>
    %c0_1 = arith.constant 0 : index
    %c0_2 = arith.constant 0 : index
    %1 = vector.load %arg1[%c0_1, %c0_2] : memref<160x480xf32, #tpu.memory_space<vmem>>, vector<160x480xf32>
    %cst = arith.constant dense<0.000000e+00> : vector<160x196xf32>
    %2 = tpu.matmul %1, %0, %cst {dimension_numbers = #tpu.dot_dimension_numbers<[1], [0], [0], [1], [0, 0, 1, 1], [], []>} : vector<160x480xf32>, vector<480x196xf32>, vector<160x196xf32> -> vector<160x196xf32>
    %c0_3 = arith.constant 0 : index
    %c0_4 = arith.constant 0 : index
    %3 = vector.load %arg2[%c0_3, %c0_4] : memref<160x2xf32, #tpu.memory_space<vmem>>, vector<160x2xf32>
    %4 = vector.extract_strided_slice %3 {offsets = [0, 0], sizes = [160, 1], strides = [1, 1]} : vector<160x2xf32> to vector<160x1xf32>
    %5 = vector.extract_strided_slice %3 {offsets = [0, 1], sizes = [160, 1], strides = [1, 1]} : vector<160x2xf32> to vector<160x1xf32>
    %cst_5 = arith.constant dense<0.000000e+00> : vector<160xf32>
    %6 = vector.multi_reduction <add>, %2, %cst_5 [1] : vector<160x196xf32> to vector<160xf32>
    %7 = vector.shape_cast %6 : vector<160xf32> to vector<160x1xf32>
    %cst_6 = arith.constant 0.00510204071 : f32
    %8 = vector.broadcast %cst_6 : f32 to vector<160x1xf32>
    %9 = arith.mulf %7, %8 : vector<160x1xf32>
    %10 = vector.broadcast %9 : vector<160x1xf32> to vector<160x196xf32>
    %11 = arith.subf %2, %10 : vector<160x196xf32>
    %12 = arith.mulf %11, %11 : vector<160x196xf32>
    %cst_7 = arith.constant dense<0.000000e+00> : vector<160xf32>
    %13 = vector.multi_reduction <add>, %12, %cst_7 [1] : vector<160x196xf32> to vector<160xf32>
    %14 = vector.shape_cast %13 : vector<160xf32> to vector<160x1xf32>
    %cst_8 = arith.constant 0.00510204071 : f32
    %15 = vector.broadcast %cst_8 : f32 to vector<160x1xf32>
    %16 = arith.mulf %14, %15 : vector<160x1xf32>
    %cst_9 = arith.constant 9.99999974E-6 : f32
    %17 = vector.broadcast %cst_9 : f32 to vector<160x1xf32>
    %18 = arith.addf %16, %17 : vector<160x1xf32>
    %19 = math.rsqrt %18 : vector<160x1xf32>
    %20 = arith.mulf %4, %19 : vector<160x1xf32>
    %21 = vector.broadcast %20 : vector<160x1xf32> to vector<160x196xf32>
    %22 = arith.mulf %11, %21 : vector<160x196xf32>
    %23 = vector.broadcast %5 : vector<160x1xf32> to vector<160x196xf32>
    %24 = arith.addf %22, %23 : vector<160x196xf32>
    %c0_10 = arith.constant 0 : index
    %c0_11 = arith.constant 0 : index
    %25 = vector.load %arg3[%c0_10, %c0_11] : memref<960x160xf32, #tpu.memory_space<vmem>>, vector<960x160xf32>
    %cst_12 = arith.constant dense<0.000000e+00> : vector<960x196xf32>
    %26 = tpu.matmul %25, %24, %cst_12 {dimension_numbers = #tpu.dot_dimension_numbers<[1], [0], [0], [1], [0, 0, 1, 1], [], []>} : vector<960x160xf32>, vector<160x196xf32>, vector<960x196xf32> -> vector<960x196xf32>
    %c0_13 = arith.constant 0 : index
    %c0_14 = arith.constant 0 : index
    %27 = vector.load %arg4[%c0_13, %c0_14] : memref<960x2xf32, #tpu.memory_space<vmem>>, vector<960x2xf32>
    %28 = vector.extract_strided_slice %27 {offsets = [0, 0], sizes = [960, 1], strides = [1, 1]} : vector<960x2xf32> to vector<960x1xf32>
    %29 = vector.extract_strided_slice %27 {offsets = [0, 1], sizes = [960, 1], strides = [1, 1]} : vector<960x2xf32> to vector<960x1xf32>
    %cst_15 = arith.constant dense<0.000000e+00> : vector<960xf32>
    %30 = vector.multi_reduction <add>, %26, %cst_15 [1] : vector<960x196xf32> to vector<960xf32>
    %31 = vector.shape_cast %30 : vector<960xf32> to vector<960x1xf32>
    %cst_16 = arith.constant 0.00510204071 : f32
    %32 = vector.broadcast %cst_16 : f32 to vector<960x1xf32>
    %33 = arith.mulf %31, %32 : vector<960x1xf32>
    %34 = vector.broadcast %33 : vector<960x1xf32> to vector<960x196xf32>
    %35 = arith.subf %26, %34 : vector<960x196xf32>
    %36 = arith.mulf %35, %35 : vector<960x196xf32>
    %cst_17 = arith.constant dense<0.000000e+00> : vector<960xf32>
    %37 = vector.multi_reduction <add>, %36, %cst_17 [1] : vector<960x196xf32> to vector<960xf32>
    %38 = vector.shape_cast %37 : vector<960xf32> to vector<960x1xf32>
    %cst_18 = arith.constant 0.00510204071 : f32
    %39 = vector.broadcast %cst_18 : f32 to vector<960x1xf32>
    %40 = arith.mulf %38, %39 : vector<960x1xf32>
    %cst_19 = arith.constant 9.99999974E-6 : f32
    %41 = vector.broadcast %cst_19 : f32 to vector<960x1xf32>
    %42 = arith.addf %40, %41 : vector<960x1xf32>
    %43 = math.rsqrt %42 : vector<960x1xf32>
    %44 = arith.mulf %28, %43 : vector<960x1xf32>
    %45 = vector.broadcast %44 : vector<960x1xf32> to vector<960x196xf32>
    %46 = arith.mulf %35, %45 : vector<960x196xf32>
    %47 = vector.broadcast %29 : vector<960x1xf32> to vector<960x196xf32>
    %48 = arith.addf %46, %47 : vector<960x196xf32>
    %c0_20 = arith.constant 0 : index
    %c0_21 = arith.constant 0 : index
    %49 = vector.load %arg5[%c0_20, %c0_21] : memref<960x196xf32, #tpu.memory_space<vmem>>, vector<960x196xf32>
    tpu.vector_store %arg5[%c0_20, %c0_21], %48 {strides = array<i32>} : memref<960x196xf32, #tpu.memory_space<vmem>>, vector<960x196xf32>,
    return
  }
}

</mosaic_0001>

<llo_original>
// kernel: tpu_custom_call.1
$region0: #{tpu_custom_call.1}
  #allocation0 [shape = 'u32[]', space=smem, size = 0x4, offset = 0x4, fixed_abs, tag = 'smem constant byte address 0x4 - core index']
  #allocation1 [shape = 'u32[144,128]{1,0:T(1,128)}', space=vmem, size = 0x12000, scoped, tag = 'internal scratch']
  %s0 = inlined_call_operand.vmem [shape: f32[480,196], index: 0, kind: input, shape index: {}]
  %s1 = inlined_call_operand.vmem [shape: f32[160,480], index: 1, kind: input, shape index: {}]
  %s2 = inlined_call_operand.vmem [shape: f32[160,2], index: 2, kind: input, shape index: {}]
  %s3 = inlined_call_operand.vmem [shape: f32[960,160], index: 3, kind: input, shape index: {}]
  %s4 = inlined_call_operand.vmem [shape: f32[960,2], index: 4, kind: input, shape index: {}]
  %s5 = inlined_call_operand.vmem [shape: f32[960,196], index: 5, kind: output, shape index: {}]
  %s6 = sld [smem:[#allocation0]]
  $region30: #{tpu_custom_call.1} parent=0
    _
  %s8 = ssub.s32 1, %s6
  %s9 = scalar_select 0, %s8, %s6
  // Predicated region
  $region2: #{tpu_custom_call.1} parent=0 // pred_check
    _
  $region3: #{tpu_custom_call.1} parent=0 // pred_check_branch
    %11 = sbr.rel (0) target = $region5
  $region4: #{tpu_custom_call.1} parent=0 // pred_region
    _
  $region5: #{tpu_custom_call.1} parent=0 // pred_fallthru
    _
  // Predicated region
  $region6: #{tpu_custom_call.1} parent=0 // pred_check
    _
  $region7: #{tpu_custom_call.1} parent=0 // pred_check_branch
    %13 = sbr.rel (0) target = $region9
  $region8: #{tpu_custom_call.1} parent=0 // pred_region
    _
  $region9: #{tpu_custom_call.1} parent=0 // pred_fallthru
    _
  // Predicated region
  $region10: #{tpu_custom_call.1} parent=0 // pred_check
    _
  $region11: #{tpu_custom_call.1} parent=0 // pred_check_branch
    %15 = sbr.rel (0) target = $region13
  $region12: #{tpu_custom_call.1} parent=0 // pred_region
    _
  $region13: #{tpu_custom_call.1} parent=0 // pred_fallthru
    _
  // Predicated region
  $region14: #{tpu_custom_call.1} parent=0 // pred_check
    _
  $region15: #{tpu_custom_call.1} parent=0 // pred_check_branch
    %17 = sbr.rel (0) target = $region17
  $region16: #{tpu_custom_call.1} parent=0 // pred_region
    _
  $region17: #{tpu_custom_call.1} parent=0 // pred_fallthru
    _
  // Predicated region
  $region18: #{tpu_custom_call.1} parent=0 // pred_check
    _
  $region19: #{tpu_custom_call.1} parent=0 // pred_check_branch
    %19 = sbr.rel (0) target = $region21
  $region20: #{tpu_custom_call.1} parent=0 // pred_region
    _
  $region21: #{tpu_custom_call.1} parent=0 // pred_fallthru
    _
  %v20 = vld [vmem:[%s0] sm:$0xff]
  %v21 = vld [vmem:[%s0 + $0x8] sm:$0xff]
  %v22 = vld [vmem:[%s0 + $0x10] sm:$0xff]
  %v23 = vld [vmem:[%s0 + $0x18] sm:$0xff]
  %v24 = vld [vmem:[%s0 + $0x20] sm:$0xff]
  %v25 = vld [vmem:[%s0 + $0x28] sm:$0xff]
  %v26 = vld [vmem:[%s0 + $0x30] sm:$0xff]
  %v27 = vld [vmem:[%s0 + $0x38] sm:$0xff]
  %v28 = vld [vmem:[%s0 + $0x40] sm:$0xff]
  %v29 = vld [vmem:[%s0 + $0x48] sm:$0xff]
  %v30 = vld [vmem:[%s0 + $0x50] sm:$0xff]
  %v31 = vld [vmem:[%s0 + $0x58] sm:$0xff]
  %v32 = vld [vmem:[%s0 + $0x60] sm:$0xff]
  %v33 = vld [vmem:[%s0 + $0x68] sm:$0xff]
  %v34 = vld [vmem:[%s0 + $0x70] sm:$0xff]
  %v35 = vld [vmem:[%s0 + $0x78] sm:$0xff]
  %v36 = vld [vmem:[%s0 + $0x80] sm:$0xff]
  %v37 = vld [vmem:[%s0 + $0x88] sm:$0xff]
  %v38 = vld [vmem:[%s0 + $0x90] sm:$0xff]
  %v39 = vld [vmem:[%s0 + $0x98] sm:$0xff]
  %v40 = vld [vmem:[%s0 + $0xa0] sm:$0xff]
  %v41 = vld [vmem:[%s0 + $0xa8] sm:$0xff]
  %v42 = vld [vmem:[%s0 + $0xb0] sm:$0xff]
  %v43 = vld [vmem:[%s0 + $0xb8] sm:$0xff]
  %v44 = vld [vmem:[%s0 + $0xc0] sm:$0xff]
  %v45 = vld [vmem:[%s0 + $0xc8] sm:$0xff]
  %v46 = vld [vmem:[%s0 + $0xd0] sm:$0xff]
  %v47 = vld [vmem:[%s0 + $0xd8] sm:$0xff]
  %v48 = vld [vmem:[%s0 + $0xe0] sm:$0xff]
  %v49 = vld [vmem:[%s0 + $0xe8] sm:$0xff]
  %v50 = vld [vmem:[%s0 + $0xf0] sm:$0xff]
  %v51 = vld [vmem:[%s0 + $0xf8] sm:$0xff]
  %v52 = vld [vmem:[%s0 + $0x100] sm:$0xff]
  %v53 = vld [vmem:[%s0 + $0x108] sm:$0xff]
  %v54 = vld [vmem:[%s0 + $0x110] sm:$0xff]
  %v55 = vld [vmem:[%s0 + $0x118] sm:$0xff]
  %v56 = vld [vmem:[%s0 + $0x120] sm:$0xff]
  %v57 = vld [vmem:[%s0 + $0x128] sm:$0xff]
  %v58 = vld [vmem:[%s0 + $0x130] sm:$0xff]
  %v59 = vld [vmem:[%s0 + $0x138] sm:$0xff]
  %v60 = vld [vmem:[%s0 + $0x140] sm:$0xff]
  %v61 = vld [vmem:[%s0 + $0x148] sm:$0xff]
  %v62 = vld [vmem:[%s0 + $0x150] sm:$0xff]
  %v63 = vld [vmem:[%s0 + $0x158] sm:$0xff]
  %v64 = vld [vmem:[%s0 + $0x160] sm:$0xff]
  %v65 = vld [vmem:[%s0 + $0x168] sm:$0xff]
  %v66 = vld [vmem:[%s0 + $0x170] sm:$0xff]
  %v67 = vld [vmem:[%s0 + $0x178] sm:$0xff]
  %v68 = vld [vmem:[%s0 + $0x180] sm:$0xff]
  %v69 = vld [vmem:[%s0 + $0x188] sm:$0xff]
  %v70 = vld [vmem:[%s0 + $0x190] sm:$0xff]
  %v71 = vld [vmem:[%s0 + $0x198] sm:$0xff]
  %v72 = vld [vmem:[%s0 + $0x1a0] sm:$0xff]
  %v73 = vld [vmem:[%s0 + $0x1a8] sm:$0xff]
  %v74 = vld [vmem:[%s0 + $0x1b0] sm:$0xff]
  %v75 = vld [vmem:[%s0 + $0x1b8] sm:$0xff]
  %v76 = vld [vmem:[%s0 + $0x1c0] sm:$0xff]
  %v77 = vld [vmem:[%s0 + $0x1c8] sm:$0xff]
  %v78 = vld [vmem:[%s0 + $0x1d0] sm:$0xff]
  %v79 = vld [vmem:[%s0 + $0x1d8] sm:$0xff]
  %v80 = vld [vmem:[%s0 + $0x1e0] sm:$0xff]
  %v81 = vld [vmem:[%s0 + $0x1e8] sm:$0xff]
  %v82 = vld [vmem:[%s0 + $0x1f0] sm:$0xff]
  %v83 = vld [vmem:[%s0 + $0x1f8] sm:$0xff]
  %v84 = vld [vmem:[%s0 + $0x200] sm:$0xff]
  %v85 = vld [vmem:[%s0 + $0x208] sm:$0xff]
  %v86 = vld [vmem:[%s0 + $0x210] sm:$0xff]
  %v87 = vld [vmem:[%s0 + $0x218] sm:$0xff]
  %v88 = vld [vmem:[%s0 + $0x220] sm:$0xff]
  %v89 = vld [vmem:[%s0 + $0x228] sm:$0xff]
  %v90 = vld [vmem:[%s0 + $0x230] sm:$0xff]
  %v91 = vld [vmem:[%s0 + $0x238] sm:$0xff]
  %v92 = vld [vmem:[%s0 + $0x240] sm:$0xff]
  %v93 = vld [vmem:[%s0 + $0x248] sm:$0xff]
  %v94 = vld [vmem:[%s0 + $0x250] sm:$0xff]
  %v95 = vld [vmem:[%s0 + $0x258] sm:$0xff]
  %v96 = vld [vmem:[%s0 + $0x260] sm:$0xff]
  %v97 = vld [vmem:[%s0 + $0x268] sm:$0xff]
  %v98 = vld [vmem:[%s0 + $0x270] sm:$0xff]
  %v99 = vld [vmem:[%s0 + $0x278] sm:$0xff]
  %v100 = vld [vmem:[%s0 + $0x280] sm:$0xff]
  %v101 = vld [vmem:[%s0 + $0x288] sm:$0xff]
  %v102 = vld [vmem:[%s0 + $0x290] sm:$0xff]
  %v103 = vld [vmem:[%s0 + $0x298] sm:$0xff]
  %v104 = vld [vmem:[%s0 + $0x2a0] sm:$0xff]
  %v105 = vld [vmem:[%s0 + $0x2a8] sm:$0xff]
  %v106 = vld [vmem:[%s0 + $0x2b0] sm:$0xff]
  %v107 = vld [vmem:[%s0 + $0x2b8] sm:$0xff]
  %v108 = vld [vmem:[%s0 + $0x2c0] sm:$0xff]
  %v109 = vld [vmem:[%s0 + $0x2c8] sm:$0xff]
  %v110 = vld [vmem:[%s0 + $0x2d0] sm:$0xff]
  %v111 = vld [vmem:[%s0 + $0x2d8] sm:$0xff]
  %v112 = vld [vmem:[%s0 + $0x2e0] sm:$0xff]
  %v113 = vld [vmem:[%s0 + $0x2e8] sm:$0xff]
  %v114 = vld [vmem:[%s0 + $0x2f0] sm:$0xff]
  %v115 = vld [vmem:[%s0 + $0x2f8] sm:$0xff]
  %v116 = vld [vmem:[%s0 + $0x300] sm:$0xff]
  %v117 = vld [vmem:[%s0 + $0x308] sm:$0xff]
  %v118 = vld [vmem:[%s0 + $0x310] sm:$0xff]
  %v119 = vld [vmem:[%s0 + $0x318] sm:$0xff]
  %v120 = vld [vmem:[%s0 + $0x320] sm:$0xff]
  %v121 = vld [vmem:[%s0 + $0x328] sm:$0xff]
  %v122 = vld [vmem:[%s0 + $0x330] sm:$0xff]
  %v123 = vld [vmem:[%s0 + $0x338] sm:$0xff]
  %v124 = vld [vmem:[%s0 + $0x340] sm:$0xff]
  %v125 = vld [vmem:[%s0 + $0x348] sm:$0xff]
  %v126 = vld [vmem:[%s0 + $0x350] sm:$0xff]
  %v127 = vld [vmem:[%s0 + $0x358] sm:$0xff]
  %v128 = vld [vmem:[%s0 + $0x360] sm:$0xff]
  %v129 = vld [vmem:[%s0 + $0x368] sm:$0xff]
  %v130 = vld [vmem:[%s0 + $0x370] sm:$0xff]
  %v131 = vld [vmem:[%s0 + $0x378] sm:$0xff]
  %v132 = vld [vmem:[%s0 + $0x380] sm:$0xff]
  %v133 = vld [vmem:[%s0 + $0x388] sm:$0xff]
  %v134 = vld [vmem:[%s0 + $0x390] sm:$0xff]
  %v135 = vld [vmem:[%s0 + $0x398] sm:$0xff]
  %v136 = vld [vmem:[%s0 + $0x3a0] sm:$0xff]
  %v137 = vld [vmem:[%s0 + $0x3a8] sm:$0xff]
  %v138 = vld [vmem:[%s0 + $0x3b0] sm:$0xff]
  %v139 = vld [vmem:[%s0 + $0x3b8] sm:$0xff]
  %v140 = vld [vmem:[%s1] sm:$0xff]
  %v141 = vld [vmem:[%s1 + $0x8] sm:$0xff]
  %v142 = vld [vmem:[%s1 + $0x10] sm:$0xff]
  %v143 = vld [vmem:[%s1 + $0x18] sm:$0xff]
  %v144 = vld [vmem:[%s1 + $0x20] sm:$0xff]
  %v145 = vld [vmem:[%s1 + $0x28] sm:$0xff]
  %v146 = vld [vmem:[%s1 + $0x30] sm:$0xff]
  %v147 = vld [vmem:[%s1 + $0x38] sm:$0xff]
  %v148 = vld [vmem:[%s1 + $0x40] sm:$0xff]
  %v149 = vld [vmem:[%s1 + $0x48] sm:$0xff]
  %v150 = vld [vmem:[%s1 + $0x50] sm:$0xff]
  %v151 = vld [vmem:[%s1 + $0x58] sm:$0xff]
  %v152 = vld [vmem:[%s1 + $0x60] sm:$0xff]
  %v153 = vld [vmem:[%s1 + $0x68] sm:$0xff]
  %v154 = vld [vmem:[%s1 + $0x70] sm:$0xff]
  %v155 = vld [vmem:[%s1 + $0x78] sm:$0xff]
  %v156 = vld [vmem:[%s1 + $0x80] sm:$0xff]
  %v157 = vld [vmem:[%s1 + $0x88] sm:$0xff]
  %v158 = vld [vmem:[%s1 + $0x90] sm:$0xff]
  %v159 = vld [vmem:[%s1 + $0x98] sm:$0xff]
  %v160 = vld [vmem:[%s1 + $0xa0] sm:$0xff]
  %v161 = vld [vmem:[%s1 + $0xa8] sm:$0xff]
  %v162 = vld [vmem:[%s1 + $0xb0] sm:$0xff]
  %v163 = vld [vmem:[%s1 + $0xb8] sm:$0xff]
  %v164 = vld [vmem:[%s1 + $0xc0] sm:$0xff]
  %v165 = vld [vmem:[%s1 + $0xc8] sm:$0xff]
  %v166 = vld [vmem:[%s1 + $0xd0] sm:$0xff]
  %v167 = vld [vmem:[%s1 + $0xd8] sm:$0xff]
  %v168 = vld [vmem:[%s1 + $0xe0] sm:$0xff]
  %v169 = vld [vmem:[%s1 + $0xe8] sm:$0xff]
  %v170 = vld [vmem:[%s1 + $0xf0] sm:$0xff]
  %v171 = vld [vmem:[%s1 + $0xf8] sm:$0xff]
  %v172 = vld [vmem:[%s1 + $0x100] sm:$0xff]
  %v173 = vld [vmem:[%s1 + $0x108] sm:$0xff]
  %v174 = vld [vmem:[%s1 + $0x110] sm:$0xff]
  %v175 = vld [vmem:[%s1 + $0x118] sm:$0xff]
  %v176 = vld [vmem:[%s1 + $0x120] sm:$0xff]
  %v177 = vld [vmem:[%s1 + $0x128] sm:$0xff]
  %v178 = vld [vmem:[%s1 + $0x130] sm:$0xff]
  %v179 = vld [vmem:[%s1 + $0x138] sm:$0xff]
  %v180 = vld [vmem:[%s1 + $0x140] sm:$0xff]
  %v181 = vld [vmem:[%s1 + $0x148] sm:$0xff]
  %v182 = vld [vmem:[%s1 + $0x150] sm:$0xff]
  %v183 = vld [vmem:[%s1 + $0x158] sm:$0xff]
  %v184 = vld [vmem:[%s1 + $0x160] sm:$0xff]
  %v185 = vld [vmem:[%s1 + $0x168] sm:$0xff]
  %v186 = vld [vmem:[%s1 + $0x170] sm:$0xff]
  %v187 = vld [vmem:[%s1 + $0x178] sm:$0xff]
  %v188 = vld [vmem:[%s1 + $0x180] sm:$0xff]
  %v189 = vld [vmem:[%s1 + $0x188] sm:$0xff]
  %v190 = vld [vmem:[%s1 + $0x190] sm:$0xff]
  %v191 = vld [vmem:[%s1 + $0x198] sm:$0xff]
  %v192 = vld [vmem:[%s1 + $0x1a0] sm:$0xff]
  %v193 = vld [vmem:[%s1 + $0x1a8] sm:$0xff]
  %v194 = vld [vmem:[%s1 + $0x1b0] sm:$0xff]
  %v195 = vld [vmem:[%s1 + $0x1b8] sm:$0xff]
  %v196 = vld [vmem:[%s1 + $0x1c0] sm:$0xff]
  %v197 = vld [vmem:[%s1 + $0x1c8] sm:$0xff]
  %v198 = vld [vmem:[%s1 + $0x1d0] sm:$0xff]
  %v199 = vld [vmem:[%s1 + $0x1d8] sm:$0xff]
  %v200 = vld [vmem:[%s1 + $0x1e0] sm:$0xff]
  %v201 = vld [vmem:[%s1 + $0x1e8] sm:$0xff]
  %v202 = vld [vmem:[%s1 + $0x1f0] sm:$0xff]
  %v203 = vld [vmem:[%s1 + $0x1f8] sm:$0xff]
  %v204 = vld [vmem:[%s1 + $0x200] sm:$0xff]
  %v205 = vld [vmem:[%s1 + $0x208] sm:$0xff]
  %v206 = vld [vmem:[%s1 + $0x210] sm:$0xff]
  %v207 = vld [vmem:[%s1 + $0x218] sm:$0xff]
  %v208 = vld [vmem:[%s1 + $0x220] sm:$0xff]
  %v209 = vld [vmem:[%s1 + $0x228] sm:$0xff]
  %v210 = vld [vmem:[%s1 + $0x230] sm:$0xff]
  %v211 = vld [vmem:[%s1 + $0x238] sm:$0xff]
  %v212 = vld [vmem:[%s1 + $0x240] sm:$0xff]
  %v213 = vld [vmem:[%s1 + $0x248] sm:$0xff]
  %v214 = vld [vmem:[%s1 + $0x250] sm:$0xff]
  %v215 = vld [vmem:[%s1 + $0x258] sm:$0xff]
  %v216 = vld [vmem:[%s1 + $0x260] sm:$0xff]
  %v217 = vld [vmem:[%s1 + $0x268] sm:$0xff]
  %v218 = vld [vmem:[%s1 + $0x270] sm:$0xff]
  %v219 = vld [vmem:[%s1 + $0x278] sm:$0xff]
  %vm220 = vcmask 785408
  %v222 = vsel %vm220, %v143, 0
  %v225 = vsel %vm220, %v147, 0
  %v228 = vsel %vm220, %v151, 0
  %v231 = vsel %vm220, %v155, 0
  %v234 = vsel %vm220, %v159, 0
  %v237 = vsel %vm220, %v163, 0
  %v240 = vsel %vm220, %v167, 0
  %v243 = vsel %vm220, %v171, 0
  %v246 = vsel %vm220, %v175, 0
  %v249 = vsel %vm220, %v179, 0
  %v252 = vsel %vm220, %v183, 0
  %v255 = vsel %vm220, %v187, 0
  %v258 = vsel %vm220, %v191, 0
  %v261 = vsel %vm220, %v195, 0
  %v264 = vsel %vm220, %v199, 0
  %v267 = vsel %vm220, %v203, 0
  %v270 = vsel %vm220, %v207, 0
  %v273 = vsel %vm220, %v211, 0
  %v276 = vsel %vm220, %v215, 0
  %v279 = vsel %vm220, %v219, 0
  %281 = vmatprep.subr.mxu0 %v51
  %282 = vmatpush1.msra.mxu0 %v50
  %283 = vmatprep.subr.mxu0 %v49
  %284 = vmatpush1.msra.mxu0 %v48
  %285 = vmatprep.subr.mxu0 %v47
  %286 = vmatpush1.msra.mxu0 %v46
  %287 = vmatprep.subr.mxu0 %v45
  %288 = vmatpush1.msra.mxu0 %v44
  %289 = vmatprep.subr.mxu0 %v43
  %290 = vmatpush1.msra.mxu0 %v42
  %291 = vmatprep.subr.mxu0 %v41
  %292 = vmatpush1.msra.mxu0 %v40
  %293 = vmatprep.subr.mxu0 %v39
  %294 = vmatpush1.msra.mxu0 %v38
  %295 = vmatprep.subr.mxu0 %v37
  %296 = vmatpush1.msra.mxu0 %v36
  %297 = vmatprep.subr.mxu0 %v35
  %298 = vmatpush1.msra.mxu0 %v34
  %299 = vmatprep.subr.mxu0 %v33
  %300 = vmatpush1.msra.mxu0 %v32
  %301 = vmatprep.subr.mxu0 %v31
  %302 = vmatpush1.msra.mxu0 %v30
  %303 = vmatprep.subr.mxu0 %v29
  %304 = vmatpush1.msra.mxu0 %v28
  %305 = vmatprep.subr.mxu0 %v27
  %306 = vmatpush1.msra.mxu0 %v26
  %307 = vmatprep.subr.mxu0 %v25
  %308 = vmatpush1.msra.mxu0 %v24
  %309 = vmatprep.subr.mxu0 %v23
  %310 = vmatpush1.msra.mxu0 %v22
  %311 = vmatprep.subr.mxu0 %v21
  %312 = vmatpush1.msra.mxu0 %v20
  %313 = vmatprep.subr.mxu0 %v83
  %314 = vmatpush2.msra.mxu0 %v82
  %315 = vmatprep.subr.mxu0 %v81
  %316 = vmatpush2.msra.mxu0 %v80
  %317 = vmatprep.subr.mxu0 %v79
  %318 = vmatpush2.msra.mxu0 %v78
  %319 = vmatprep.subr.mxu0 %v77
  %320 = vmatpush2.msra.mxu0 %v76
  %321 = vmatprep.subr.mxu0 %v75
  %322 = vmatpush2.msra.mxu0 %v74
  %323 = vmatprep.subr.mxu0 %v73
  %324 = vmatpush2.msra.mxu0 %v72
  %325 = vmatprep.subr.mxu0 %v71
  %326 = vmatpush2.msra.mxu0 %v70
  %327 = vmatprep.subr.mxu0 %v69
  %328 = vmatpush2.msra.mxu0 %v68
  %329 = vmatprep.subr.mxu0 %v67
  %330 = vmatpush2.msra.mxu0 %v66
  %331 = vmatprep.subr.mxu0 %v65
  %332 = vmatpush2.msra.mxu0 %v64
  %333 = vmatprep.subr.mxu0 %v63
  %334 = vmatpush2.msra.mxu0 %v62
  %335 = vmatprep.subr.mxu0 %v61
  %336 = vmatpush2.msra.mxu0 %v60
  %337 = vmatprep.subr.mxu0 %v59
  %338 = vmatpush2.msra.mxu0 %v58
  %339 = vmatprep.subr.mxu0 %v57
  %340 = vmatpush2.msra.mxu0 %v56
  %341 = vmatprep.subr.mxu0 %v55
  %342 = vmatpush2.msra.mxu0 %v54
  %343 = vmatprep.subr.mxu0 %v53
  %344 = vmatpush2.msra.mxu0 %v52
  %345 = vmatprep.mubr.f32.mxu0 %v141
  %346 = vmatmul.mubr.f32.gmra.mxu0 %v140
  %v347 = vpop.f32.mrf.mxu0
  %v348 = vadd.f32 0.0, %v347
  %v349 = vpop.f32.mrf.mxu0
  %v350 = vadd.f32 0.0, %v349
  %351 = vmatprep.mubr.f32.mxu0 %v145
  %352 = vmatmul.mubr.f32.gmra.mxu0 %v144
  %v353 = vpop.f32.mrf.mxu0
  %v354 = vadd.f32 0.0, %v353
  %v355 = vpop.f32.mrf.mxu0
  %v356 = vadd.f32 0.0, %v355
  %357 = vmatprep.mubr.f32.mxu0 %v149
  %358 = vmatmul.mubr.f32.gmra.mxu0 %v148
  %v359 = vpop.f32.mrf.mxu0
  %v360 = vadd.f32 0.0, %v359
  %v361 = vpop.f32.mrf.mxu0
  %v362 = vadd.f32 0.0, %v361
  %363 = vmatprep.mubr.f32.mxu0 %v153
  %364 = vmatmul.mubr.f32.gmra.mxu0 %v152
  %v365 = vpop.f32.mrf.mxu0
  %v366 = vadd.f32 0.0, %v365
  %v367 = vpop.f32.mrf.mxu0
  %v368 = vadd.f32 0.0, %v367
  %369 = vmatprep.mubr.f32.mxu0 %v157
  %370 = vmatmul.mubr.f32.gmra.mxu0 %v156
  %v371 = vpop.f32.mrf.mxu0
  %v372 = vadd.f32 0.0, %v371
  %v373 = vpop.f32.mrf.mxu0
  %v374 = vadd.f32 0.0, %v373
  %375 = vmatprep.mubr.f32.mxu0 %v161
  %376 = vmatmul.mubr.f32.gmra.mxu0 %v160
  %v377 = vpop.f32.mrf.mxu0
  %v378 = vadd.f32 0.0, %v377
  %v379 = vpop.f32.mrf.mxu0
  %v380 = vadd.f32 0.0, %v379
  %381 = vmatprep.mubr.f32.mxu0 %v165
  %382 = vmatmul.mubr.f32.gmra.mxu0 %v164
  %v383 = vpop.f32.mrf.mxu0
  %v384 = vadd.f32 0.0, %v383
  %v385 = vpop.f32.mrf.mxu0
  %v386 = vadd.f32 0.0, %v385
  %387 = vmatprep.mubr.f32.mxu0 %v169
  %388 = vmatmul.mubr.f32.gmra.mxu0 %v168
  %v389 = vpop.f32.mrf.mxu0
  %v390 = vadd.f32 0.0, %v389
  %v391 = vpop.f32.mrf.mxu0
  %v392 = vadd.f32 0.0, %v391
  %393 = vmatprep.mubr.f32.mxu0 %v173
  %394 = vmatmul.mubr.f32.gmra.mxu0 %v172
  %v395 = vpop.f32.mrf.mxu0
  %v396 = vadd.f32 0.0, %v395
  %v397 = vpop.f32.mrf.mxu0
  %v398 = vadd.f32 0.0, %v397
  %399 = vmatprep.mubr.f32.mxu0 %v177
  %400 = vmatmul.mubr.f32.gmra.mxu0 %v176
  %v401 = vpop.f32.mrf.mxu0
  %v402 = vadd.f32 0.0, %v401
  %v403 = vpop.f32.mrf.mxu0
  %v404 = vadd.f32 0.0, %v403
  %405 = vmatprep.mubr.f32.mxu0 %v181
  %406 = vmatmul.mubr.f32.gmra.mxu0 %v180
  %v407 = vpop.f32.mrf.mxu0
  %v408 = vadd.f32 0.0, %v407
  %v409 = vpop.f32.mrf.mxu0
  %v410 = vadd.f32 0.0, %v409
  %411 = vmatprep.mubr.f32.mxu0 %v185
  %412 = vmatmul.mubr.f32.gmra.mxu0 %v184
  %v413 = vpop.f32.mrf.mxu0
  %v414 = vadd.f32 0.0, %v413
  %v415 = vpop.f32.mrf.mxu0
  %v416 = vadd.f32 0.0, %v415
  %417 = vmatprep.mubr.f32.mxu0 %v189
  %418 = vmatmul.mubr.f32.gmra.mxu0 %v188
  %v419 = vpop.f32.mrf.mxu0
  %v420 = vadd.f32 0.0, %v419
  %v421 = vpop.f32.mrf.mxu0
  %v422 = vadd.f32 0.0, %v421
  %423 = vmatprep.mubr.f32.mxu0 %v193
  %424 = vmatmul.mubr.f32.gmra.mxu0 %v192
  %v425 = vpop.f32.mrf.mxu0
  %v426 = vadd.f32 0.0, %v425
  %v427 = vpop.f32.mrf.mxu0
  %v428 = vadd.f32 0.0, %v427
  %429 = vmatprep.mubr.f32.mxu0 %v197
  %430 = vmatmul.mubr.f32.gmra.mxu0 %v196
  %v431 = vpop.f32.mrf.mxu0
  %v432 = vadd.f32 0.0, %v431
  %v433 = vpop.f32.mrf.mxu0
  %v434 = vadd.f32 0.0, %v433
  %435 = vmatprep.mubr.f32.mxu0 %v201
  %436 = vmatmul.mubr.f32.gmra.mxu0 %v200
  %v437 = vpop.f32.mrf.mxu0
  %v438 = vadd.f32 0.0, %v437
  %v439 = vpop.f32.mrf.mxu0
  %v440 = vadd.f32 0.0, %v439
  %441 = vmatprep.mubr.f32.mxu0 %v205
  %442 = vmatmul.mubr.f32.gmra.mxu0 %v204
  %v443 = vpop.f32.mrf.mxu0
  %v444 = vadd.f32 0.0, %v443
  %v445 = vpop.f32.mrf.mxu0
  %v446 = vadd.f32 0.0, %v445
  %447 = vmatprep.mubr.f32.mxu0 %v209
  %448 = vmatmul.mubr.f32.gmra.mxu0 %v208
  %v449 = vpop.f32.mrf.mxu0
  %v450 = vadd.f32 0.0, %v449
  %v451 = vpop.f32.mrf.mxu0
  %v452 = vadd.f32 0.0, %v451
  %453 = vmatprep.mubr.f32.mxu0 %v213
  %454 = vmatmul.mubr.f32.gmra.mxu0 %v212
  %v455 = vpop.f32.mrf.mxu0
  %v456 = vadd.f32 0.0, %v455
  %v457 = vpop.f32.mrf.mxu0
  %v458 = vadd.f32 0.0, %v457
  %459 = vmatprep.mubr.f32.mxu0 %v217
  %460 = vmatmul.mubr.f32.gmra.mxu0 %v216
  %v461 = vpop.f32.mrf.mxu0
  %v462 = vadd.f32 0.0, %v461
  %v463 = vpop.f32.mrf.mxu0
  %v464 = vadd.f32 0.0, %v463
  %465 = vdwg.mxu0
  %466 = vmatprep.subr.mxu0 %v115
  %467 = vmatpush1.msra.mxu0 %v114
  %468 = vmatprep.subr.mxu0 %v113
  %469 = vmatpush1.msra.mxu0 %v112
  %470 = vmatprep.subr.mxu0 %v111
  %471 = vmatpush1.msra.mxu0 %v110
  %472 = vmatprep.subr.mxu0 %v109
  %473 = vmatpush1.msra.mxu0 %v108
  %474 = vmatprep.subr.mxu0 %v107
  %475 = vmatpush1.msra.mxu0 %v106
  %476 = vmatprep.subr.mxu0 %v105
  %477 = vmatpush1.msra.mxu0 %v104
  %478 = vmatprep.subr.mxu0 %v103
  %479 = vmatpush1.msra.mxu0 %v102
  %480 = vmatprep.subr.mxu0 %v101
  %481 = vmatpush1.msra.mxu0 %v100
  %482 = vmatprep.subr.mxu0 %v99
  %483 = vmatpush1.msra.mxu0 %v98
  %484 = vmatprep.subr.mxu0 %v97
  %485 = vmatpush1.msra.mxu0 %v96
  %486 = vmatprep.subr.mxu0 %v95
  %487 = vmatpush1.msra.mxu0 %v94
  %488 = vmatprep.subr.mxu0 %v93
  %489 = vmatpush1.msra.mxu0 %v92
  %490 = vmatprep.subr.mxu0 %v91
  %491 = vmatpush1.msra.mxu0 %v90
  %492 = vmatprep.subr.mxu0 %v89
  %493 = vmatpush1.msra.mxu0 %v88
  %494 = vmatprep.subr.mxu0 %v87
  %495 = vmatpush1.msra.mxu0 %v86
  %496 = vmatprep.subr.mxu0 %v85
  %497 = vmatpush1.msra.mxu0 %v84
  %498 = vmatprep.subr.mxu0 0.0
  %499 = vmatpush2.msra.mxu0 0.0
  %500 = vmatprep.subr.mxu0 0.0
  %501 = vmatpush2.msra.mxu0 0.0
  %502 = vmatprep.subr.mxu0 0.0
  %503 = vmatpush2.msra.mxu0 0.0
  %504 = vmatprep.subr.mxu0 0.0
  %505 = vmatpush2.msra.mxu0 0.0
  %506 = vmatprep.subr.mxu0 %v139
  %507 = vmatpush2.msra.mxu0 %v138
  %508 = vmatprep.subr.mxu0 %v137
  %509 = vmatpush2.msra.mxu0 %v136
  %510 = vmatprep.subr.mxu0 %v135
  %511 = vmatpush2.msra.mxu0 %v134
  %512 = vmatprep.subr.mxu0 %v133
  %513 = vmatpush2.msra.mxu0 %v132
  %514 = vmatprep.subr.mxu0 %v131
  %515 = vmatpush2.msra.mxu0 %v130
  %516 = vmatprep.subr.mxu0 %v129
  %517 = vmatpush2.msra.mxu0 %v128
  %518 = vmatprep.subr.mxu0 %v127
  %519 = vmatpush2.msra.mxu0 %v126
  %520 = vmatprep.subr.mxu0 %v125
  %521 = vmatpush2.msra.mxu0 %v124
  %522 = vmatprep.subr.mxu0 %v123
  %523 = vmatpush2.msra.mxu0 %v122
  %524 = vmatprep.subr.mxu0 %v121
  %525 = vmatpush2.msra.mxu0 %v120
  %526 = vmatprep.subr.mxu0 %v119
  %527 = vmatpush2.msra.mxu0 %v118
  %528 = vmatprep.subr.mxu0 %v117
  %529 = vmatpush2.msra.mxu0 %v116
  %530 = vmatprep.mubr.f32.mxu0 %v222
  %531 = vmatmul.mubr.f32.gmra.mxu0 %v142
  %v532 = vpop.f32.mrf.mxu0
  %v533 = vadd.f32 %v348, %v532
  %v534 = vpop.f32.mrf.mxu0
  %v535 = vadd.f32 %v350, %v534
  %536 = vmatprep.mubr.f32.mxu0 %v225
  %537 = vmatmul.mubr.f32.gmra.mxu0 %v146
  %v538 = vpop.f32.mrf.mxu0
  %v539 = vadd.f32 %v354, %v538
  %v540 = vpop.f32.mrf.mxu0
  %v541 = vadd.f32 %v356, %v540
  %542 = vmatprep.mubr.f32.mxu0 %v228
  %543 = vmatmul.mubr.f32.gmra.mxu0 %v150
  %v544 = vpop.f32.mrf.mxu0
  %v545 = vadd.f32 %v360, %v544
  %v546 = vpop.f32.mrf.mxu0
  %v547 = vadd.f32 %v362, %v546
  %548 = vmatprep.mubr.f32.mxu0 %v231
  %549 = vmatmul.mubr.f32.gmra.mxu0 %v154
  %v550 = vpop.f32.mrf.mxu0
  %v551 = vadd.f32 %v366, %v550
  %v552 = vpop.f32.mrf.mxu0
  %v553 = vadd.f32 %v368, %v552
  %554 = vmatprep.mubr.f32.mxu0 %v234
  %555 = vmatmul.mubr.f32.gmra.mxu0 %v158
  %v556 = vpop.f32.mrf.mxu0
  %v557 = vadd.f32 %v372, %v556
  %v558 = vpop.f32.mrf.mxu0
  %v559 = vadd.f32 %v374, %v558
  %560 = vmatprep.mubr.f32.mxu0 %v237
  %561 = vmatmul.mubr.f32.gmra.mxu0 %v162
  %v562 = vpop.f32.mrf.mxu0
  %v563 = vadd.f32 %v378, %v562
  %v564 = vpop.f32.mrf.mxu0
  %v565 = vadd.f32 %v380, %v564
  %566 = vmatprep.mubr.f32.mxu0 %v240
  %567 = vmatmul.mubr.f32.gmra.mxu0 %v166
  %v568 = vpop.f32.mrf.mxu0
  %v569 = vadd.f32 %v384, %v568
  %v570 = vpop.f32.mrf.mxu0
  %v571 = vadd.f32 %v386, %v570
  %572 = vmatprep.mubr.f32.mxu0 %v243
  %573 = vmatmul.mubr.f32.gmra.mxu0 %v170
  %v574 = vpop.f32.mrf.mxu0
  %v575 = vadd.f32 %v390, %v574
  %v576 = vpop.f32.mrf.mxu0
  %v577 = vadd.f32 %v392, %v576
  %578 = vmatprep.mubr.f32.mxu0 %v246
  %579 = vmatmul.mubr.f32.gmra.mxu0 %v174
  %v580 = vpop.f32.mrf.mxu0
  %v581 = vadd.f32 %v396, %v580
  %v582 = vpop.f32.mrf.mxu0
  %v583 = vadd.f32 %v398, %v582
  %584 = vmatprep.mubr.f32.mxu0 %v249
  %585 = vmatmul.mubr.f32.gmra.mxu0 %v178
  %v586 = vpop.f32.mrf.mxu0
  %v587 = vadd.f32 %v402, %v586
  %v588 = vpop.f32.mrf.mxu0
  %v589 = vadd.f32 %v404, %v588
  %590 = vmatprep.mubr.f32.mxu0 %v252
  %591 = vmatmul.mubr.f32.gmra.mxu0 %v182
  %v592 = vpop.f32.mrf.mxu0
  %v593 = vadd.f32 %v408, %v592
  %v594 = vpop.f32.mrf.mxu0
  %v595 = vadd.f32 %v410, %v594
  %596 = vmatprep.mubr.f32.mxu0 %v255
  %597 = vmatmul.mubr.f32.gmra.mxu0 %v186
  %v598 = vpop.f32.mrf.mxu0
  %v599 = vadd.f32 %v414, %v598
  %v600 = vpop.f32.mrf.mxu0
  %v601 = vadd.f32 %v416, %v600
  %602 = vmatprep.mubr.f32.mxu0 %v258
  %603 = vmatmul.mubr.f32.gmra.mxu0 %v190
  %v604 = vpop.f32.mrf.mxu0
  %v605 = vadd.f32 %v420, %v604
  %v606 = vpop.f32.mrf.mxu0
  %v607 = vadd.f32 %v422, %v606
  %608 = vmatprep.mubr.f32.mxu0 %v261
  %609 = vmatmul.mubr.f32.gmra.mxu0 %v194
  %v610 = vpop.f32.mrf.mxu0
  %v611 = vadd.f32 %v426, %v610
  %v612 = vpop.f32.mrf.mxu0
  %v613 = vadd.f32 %v428, %v612
  %614 = vmatprep.mubr.f32.mxu0 %v264
  %615 = vmatmul.mubr.f32.gmra.mxu0 %v198
  %v616 = vpop.f32.mrf.mxu0
  %v617 = vadd.f32 %v432, %v616
  %v618 = vpop.f32.mrf.mxu0
  %v619 = vadd.f32 %v434, %v618
  %620 = vmatprep.mubr.f32.mxu0 %v267
  %621 = vmatmul.mubr.f32.gmra.mxu0 %v202
  %v622 = vpop.f32.mrf.mxu0
  %v623 = vadd.f32 %v438, %v622
  %v624 = vpop.f32.mrf.mxu0
  %v625 = vadd.f32 %v440, %v624
  %626 = vmatprep.mubr.f32.mxu0 %v270
  %627 = vmatmul.mubr.f32.gmra.mxu0 %v206
  %v628 = vpop.f32.mrf.mxu0
  %v629 = vadd.f32 %v444, %v628
  %v630 = vpop.f32.mrf.mxu0
  %v631 = vadd.f32 %v446, %v630
  %632 = vmatprep.mubr.f32.mxu0 %v273
  %633 = vmatmul.mubr.f32.gmra.mxu0 %v210
  %v634 = vpop.f32.mrf.mxu0
  %v635 = vadd.f32 %v450, %v634
  %v636 = vpop.f32.mrf.mxu0
  %v637 = vadd.f32 %v452, %v636
  %638 = vmatprep.mubr.f32.mxu0 %v276
  %639 = vmatmul.mubr.f32.gmra.mxu0 %v214
  %v640 = vpop.f32.mrf.mxu0
  %v641 = vadd.f32 %v456, %v640
  %v642 = vpop.f32.mrf.mxu0
  %v643 = vadd.f32 %v458, %v642
  %644 = vmatprep.mubr.f32.mxu0 %v279
  %645 = vmatmul.mubr.f32.gmra.mxu0 %v218
  %v646 = vpop.f32.mrf.mxu0
  %v647 = vadd.f32 %v462, %v646
  %v648 = vpop.f32.mrf.mxu0
  %v649 = vadd.f32 %v464, %v648
  %650 = vdwg.mxu0
  %v651 = vld [vmem:[%s2] sm:$0xff]
  %v652 = vld [vmem:[%s2 + $0x8] sm:$0xff]
  %v653 = vld [vmem:[%s2 + $0x10] sm:$0xff]
  %v654 = vld [vmem:[%s2 + $0x18] sm:$0xff]
  %v655 = vld [vmem:[%s2 + $0x20] sm:$0xff]
  %v656 = vld [vmem:[%s2 + $0x28] sm:$0xff]
  %v657 = vld [vmem:[%s2 + $0x30] sm:$0xff]
  %v658 = vld [vmem:[%s2 + $0x38] sm:$0xff]
  %v659 = vld [vmem:[%s2 + $0x40] sm:$0xff]
  %v660 = vld [vmem:[%s2 + $0x48] sm:$0xff]
  %v661 = vld [vmem:[%s2 + $0x50] sm:$0xff]
  %v662 = vld [vmem:[%s2 + $0x58] sm:$0xff]
  %v663 = vld [vmem:[%s2 + $0x60] sm:$0xff]
  %v664 = vld [vmem:[%s2 + $0x68] sm:$0xff]
  %v665 = vld [vmem:[%s2 + $0x70] sm:$0xff]
  %v666 = vld [vmem:[%s2 + $0x78] sm:$0xff]
  %v667 = vld [vmem:[%s2 + $0x80] sm:$0xff]
  %v668 = vld [vmem:[%s2 + $0x88] sm:$0xff]
  %v669 = vld [vmem:[%s2 + $0x90] sm:$0xff]
  %v670 = vld [vmem:[%s2 + $0x98] sm:$0xff]
  %vm671 = vcmask 556032
  %v672 = vsel %vm671, %v535, 0.0
  %v673 = vadd.f32 %v533, %v672
  %674 = vadd.xlane.f32.xlu0 %v673
  %v675 = vpop.xlane.xlu0 %674
  %v676 = vsel %vm671, %v541, 0.0
  %v677 = vadd.f32 %v539, %v676
  %678 = vadd.xlane.f32.xlu0 %v677
  %v679 = vpop.xlane.xlu0 %678
  %v680 = vsel %vm671, %v547, 0.0
  %v681 = vadd.f32 %v545, %v680
  %682 = vadd.xlane.f32.xlu0 %v681
  %v683 = vpop.xlane.xlu0 %682
  %v684 = vsel %vm671, %v553, 0.0
  %v685 = vadd.f32 %v551, %v684
  %686 = vadd.xlane.f32.xlu0 %v685
  %v687 = vpop.xlane.xlu0 %686
  %v688 = vsel %vm671, %v559, 0.0
  %v689 = vadd.f32 %v557, %v688
  %690 = vadd.xlane.f32.xlu0 %v689
  %v691 = vpop.xlane.xlu0 %690
  %v692 = vsel %vm671, %v565, 0.0
  %v693 = vadd.f32 %v563, %v692
  %694 = vadd.xlane.f32.xlu0 %v693
  %v695 = vpop.xlane.xlu0 %694
  %v696 = vsel %vm671, %v571, 0.0
  %v697 = vadd.f32 %v569, %v696
  %698 = vadd.xlane.f32.xlu0 %v697
  %v699 = vpop.xlane.xlu0 %698
  %v700 = vsel %vm671, %v577, 0.0
  %v701 = vadd.f32 %v575, %v700
  %702 = vadd.xlane.f32.xlu0 %v701
  %v703 = vpop.xlane.xlu0 %702
  %v704 = vsel %vm671, %v583, 0.0
  %v705 = vadd.f32 %v581, %v704
  %706 = vadd.xlane.f32.xlu0 %v705
  %v707 = vpop.xlane.xlu0 %706
  %v708 = vsel %vm671, %v589, 0.0
  %v709 = vadd.f32 %v587, %v708
  %710 = vadd.xlane.f32.xlu0 %v709
  %v711 = vpop.xlane.xlu0 %710
  %v712 = vsel %vm671, %v595, 0.0
  %v713 = vadd.f32 %v593, %v712
  %714 = vadd.xlane.f32.xlu0 %v713
  %v715 = vpop.xlane.xlu0 %714
  %v716 = vsel %vm671, %v601, 0.0
  %v717 = vadd.f32 %v599, %v716
  %718 = vadd.xlane.f32.xlu0 %v717
  %v719 = vpop.xlane.xlu0 %718
  %v720 = vsel %vm671, %v607, 0.0
  %v721 = vadd.f32 %v605, %v720
  %722 = vadd.xlane.f32.xlu0 %v721
  %v723 = vpop.xlane.xlu0 %722
  %v724 = vsel %vm671, %v613, 0.0
  %v725 = vadd.f32 %v611, %v724
  %726 = vadd.xlane.f32.xlu0 %v725
  %v727 = vpop.xlane.xlu0 %726
  %v728 = vsel %vm671, %v619, 0.0
  %v729 = vadd.f32 %v617, %v728
  %730 = vadd.xlane.f32.xlu0 %v729
  %v731 = vpop.xlane.xlu0 %730
  %v732 = vsel %vm671, %v625, 0.0
  %v733 = vadd.f32 %v623, %v732
  %734 = vadd.xlane.f32.xlu0 %v733
  %v735 = vpop.xlane.xlu0 %734
  %v736 = vsel %vm671, %v631, 0.0
  %v737 = vadd.f32 %v629, %v736
  %738 = vadd.xlane.f32.xlu0 %v737
  %v739 = vpop.xlane.xlu0 %738
  %v740 = vsel %vm671, %v637, 0.0
  %v741 = vadd.f32 %v635, %v740
  %742 = vadd.xlane.f32.xlu0 %v741
  %v743 = vpop.xlane.xlu0 %742
  %v744 = vsel %vm671, %v643, 0.0
  %v745 = vadd.f32 %v641, %v744
  %746 = vadd.xlane.f32.xlu0 %v745
  %v747 = vpop.xlane.xlu0 %746
  %v748 = vsel %vm671, %v649, 0.0
  %v749 = vadd.f32 %v647, %v748
  %750 = vadd.xlane.f32.xlu0 %v749
  %v751 = vpop.xlane.xlu0 %750
  %v752 = vmul.f32 %v675, 0.0051020407
  %v753 = vmul.f32 %v679, 0.0051020407
  %v754 = vmul.f32 %v683, 0.0051020407
  %v755 = vmul.f32 %v687, 0.0051020407
  %v756 = vmul.f32 %v691, 0.0051020407
  %v757 = vmul.f32 %v695, 0.0051020407
  %v758 = vmul.f32 %v699, 0.0051020407
  %v759 = vmul.f32 %v703, 0.0051020407
  %v760 = vmul.f32 %v707, 0.0051020407
  %v761 = vmul.f32 %v711, 0.0051020407
  %v762 = vmul.f32 %v715, 0.0051020407
  %v763 = vmul.f32 %v719, 0.0051020407
  %v764 = vmul.f32 %v723, 0.0051020407
  %v765 = vmul.f32 %v727, 0.0051020407
  %v766 = vmul.f32 %v731, 0.0051020407
  %v767 = vmul.f32 %v735, 0.0051020407
  %v768 = vmul.f32 %v739, 0.0051020407
  %v769 = vmul.f32 %v743, 0.0051020407
  %v770 = vmul.f32 %v747, 0.0051020407
  %v771 = vmul.f32 %v751, 0.0051020407
  %v772 = vsub.f32 %v533, %v752
  %v773 = vsub.f32 %v535, %v752
  %v774 = vsub.f32 %v539, %v753
  %v775 = vsub.f32 %v541, %v753
  %v776 = vsub.f32 %v545, %v754
  %v777 = vsub.f32 %v547, %v754
  %v778 = vsub.f32 %v551, %v755
  %v779 = vsub.f32 %v553, %v755
  %v780 = vsub.f32 %v557, %v756
  %v781 = vsub.f32 %v559, %v756
  %v782 = vsub.f32 %v563, %v757
  %v783 = vsub.f32 %v565, %v757
  %v784 = vsub.f32 %v569, %v758
  %v785 = vsub.f32 %v571, %v758
  %v786 = vsub.f32 %v575, %v759
  %v787 = vsub.f32 %v577, %v759
  %v788 = vsub.f32 %v581, %v760
  %v789 = vsub.f32 %v583, %v760
  %v790 = vsub.f32 %v587, %v761
  %v791 = vsub.f32 %v589, %v761
  %v792 = vsub.f32 %v593, %v762
  %v793 = vsub.f32 %v595, %v762
  %v794 = vsub.f32 %v599, %v763
  %v795 = vsub.f32 %v601, %v763
  %v796 = vsub.f32 %v605, %v764
  %v797 = vsub.f32 %v607, %v764
  %v798 = vsub.f32 %v611, %v765
  %v799 = vsub.f32 %v613, %v765
  %v800 = vsub.f32 %v617, %v766
  %v801 = vsub.f32 %v619, %v766
  %v802 = vsub.f32 %v623, %v767
  %v803 = vsub.f32 %v625, %v767
  %v804 = vsub.f32 %v629, %v768
  %v805 = vsub.f32 %v631, %v768
  %v806 = vsub.f32 %v635, %v769
  %v807 = vsub.f32 %v637, %v769
  %v808 = vsub.f32 %v641, %v770
  %v809 = vsub.f32 %v643, %v770
  %v810 = vsub.f32 %v647, %v771
  %v811 = vsub.f32 %v649, %v771
  %v812 = vmul.f32 %v772, %v772
  %v813 = vmul.f32 %v773, %v773
  %v814 = vmul.f32 %v774, %v774
  %v815 = vmul.f32 %v775, %v775
  %v816 = vmul.f32 %v776, %v776
  %v817 = vmul.f32 %v777, %v777
  %v818 = vmul.f32 %v778, %v778
  %v819 = vmul.f32 %v779, %v779
  %v820 = vmul.f32 %v780, %v780
  %v821 = vmul.f32 %v781, %v781
  %v822 = vmul.f32 %v782, %v782
  %v823 = vmul.f32 %v783, %v783
  %v824 = vmul.f32 %v784, %v784
  %v825 = vmul.f32 %v785, %v785
  %v826 = vmul.f32 %v786, %v786
  %v827 = vmul.f32 %v787, %v787
  %v828 = vmul.f32 %v788, %v788
  %v829 = vmul.f32 %v789, %v789
  %v830 = vmul.f32 %v790, %v790
  %v831 = vmul.f32 %v791, %v791
  %v832 = vmul.f32 %v792, %v792
  %v833 = vmul.f32 %v793, %v793
  %v834 = vmul.f32 %v794, %v794
  %v835 = vmul.f32 %v795, %v795
  %v836 = vmul.f32 %v796, %v796
  %v837 = vmul.f32 %v797, %v797
  %v838 = vmul.f32 %v798, %v798
  %v839 = vmul.f32 %v799, %v799
  %v840 = vmul.f32 %v800, %v800
  %v841 = vmul.f32 %v801, %v801
  %v842 = vmul.f32 %v802, %v802
  %v843 = vmul.f32 %v803, %v803
  %v844 = vmul.f32 %v804, %v804
  %v845 = vmul.f32 %v805, %v805
  %v846 = vmul.f32 %v806, %v806
  %v847 = vmul.f32 %v807, %v807
  %v848 = vmul.f32 %v808, %v808
  %v849 = vmul.f32 %v809, %v809
  %v850 = vmul.f32 %v810, %v810
  %v851 = vmul.f32 %v811, %v811
  %v852 = vsel %vm671, %v813, 0.0
  %v853 = vadd.f32 %v812, %v852
  %854 = vadd.xlane.f32.xlu0 %v853
  %v855 = vpop.xlane.xlu0 %854
  %v856 = vsel %vm671, %v815, 0.0
  %v857 = vadd.f32 %v814, %v856
  %858 = vadd.xlane.f32.xlu0 %v857
  %v859 = vpop.xlane.xlu0 %858
  %v860 = vsel %vm671, %v817, 0.0
  %v861 = vadd.f32 %v816, %v860
  %862 = vadd.xlane.f32.xlu0 %v861
  %v863 = vpop.xlane.xlu0 %862
  %v864 = vsel %vm671, %v819, 0.0
  %v865 = vadd.f32 %v818, %v864
  %866 = vadd.xlane.f32.xlu0 %v865
  %v867 = vpop.xlane.xlu0 %866
  %v868 = vsel %vm671, %v821, 0.0
  %v869 = vadd.f32 %v820, %v868
  %870 = vadd.xlane.f32.xlu0 %v869
  %v871 = vpop.xlane.xlu0 %870
  %v872 = vsel %vm671, %v823, 0.0
  %v873 = vadd.f32 %v822, %v872
  %874 = vadd.xlane.f32.xlu0 %v873
  %v875 = vpop.xlane.xlu0 %874
  %v876 = vsel %vm671, %v825, 0.0
  %v877 = vadd.f32 %v824, %v876
  %878 = vadd.xlane.f32.xlu0 %v877
  %v879 = vpop.xlane.xlu0 %878
  %v880 = vsel %vm671, %v827, 0.0
  %v881 = vadd.f32 %v826, %v880
  %882 = vadd.xlane.f32.xlu0 %v881
  %v883 = vpop.xlane.xlu0 %882
  %v884 = vsel %vm671, %v829, 0.0
  %v885 = vadd.f32 %v828, %v884
  %886 = vadd.xlane.f32.xlu0 %v885
  %v887 = vpop.xlane.xlu0 %886
  %v888 = vsel %vm671, %v831, 0.0
  %v889 = vadd.f32 %v830, %v888
  %890 = vadd.xlane.f32.xlu0 %v889
  %v891 = vpop.xlane.xlu0 %890
  %v892 = vsel %vm671, %v833, 0.0
  %v893 = vadd.f32 %v832, %v892
  %894 = vadd.xlane.f32.xlu0 %v893
  %v895 = vpop.xlane.xlu0 %894
  %v896 = vsel %vm671, %v835, 0.0
  %v897 = vadd.f32 %v834, %v896
  %898 = vadd.xlane.f32.xlu0 %v897
  %v899 = vpop.xlane.xlu0 %898
  %v900 = vsel %vm671, %v837, 0.0
  %v901 = vadd.f32 %v836, %v900
  %902 = vadd.xlane.f32.xlu0 %v901
  %v903 = vpop.xlane.xlu0 %902
  %v904 = vsel %vm671, %v839, 0.0
  %v905 = vadd.f32 %v838, %v904
  %906 = vadd.xlane.f32.xlu0 %v905
  %v907 = vpop.xlane.xlu0 %906
  %v908 = vsel %vm671, %v841, 0.0
  %v909 = vadd.f32 %v840, %v908
  %910 = vadd.xlane.f32.xlu0 %v909
  %v911 = vpop.xlane.xlu0 %910
  %v912 = vsel %vm671, %v843, 0.0
  %v913 = vadd.f32 %v842, %v912
  %914 = vadd.xlane.f32.xlu0 %v913
  %v915 = vpop.xlane.xlu0 %914
  %v916 = vsel %vm671, %v845, 0.0
  %v917 = vadd.f32 %v844, %v916
  %918 = vadd.xlane.f32.xlu0 %v917
  %v919 = vpop.xlane.xlu0 %918
  %v920 = vsel %vm671, %v847, 0.0
  %v921 = vadd.f32 %v846, %v920
  %922 = vadd.xlane.f32.xlu0 %v921
  %v923 = vpop.xlane.xlu0 %922
  %v924 = vsel %vm671, %v849, 0.0
  %v925 = vadd.f32 %v848, %v924
  %926 = vadd.xlane.f32.xlu0 %v925
  %v927 = vpop.xlane.xlu0 %926
  %v928 = vsel %vm671, %v851, 0.0
  %v929 = vadd.f32 %v850, %v928
  %930 = vadd.xlane.f32.xlu0 %v929
  %v931 = vpop.xlane.xlu0 %930
  %v932 = vmul.f32 %v855, 0.0051020407
  %v933 = vmul.f32 %v859, 0.0051020407
  %v934 = vmul.f32 %v863, 0.0051020407
  %v935 = vmul.f32 %v867, 0.0051020407
  %v936 = vmul.f32 %v871, 0.0051020407
  %v937 = vmul.f32 %v875, 0.0051020407
  %v938 = vmul.f32 %v879, 0.0051020407
  %v939 = vmul.f32 %v883, 0.0051020407
  %v940 = vmul.f32 %v887, 0.0051020407
  %v941 = vmul.f32 %v891, 0.0051020407
  %v942 = vmul.f32 %v895, 0.0051020407
  %v943 = vmul.f32 %v899, 0.0051020407
  %v944 = vmul.f32 %v903, 0.0051020407
  %v945 = vmul.f32 %v907, 0.0051020407
  %v946 = vmul.f32 %v911, 0.0051020407
  %v947 = vmul.f32 %v915, 0.0051020407
  %v948 = vmul.f32 %v919, 0.0051020407
  %v949 = vmul.f32 %v923, 0.0051020407
  %v950 = vmul.f32 %v927, 0.0051020407
  %v951 = vmul.f32 %v931, 0.0051020407
  %v952 = vadd.f32 %v932, 1e-05
  %v953 = vadd.f32 %v933, 1e-05
  %v954 = vadd.f32 %v934, 1e-05
  %v955 = vadd.f32 %v935, 1e-05
  %v956 = vadd.f32 %v936, 1e-05
  %v957 = vadd.f32 %v937, 1e-05
  %v958 = vadd.f32 %v938, 1e-05
  %v959 = vadd.f32 %v939, 1e-05
  %v960 = vadd.f32 %v940, 1e-05
  %v961 = vadd.f32 %v941, 1e-05
  %v962 = vadd.f32 %v942, 1e-05
  %v963 = vadd.f32 %v943, 1e-05
  %v964 = vadd.f32 %v944, 1e-05
  %v965 = vadd.f32 %v945, 1e-05
  %v966 = vadd.f32 %v946, 1e-05
  %v967 = vadd.f32 %v947, 1e-05
  %v968 = vadd.f32 %v948, 1e-05
  %v969 = vadd.f32 %v949, 1e-05
  %v970 = vadd.f32 %v950, 1e-05
  %v971 = vadd.f32 %v951, 1e-05
  %v972 = vrsqrt.pop %v952
  %v973 = vrsqrt.pop %v953
  %v974 = vrsqrt.pop %v954
  %v975 = vrsqrt.pop %v955
  %v976 = vrsqrt.pop %v956
  %v977 = vrsqrt.pop %v957
  %v978 = vrsqrt.pop %v958
  %v979 = vrsqrt.pop %v959
  %v980 = vrsqrt.pop %v960
  %v981 = vrsqrt.pop %v961
  %v982 = vrsqrt.pop %v962
  %v983 = vrsqrt.pop %v963
  %v984 = vrsqrt.pop %v964
  %v985 = vrsqrt.pop %v965
  %v986 = vrsqrt.pop %v966
  %v987 = vrsqrt.pop %v967
  %v988 = vrsqrt.pop %v968
  %v989 = vrsqrt.pop %v969
  %v990 = vrsqrt.pop %v970
  %v991 = vrsqrt.pop %v971
  %v992 = vmul.f32 %v651, %v972
  %v993 = vmul.f32 %v652, %v973
  %v994 = vmul.f32 %v653, %v974
  %v995 = vmul.f32 %v654, %v975
  %v996 = vmul.f32 %v655, %v976
  %v997 = vmul.f32 %v656, %v977
  %v998 = vmul.f32 %v657, %v978
  %v999 = vmul.f32 %v658, %v979
  %v1000 = vmul.f32 %v659, %v980
  %v1001 = vmul.f32 %v660, %v981
  %v1002 = vmul.f32 %v661, %v982
  %v1003 = vmul.f32 %v662, %v983
  %v1004 = vmul.f32 %v663, %v984
  %v1005 = vmul.f32 %v664, %v985
  %v1006 = vmul.f32 %v665, %v986
  %v1007 = vmul.f32 %v666, %v987
  %v1008 = vmul.f32 %v667, %v988
  %v1009 = vmul.f32 %v668, %v989
  %v1010 = vmul.f32 %v669, %v990
  %v1011 = vmul.f32 %v670, %v991
  %1013 = vset.pattern.permute.xlu0 0
  %1014 = vperm.xlu0 %1013, %v992
  %v1015 = vpop.permute.xlu0 %1014
  %1018 = vset.pattern.permute.xlu0 0
  %1019 = vperm.xlu0 %1018, %v993
  %v1020 = vpop.permute.xlu0 %1019
  %1023 = vset.pattern.permute.xlu0 0
  %1024 = vperm.xlu0 %1023, %v994
  %v1025 = vpop.permute.xlu0 %1024
  %1028 = vset.pattern.permute.xlu0 0
  %1029 = vperm.xlu0 %1028, %v995
  %v1030 = vpop.permute.xlu0 %1029
  %1033 = vset.pattern.permute.xlu0 0
  %1034 = vperm.xlu0 %1033, %v996
  %v1035 = vpop.permute.xlu0 %1034
  %1038 = vset.pattern.permute.xlu0 0
  %1039 = vperm.xlu0 %1038, %v997
  %v1040 = vpop.permute.xlu0 %1039
  %1043 = vset.pattern.permute.xlu0 0
  %1044 = vperm.xlu0 %1043, %v998
  %v1045 = vpop.permute.xlu0 %1044
  %1048 = vset.pattern.permute.xlu0 0
  %1049 = vperm.xlu0 %1048, %v999
  %v1050 = vpop.permute.xlu0 %1049
  %1053 = vset.pattern.permute.xlu0 0
  %1054 = vperm.xlu0 %1053, %v1000
  %v1055 = vpop.permute.xlu0 %1054
  %1058 = vset.pattern.permute.xlu0 0
  %1059 = vperm.xlu0 %1058, %v1001
  %v1060 = vpop.permute.xlu0 %1059
  %1063 = vset.pattern.permute.xlu0 0
  %1064 = vperm.xlu0 %1063, %v1002
  %v1065 = vpop.permute.xlu0 %1064
  %1068 = vset.pattern.permute.xlu0 0
  %1069 = vperm.xlu0 %1068, %v1003
  %v1070 = vpop.permute.xlu0 %1069
  %1073 = vset.pattern.permute.xlu0 0
  %1074 = vperm.xlu0 %1073, %v1004
  %v1075 = vpop.permute.xlu0 %1074
  %1078 = vset.pattern.permute.xlu0 0
  %1079 = vperm.xlu0 %1078, %v1005
  %v1080 = vpop.permute.xlu0 %1079
  %1083 = vset.pattern.permute.xlu0 0
  %1084 = vperm.xlu0 %1083, %v1006
  %v1085 = vpop.permute.xlu0 %1084
  %1088 = vset.pattern.permute.xlu0 0
  %1089 = vperm.xlu0 %1088, %v1007
  %v1090 = vpop.permute.xlu0 %1089
  %1093 = vset.pattern.permute.xlu0 0
  %1094 = vperm.xlu0 %1093, %v1008
  %v1095 = vpop.permute.xlu0 %1094
  %1098 = vset.pattern.permute.xlu0 0
  %1099 = vperm.xlu0 %1098, %v1009
  %v1100 = vpop.permute.xlu0 %1099
  %1103 = vset.pattern.permute.xlu0 0
  %1104 = vperm.xlu0 %1103, %v1010
  %v1105 = vpop.permute.xlu0 %1104
  %1108 = vset.pattern.permute.xlu0 0
  %1109 = vperm.xlu0 %1108, %v1011
  %v1110 = vpop.permute.xlu0 %1109
  %v1112 = vmul.f32 %v772, %v1015
  %v1113 = vmul.f32 %v773, %v1015
  %v1114 = vmul.f32 %v774, %v1020
  %v1115 = vmul.f32 %v775, %v1020
  %v1116 = vmul.f32 %v776, %v1025
  %v1117 = vmul.f32 %v777, %v1025
  %v1118 = vmul.f32 %v778, %v1030
  %v1119 = vmul.f32 %v779, %v1030
  %v1120 = vmul.f32 %v780, %v1035
  %v1121 = vmul.f32 %v781, %v1035
  %v1122 = vmul.f32 %v782, %v1040
  %v1123 = vmul.f32 %v783, %v1040
  %v1124 = vmul.f32 %v784, %v1045
  %v1125 = vmul.f32 %v785, %v1045
  %v1126 = vmul.f32 %v786, %v1050
  %v1127 = vmul.f32 %v787, %v1050
  %v1128 = vmul.f32 %v788, %v1055
  %v1129 = vmul.f32 %v789, %v1055
  %v1130 = vmul.f32 %v790, %v1060
  %v1131 = vmul.f32 %v791, %v1060
  %v1132 = vmul.f32 %v792, %v1065
  %v1133 = vmul.f32 %v793, %v1065
  %v1134 = vmul.f32 %v794, %v1070
  %v1135 = vmul.f32 %v795, %v1070
  %v1136 = vmul.f32 %v796, %v1075
  %v1137 = vmul.f32 %v797, %v1075
  %v1138 = vmul.f32 %v798, %v1080
  %v1139 = vmul.f32 %v799, %v1080
  %v1140 = vmul.f32 %v800, %v1085
  %v1141 = vmul.f32 %v801, %v1085
  %v1142 = vmul.f32 %v802, %v1090
  %v1143 = vmul.f32 %v803, %v1090
  %v1144 = vmul.f32 %v804, %v1095
  %v1145 = vmul.f32 %v805, %v1095
  %v1146 = vmul.f32 %v806, %v1100
  %v1147 = vmul.f32 %v807, %v1100
  %v1148 = vmul.f32 %v808, %v1105
  %v1149 = vmul.f32 %v809, %v1105
  %v1150 = vmul.f32 %v810, %v1110
  %v1151 = vmul.f32 %v811, %v1110
  %1153 = vset.pattern.permute.xlu0 1
  %1154 = vperm.xlu0 %1153, %v651
  %v1155 = vpop.permute.xlu0 %1154
  %1158 = vset.pattern.permute.xlu0 1
  %1159 = vperm.xlu0 %1158, %v652
  %v1160 = vpop.permute.xlu0 %1159
  %1163 = vset.pattern.permute.xlu0 1
  %1164 = vperm.xlu0 %1163, %v653
  %v1165 = vpop.permute.xlu0 %1164
  %1168 = vset.pattern.permute.xlu0 1
  %1169 = vperm.xlu0 %1168, %v654
  %v1170 = vpop.permute.xlu0 %1169
  %1173 = vset.pattern.permute.xlu0 1
  %1174 = vperm.xlu0 %1173, %v655
  %v1175 = vpop.permute.xlu0 %1174
  %1178 = vset.pattern.permute.xlu0 1
  %1179 = vperm.xlu0 %1178, %v656
  %v1180 = vpop.permute.xlu0 %1179
  %1183 = vset.pattern.permute.xlu0 1
  %1184 = vperm.xlu0 %1183, %v657
  %v1185 = vpop.permute.xlu0 %1184
  %1188 = vset.pattern.permute.xlu0 1
  %1189 = vperm.xlu0 %1188, %v658
  %v1190 = vpop.permute.xlu0 %1189
  %1193 = vset.pattern.permute.xlu0 1
  %1194 = vperm.xlu0 %1193, %v659
  %v1195 = vpop.permute.xlu0 %1194
  %1198 = vset.pattern.permute.xlu0 1
  %1199 = vperm.xlu0 %1198, %v660
  %v1200 = vpop.permute.xlu0 %1199
  %1203 = vset.pattern.permute.xlu0 1
  %1204 = vperm.xlu0 %1203, %v661
  %v1205 = vpop.permute.xlu0 %1204
  %1208 = vset.pattern.permute.xlu0 1
  %1209 = vperm.xlu0 %1208, %v662
  %v1210 = vpop.permute.xlu0 %1209
  %1213 = vset.pattern.permute.xlu0 1
  %1214 = vperm.xlu0 %1213, %v663
  %v1215 = vpop.permute.xlu0 %1214
  %1218 = vset.pattern.permute.xlu0 1
  %1219 = vperm.xlu0 %1218, %v664
  %v1220 = vpop.permute.xlu0 %1219
  %1223 = vset.pattern.permute.xlu0 1
  %1224 = vperm.xlu0 %1223, %v665
  %v1225 = vpop.permute.xlu0 %1224
  %1228 = vset.pattern.permute.xlu0 1
  %1229 = vperm.xlu0 %1228, %v666
  %v1230 = vpop.permute.xlu0 %1229
  %1233 = vset.pattern.permute.xlu0 1
  %1234 = vperm.xlu0 %1233, %v667
  %v1235 = vpop.permute.xlu0 %1234
  %1238 = vset.pattern.permute.xlu0 1
  %1239 = vperm.xlu0 %1238, %v668
  %v1240 = vpop.permute.xlu0 %1239
  %1243 = vset.pattern.permute.xlu0 1
  %1244 = vperm.xlu0 %1243, %v669
  %v1245 = vpop.permute.xlu0 %1244
  %1248 = vset.pattern.permute.xlu0 1
  %1249 = vperm.xlu0 %1248, %v670
  %v1250 = vpop.permute.xlu0 %1249
  %v1252 = vadd.f32 %v1112, %v1155
  %v1253 = vadd.f32 %v1113, %v1155
  %v1254 = vadd.f32 %v1114, %v1160
  %v1255 = vadd.f32 %v1115, %v1160
  %v1256 = vadd.f32 %v1116, %v1165
  %v1257 = vadd.f32 %v1117, %v1165
  %v1258 = vadd.f32 %v1118, %v1170
  %v1259 = vadd.f32 %v1119, %v1170
  %v1260 = vadd.f32 %v1120, %v1175
  %v1261 = vadd.f32 %v1121, %v1175
  %v1262 = vadd.f32 %v1122, %v1180
  %v1263 = vadd.f32 %v1123, %v1180
  %v1264 = vadd.f32 %v1124, %v1185
  %v1265 = vadd.f32 %v1125, %v1185
  %v1266 = vadd.f32 %v1126, %v1190
  %v1267 = vadd.f32 %v1127, %v1190
  %v1268 = vadd.f32 %v1128, %v1195
  %v1269 = vadd.f32 %v1129, %v1195
  %v1270 = vadd.f32 %v1130, %v1200
  %v1271 = vadd.f32 %v1131, %v1200
  %v1272 = vadd.f32 %v1132, %v1205
  %v1273 = vadd.f32 %v1133, %v1205
  %v1274 = vadd.f32 %v1134, %v1210
  %v1275 = vadd.f32 %v1135, %v1210
  %v1276 = vadd.f32 %v1136, %v1215
  %v1277 = vadd.f32 %v1137, %v1215
  %v1278 = vadd.f32 %v1138, %v1220
  %v1279 = vadd.f32 %v1139, %v1220
  %v1280 = vadd.f32 %v1140, %v1225
  %v1281 = vadd.f32 %v1141, %v1225
  %v1282 = vadd.f32 %v1142, %v1230
  %v1283 = vadd.f32 %v1143, %v1230
  %v1284 = vadd.f32 %v1144, %v1235
  %v1285 = vadd.f32 %v1145, %v1235
  %v1286 = vadd.f32 %v1146, %v1240
  %v1287 = vadd.f32 %v1147, %v1240
  %v1288 = vadd.f32 %v1148, %v1245
  %v1289 = vadd.f32 %v1149, %v1245
  %v1290 = vadd.f32 %v1150, %v1250
  %v1291 = vadd.f32 %v1151, %v1250
  %v1292 = vld [vmem:[%s3] sm:$0xff]
  %v1293 = vld [vmem:[%s3 + $0x8] sm:$0xff]
  %v1294 = vld [vmem:[%s3 + $0x10] sm:$0xff]
  %v1295 = vld [vmem:[%s3 + $0x18] sm:$0xff]
  %v1296 = vld [vmem:[%s3 + $0x20] sm:$0xff]
  %v1297 = vld [vmem:[%s3 + $0x28] sm:$0xff]
  %v1298 = vld [vmem:[%s3 + $0x30] sm:$0xff]
  %v1299 = vld [vmem:[%s3 + $0x38] sm:$0xff]
  %v1300 = vld [vmem:[%s3 + $0x40] sm:$0xff]
  %v1301 = vld [vmem:[%s3 + $0x48] sm:$0xff]
  %v1302 = vld [vmem:[%s3 + $0x50] sm:$0xff]
  %v1303 = vld [vmem:[%s3 + $0x58] sm:$0xff]
  %v1304 = vld [vmem:[%s3 + $0x60] sm:$0xff]
  %v1305 = vld [vmem:[%s3 + $0x68] sm:$0xff]
  %v1306 = vld [vmem:[%s3 + $0x70] sm:$0xff]
  %v1307 = vld [vmem:[%s3 + $0x78] sm:$0xff]
  %v1308 = vld [vmem:[%s3 + $0x80] sm:$0xff]
  %v1309 = vld [vmem:[%s3 + $0x88] sm:$0xff]
  %v1310 = vld [vmem:[%s3 + $0x90] sm:$0xff]
  %v1311 = vld [vmem:[%s3 + $0x98] sm:$0xff]
  %v1312 = vld [vmem:[%s3 + $0xa0] sm:$0xff]
  %v1313 = vld [vmem:[%s3 + $0xa8] sm:$0xff]
  %v1314 = vld [vmem:[%s3 + $0xb0] sm:$0xff]
  %v1315 = vld [vmem:[%s3 + $0xb8] sm:$0xff]
  %v1316 = vld [vmem:[%s3 + $0xc0] sm:$0xff]
  %v1317 = vld [vmem:[%s3 + $0xc8] sm:$0xff]
  %v1318 = vld [vmem:[%s3 + $0xd0] sm:$0xff]
  %v1319 = vld [vmem:[%s3 + $0xd8] sm:$0xff]
  %v1320 = vld [vmem:[%s3 + $0xe0] sm:$0xff]
  %v1321 = vld [vmem:[%s3 + $0xe8] sm:$0xff]
  %v1322 = vld [vmem:[%s3 + $0xf0] sm:$0xff]
  %v1323 = vld [vmem:[%s3 + $0xf8] sm:$0xff]
  %v1324 = vld [vmem:[%s3 + $0x100] sm:$0xff]
  %v1325 = vld [vmem:[%s3 + $0x108] sm:$0xff]
  %v1326 = vld [vmem:[%s3 + $0x110] sm:$0xff]
  %v1327 = vld [vmem:[%s3 + $0x118] sm:$0xff]
  %v1328 = vld [vmem:[%s3 + $0x120] sm:$0xff]
  %v1329 = vld [vmem:[%s3 + $0x128] sm:$0xff]
  %v1330 = vld [vmem:[%s3 + $0x130] sm:$0xff]
  %v1331 = vld [vmem:[%s3 + $0x138] sm:$0xff]
  %v1332 = vld [vmem:[%s3 + $0x140] sm:$0xff]
  %v1333 = vld [vmem:[%s3 + $0x148] sm:$0xff]
  %v1334 = vld [vmem:[%s3 + $0x150] sm:$0xff]
  %v1335 = vld [vmem:[%s3 + $0x158] sm:$0xff]
  %v1336 = vld [vmem:[%s3 + $0x160] sm:$0xff]
  %v1337 = vld [vmem:[%s3 + $0x168] sm:$0xff]
  %v1338 = vld [vmem:[%s3 + $0x170] sm:$0xff]
  %v1339 = vld [vmem:[%s3 + $0x178] sm:$0xff]
  %v1340 = vld [vmem:[%s3 + $0x180] sm:$0xff]
  %v1341 = vld [vmem:[%s3 + $0x188] sm:$0xff]
  %v1342 = vld [vmem:[%s3 + $0x190] sm:$0xff]
  %v1343 = vld [vmem:[%s3 + $0x198] sm:$0xff]
  %v1344 = vld [vmem:[%s3 + $0x1a0] sm:$0xff]
  %v1345 = vld [vmem:[%s3 + $0x1a8] sm:$0xff]
  %v1346 = vld [vmem:[%s3 + $0x1b0] sm:$0xff]
  %v1347 = vld [vmem:[%s3 + $0x1b8] sm:$0xff]
  %v1348 = vld [vmem:[%s3 + $0x1c0] sm:$0xff]
  %v1349 = vld [vmem:[%s3 + $0x1c8] sm:$0xff]
  %v1350 = vld [vmem:[%s3 + $0x1d0] sm:$0xff]
  %v1351 = vld [vmem:[%s3 + $0x1d8] sm:$0xff]
  %v1352 = vld [vmem:[%s3 + $0x1e0] sm:$0xff]
  %v1353 = vld [vmem:[%s3 + $0x1e8] sm:$0xff]
  %v1354 = vld [vmem:[%s3 + $0x1f0] sm:$0xff]
  %v1355 = vld [vmem:[%s3 + $0x1f8] sm:$0xff]
  %v1356 = vld [vmem:[%s3 + $0x200] sm:$0xff]
  %v1357 = vld [vmem:[%s3 + $0x208] sm:$0xff]
  %v1358 = vld [vmem:[%s3 + $0x210] sm:$0xff]
  %v1359 = vld [vmem:[%s3 + $0x218] sm:$0xff]
  %v1360 = vld [vmem:[%s3 + $0x220] sm:$0xff]
  %v1361 = vld [vmem:[%s3 + $0x228] sm:$0xff]
  %v1362 = vld [vmem:[%s3 + $0x230] sm:$0xff]
  %v1363 = vld [vmem:[%s3 + $0x238] sm:$0xff]
  %v1364 = vld [vmem:[%s3 + $0x240] sm:$0xff]
  %v1365 = vld [vmem:[%s3 + $0x248] sm:$0xff]
  %v1366 = vld [vmem:[%s3 + $0x250] sm:$0xff]
  %v1367 = vld [vmem:[%s3 + $0x258] sm:$0xff]
  %v1368 = vld [vmem:[%s3 + $0x260] sm:$0xff]
  %v1369 = vld [vmem:[%s3 + $0x268] sm:$0xff]
  %v1370 = vld [vmem:[%s3 + $0x270] sm:$0xff]
  %v1371 = vld [vmem:[%s3 + $0x278] sm:$0xff]
  %v1372 = vld [vmem:[%s3 + $0x280] sm:$0xff]
  %v1373 = vld [vmem:[%s3 + $0x288] sm:$0xff]
  %v1374 = vld [vmem:[%s3 + $0x290] sm:$0xff]
  %v1375 = vld [vmem:[%s3 + $0x298] sm:$0xff]
  %v1376 = vld [vmem:[%s3 + $0x2a0] sm:$0xff]
  %v1377 = vld [vmem:[%s3 + $0x2a8] sm:$0xff]
  %v1378 = vld [vmem:[%s3 + $0x2b0] sm:$0xff]
  %v1379 = vld [vmem:[%s3 + $0x2b8] sm:$0xff]
  %v1380 = vld [vmem:[%s3 + $0x2c0] sm:$0xff]
  %v1381 = vld [vmem:[%s3 + $0x2c8] sm:$0xff]
  %v1382 = vld [vmem:[%s3 + $0x2d0] sm:$0xff]
  %v1383 = vld [vmem:[%s3 + $0x2d8] sm:$0xff]
  %v1384 = vld [vmem:[%s3 + $0x2e0] sm:$0xff]
  %v1385 = vld [vmem:[%s3 + $0x2e8] sm:$0xff]
  %v1386 = vld [vmem:[%s3 + $0x2f0] sm:$0xff]
  %v1387 = vld [vmem:[%s3 + $0x2f8] sm:$0xff]
  %v1388 = vld [vmem:[%s3 + $0x300] sm:$0xff]
  %v1389 = vld [vmem:[%s3 + $0x308] sm:$0xff]
  %v1390 = vld [vmem:[%s3 + $0x310] sm:$0xff]
  %v1391 = vld [vmem:[%s3 + $0x318] sm:$0xff]
  %v1392 = vld [vmem:[%s3 + $0x320] sm:$0xff]
  %v1393 = vld [vmem:[%s3 + $0x328] sm:$0xff]
  %v1394 = vld [vmem:[%s3 + $0x330] sm:$0xff]
  %v1395 = vld [vmem:[%s3 + $0x338] sm:$0xff]
  %v1396 = vld [vmem:[%s3 + $0x340] sm:$0xff]
  %v1397 = vld [vmem:[%s3 + $0x348] sm:$0xff]
  %v1398 = vld [vmem:[%s3 + $0x350] sm:$0xff]
  %v1399 = vld [vmem:[%s3 + $0x358] sm:$0xff]
  %v1400 = vld [vmem:[%s3 + $0x360] sm:$0xff]
  %v1401 = vld [vmem:[%s3 + $0x368] sm:$0xff]
  %v1402 = vld [vmem:[%s3 + $0x370] sm:$0xff]
  %v1403 = vld [vmem:[%s3 + $0x378] sm:$0xff]
  %v1404 = vld [vmem:[%s3 + $0x380] sm:$0xff]
  %v1405 = vld [vmem:[%s3 + $0x388] sm:$0xff]
  %v1406 = vld [vmem:[%s3 + $0x390] sm:$0xff]
  %v1407 = vld [vmem:[%s3 + $0x398] sm:$0xff]
  %v1408 = vld [vmem:[%s3 + $0x3a0] sm:$0xff]
  %v1409 = vld [vmem:[%s3 + $0x3a8] sm:$0xff]
  %v1410 = vld [vmem:[%s3 + $0x3b0] sm:$0xff]
  %v1411 = vld [vmem:[%s3 + $0x3b8] sm:$0xff]
  %v1412 = vld [vmem:[%s3 + $0x3c0] sm:$0xff]
  %v1413 = vld [vmem:[%s3 + $0x3c8] sm:$0xff]
  %v1414 = vld [vmem:[%s3 + $0x3d0] sm:$0xff]
  %v1415 = vld [vmem:[%s3 + $0x3d8] sm:$0xff]
  %v1416 = vld [vmem:[%s3 + $0x3e0] sm:$0xff]
  %v1417 = vld [vmem:[%s3 + $0x3e8] sm:$0xff]
  %v1418 = vld [vmem:[%s3 + $0x3f0] sm:$0xff]
  %v1419 = vld [vmem:[%s3 + $0x3f8] sm:$0xff]
  %v1420 = vld [vmem:[%s3 + $0x400] sm:$0xff]
  %v1421 = vld [vmem:[%s3 + $0x408] sm:$0xff]
  %v1422 = vld [vmem:[%s3 + $0x410] sm:$0xff]
  %v1423 = vld [vmem:[%s3 + $0x418] sm:$0xff]
  %v1424 = vld [vmem:[%s3 + $0x420] sm:$0xff]
  %v1425 = vld [vmem:[%s3 + $0x428] sm:$0xff]
  %v1426 = vld [vmem:[%s3 + $0x430] sm:$0xff]
  %v1427 = vld [vmem:[%s3 + $0x438] sm:$0xff]
  %v1428 = vld [vmem:[%s3 + $0x440] sm:$0xff]
  %v1429 = vld [vmem:[%s3 + $0x448] sm:$0xff]
  %v1430 = vld [vmem:[%s3 + $0x450] sm:$0xff]
  %v1431 = vld [vmem:[%s3 + $0x458] sm:$0xff]
  %v1432 = vld [vmem:[%s3 + $0x460] sm:$0xff]
  %v1433 = vld [vmem:[%s3 + $0x468] sm:$0xff]
  %v1434 = vld [vmem:[%s3 + $0x470] sm:$0xff]
  %v1435 = vld [vmem:[%s3 + $0x478] sm:$0xff]
  %v1436 = vld [vmem:[%s3 + $0x480] sm:$0xff]
  %v1437 = vld [vmem:[%s3 + $0x488] sm:$0xff]
  %v1438 = vld [vmem:[%s3 + $0x490] sm:$0xff]
  %v1439 = vld [vmem:[%s3 + $0x498] sm:$0xff]
  %v1440 = vld [vmem:[%s3 + $0x4a0] sm:$0xff]
  %v1441 = vld [vmem:[%s3 + $0x4a8] sm:$0xff]
  %v1442 = vld [vmem:[%s3 + $0x4b0] sm:$0xff]
  %v1443 = vld [vmem:[%s3 + $0x4b8] sm:$0xff]
  %v1444 = vld [vmem:[%s3 + $0x4c0] sm:$0xff]
  %v1445 = vld [vmem:[%s3 + $0x4c8] sm:$0xff]
  %v1446 = vld [vmem:[%s3 + $0x4d0] sm:$0xff]
  %v1447 = vld [vmem:[%s3 + $0x4d8] sm:$0xff]
  %v1448 = vld [vmem:[%s3 + $0x4e0] sm:$0xff]
  %v1449 = vld [vmem:[%s3 + $0x4e8] sm:$0xff]
  %v1450 = vld [vmem:[%s3 + $0x4f0] sm:$0xff]
  %v1451 = vld [vmem:[%s3 + $0x4f8] sm:$0xff]
  %v1452 = vld [vmem:[%s3 + $0x500] sm:$0xff]
  %v1453 = vld [vmem:[%s3 + $0x508] sm:$0xff]
  %v1454 = vld [vmem:[%s3 + $0x510] sm:$0xff]
  %v1455 = vld [vmem:[%s3 + $0x518] sm:$0xff]
  %v1456 = vld [vmem:[%s3 + $0x520] sm:$0xff]
  %v1457 = vld [vmem:[%s3 + $0x528] sm:$0xff]
  %v1458 = vld [vmem:[%s3 + $0x530] sm:$0xff]
  %v1459 = vld [vmem:[%s3 + $0x538] sm:$0xff]
  %v1460 = vld [vmem:[%s3 + $0x540] sm:$0xff]
  %v1461 = vld [vmem:[%s3 + $0x548] sm:$0xff]
  %v1462 = vld [vmem:[%s3 + $0x550] sm:$0xff]
  %v1463 = vld [vmem:[%s3 + $0x558] sm:$0xff]
  %v1464 = vld [vmem:[%s3 + $0x560] sm:$0xff]
  %v1465 = vld [vmem:[%s3 + $0x568] sm:$0xff]
  %v1466 = vld [vmem:[%s3 + $0x570] sm:$0xff]
  %v1467 = vld [vmem:[%s3 + $0x578] sm:$0xff]
  %v1468 = vld [vmem:[%s3 + $0x580] sm:$0xff]
  %v1469 = vld [vmem:[%s3 + $0x588] sm:$0xff]
  %v1470 = vld [vmem:[%s3 + $0x590] sm:$0xff]
  %v1471 = vld [vmem:[%s3 + $0x598] sm:$0xff]
  %v1472 = vld [vmem:[%s3 + $0x5a0] sm:$0xff]
  %v1473 = vld [vmem:[%s3 + $0x5a8] sm:$0xff]
  %v1474 = vld [vmem:[%s3 + $0x5b0] sm:$0xff]
  %v1475 = vld [vmem:[%s3 + $0x5b8] sm:$0xff]
  %v1476 = vld [vmem:[%s3 + $0x5c0] sm:$0xff]
  %v1477 = vld [vmem:[%s3 + $0x5c8] sm:$0xff]
  %v1478 = vld [vmem:[%s3 + $0x5d0] sm:$0xff]
  %v1479 = vld [vmem:[%s3 + $0x5d8] sm:$0xff]
  %v1480 = vld [vmem:[%s3 + $0x5e0] sm:$0xff]
  %v1481 = vld [vmem:[%s3 + $0x5e8] sm:$0xff]
  %v1482 = vld [vmem:[%s3 + $0x5f0] sm:$0xff]
  %v1483 = vld [vmem:[%s3 + $0x5f8] sm:$0xff]
  %v1484 = vld [vmem:[%s3 + $0x600] sm:$0xff]
  %v1485 = vld [vmem:[%s3 + $0x608] sm:$0xff]
  %v1486 = vld [vmem:[%s3 + $0x610] sm:$0xff]
  %v1487 = vld [vmem:[%s3 + $0x618] sm:$0xff]
  %v1488 = vld [vmem:[%s3 + $0x620] sm:$0xff]
  %v1489 = vld [vmem:[%s3 + $0x628] sm:$0xff]
  %v1490 = vld [vmem:[%s3 + $0x630] sm:$0xff]
  %v1491 = vld [vmem:[%s3 + $0x638] sm:$0xff]
  %v1492 = vld [vmem:[%s3 + $0x640] sm:$0xff]
  %v1493 = vld [vmem:[%s3 + $0x648] sm:$0xff]
  %v1494 = vld [vmem:[%s3 + $0x650] sm:$0xff]
  %v1495 = vld [vmem:[%s3 + $0x658] sm:$0xff]
  %v1496 = vld [vmem:[%s3 + $0x660] sm:$0xff]
  %v1497 = vld [vmem:[%s3 + $0x668] sm:$0xff]
  %v1498 = vld [vmem:[%s3 + $0x670] sm:$0xff]
  %v1499 = vld [vmem:[%s3 + $0x678] sm:$0xff]
  %v1500 = vld [vmem:[%s3 + $0x680] sm:$0xff]
  %v1501 = vld [vmem:[%s3 + $0x688] sm:$0xff]
  %v1502 = vld [vmem:[%s3 + $0x690] sm:$0xff]
  %v1503 = vld [vmem:[%s3 + $0x698] sm:$0xff]
  %v1504 = vld [vmem:[%s3 + $0x6a0] sm:$0xff]
  %v1505 = vld [vmem:[%s3 + $0x6a8] sm:$0xff]
  %v1506 = vld [vmem:[%s3 + $0x6b0] sm:$0xff]
  %v1507 = vld [vmem:[%s3 + $0x6b8] sm:$0xff]
  %v1508 = vld [vmem:[%s3 + $0x6c0] sm:$0xff]
  %v1509 = vld [vmem:[%s3 + $0x6c8] sm:$0xff]
  %v1510 = vld [vmem:[%s3 + $0x6d0] sm:$0xff]
  %v1511 = vld [vmem:[%s3 + $0x6d8] sm:$0xff]
  %v1512 = vld [vmem:[%s3 + $0x6e0] sm:$0xff]
  %v1513 = vld [vmem:[%s3 + $0x6e8] sm:$0xff]
  %v1514 = vld [vmem:[%s3 + $0x6f0] sm:$0xff]
  %v1515 = vld [vmem:[%s3 + $0x6f8] sm:$0xff]
  %v1516 = vld [vmem:[%s3 + $0x700] sm:$0xff]
  %v1517 = vld [vmem:[%s3 + $0x708] sm:$0xff]
  %v1518 = vld [vmem:[%s3 + $0x710] sm:$0xff]
  %v1519 = vld [vmem:[%s3 + $0x718] sm:$0xff]
  %v1520 = vld [vmem:[%s3 + $0x720] sm:$0xff]
  %v1521 = vld [vmem:[%s3 + $0x728] sm:$0xff]
  %v1522 = vld [vmem:[%s3 + $0x730] sm:$0xff]
  %v1523 = vld [vmem:[%s3 + $0x738] sm:$0xff]
  %v1524 = vld [vmem:[%s3 + $0x740] sm:$0xff]
  %v1525 = vld [vmem:[%s3 + $0x748] sm:$0xff]
  %v1526 = vld [vmem:[%s3 + $0x750] sm:$0xff]
  %v1527 = vld [vmem:[%s3 + $0x758] sm:$0xff]
  %v1528 = vld [vmem:[%s3 + $0x760] sm:$0xff]
  %v1529 = vld [vmem:[%s3 + $0x768] sm:$0xff]
  %v1530 = vld [vmem:[%s3 + $0x770] sm:$0xff]
  %v1531 = vld [vmem:[%s3 + $0x778] sm:$0xff]
  %vm1532 = vcmask 261120
  %v1534 = vsel %vm1532, %v1293, 0
  %v1537 = vsel %vm1532, %v1295, 0
  %v1540 = vsel %vm1532, %v1297, 0
  %v1543 = vsel %vm1532, %v1299, 0
  %v1546 = vsel %vm1532, %v1301, 0
  %v1549 = vsel %vm1532, %v1303, 0
  %v1552 = vsel %vm1532, %v1305, 0
  %v1555 = vsel %vm1532, %v1307, 0
  %v1558 = vsel %vm1532, %v1309, 0
  %v1561 = vsel %vm1532, %v1311, 0
  %v1564 = vsel %vm1532, %v1313, 0
  %v1567 = vsel %vm1532, %v1315, 0
  %v1570 = vsel %vm1532, %v1317, 0
  %v1573 = vsel %vm1532, %v1319, 0
  %v1576 = vsel %vm1532, %v1321, 0
  %v1579 = vsel %vm1532, %v1323, 0
  %v1582 = vsel %vm1532, %v1325, 0
  %v1585 = vsel %vm1532, %v1327, 0
  %v1588 = vsel %vm1532, %v1329, 0
  %v1591 = vsel %vm1532, %v1331, 0
  %v1594 = vsel %vm1532, %v1333, 0
  %v1597 = vsel %vm1532, %v1335, 0
  %v1600 = vsel %vm1532, %v1337, 0
  %v1603 = vsel %vm1532, %v1339, 0
  %v1606 = vsel %vm1532, %v1341, 0
  %v1609 = vsel %vm1532, %v1343, 0
  %v1612 = vsel %vm1532, %v1345, 0
  %v1615 = vsel %vm1532, %v1347, 0
  %v1618 = vsel %vm1532, %v1349, 0
  %v1621 = vsel %vm1532, %v1351, 0
  %v1624 = vsel %vm1532, %v1353, 0
  %v1627 = vsel %vm1532, %v1355, 0
  %v1630 = vsel %vm1532, %v1357, 0
  %v1633 = vsel %vm1532, %v1359, 0
  %v1636 = vsel %vm1532, %v1361, 0
  %v1639 = vsel %vm1532, %v1363, 0
  %v1642 = vsel %vm1532, %v1365, 0
  %v1645 = vsel %vm1532, %v1367, 0
  %v1648 = vsel %vm1532, %v1369, 0
  %v1651 = vsel %vm1532, %v1371, 0
  %v1654 = vsel %vm1532, %v1373, 0
  %v1657 = vsel %vm1532, %v1375, 0
  %v1660 = vsel %vm1532, %v1377, 0
  %v1663 = vsel %vm1532, %v1379, 0
  %v1666 = vsel %vm1532, %v1381, 0
  %v1669 = vsel %vm1532, %v1383, 0
  %v1672 = vsel %vm1532, %v1385, 0
  %v1675 = vsel %vm1532, %v1387, 0
  %v1678 = vsel %vm1532, %v1389, 0
  %v1681 = vsel %vm1532, %v1391, 0
  %v1684 = vsel %vm1532, %v1393, 0
  %v1687 = vsel %vm1532, %v1395, 0
  %v1690 = vsel %vm1532, %v1397, 0
  %v1693 = vsel %vm1532, %v1399, 0
  %v1696 = vsel %vm1532, %v1401, 0
  %v1699 = vsel %vm1532, %v1403, 0
  %v1702 = vsel %vm1532, %v1405, 0
  %v1705 = vsel %vm1532, %v1407, 0
  %v1708 = vsel %vm1532, %v1409, 0
  %v1711 = vsel %vm1532, %v1411, 0
  %v1714 = vsel %vm1532, %v1413, 0
  %v1717 = vsel %vm1532, %v1415, 0
  %v1720 = vsel %vm1532, %v1417, 0
  %v1723 = vsel %vm1532, %v1419, 0
  %v1726 = vsel %vm1532, %v1421, 0
  %v1729 = vsel %vm1532, %v1423, 0
  %v1732 = vsel %vm1532, %v1425, 0
  %v1735 = vsel %vm1532, %v1427, 0
  %v1738 = vsel %vm1532, %v1429, 0
  %v1741 = vsel %vm1532, %v1431, 0
  %v1744 = vsel %vm1532, %v1433, 0
  %v1747 = vsel %vm1532, %v1435, 0
  %v1750 = vsel %vm1532, %v1437, 0
  %v1753 = vsel %vm1532, %v1439, 0
  %v1756 = vsel %vm1532, %v1441, 0
  %v1759 = vsel %vm1532, %v1443, 0
  %v1762 = vsel %vm1532, %v1445, 0
  %v1765 = vsel %vm1532, %v1447, 0
  %v1768 = vsel %vm1532, %v1449, 0
  %v1771 = vsel %vm1532, %v1451, 0
  %v1774 = vsel %vm1532, %v1453, 0
  %v1777 = vsel %vm1532, %v1455, 0
  %v1780 = vsel %vm1532, %v1457, 0
  %v1783 = vsel %vm1532, %v1459, 0
  %v1786 = vsel %vm1532, %v1461, 0
  %v1789 = vsel %vm1532, %v1463, 0
  %v1792 = vsel %vm1532, %v1465, 0
  %v1795 = vsel %vm1532, %v1467, 0
  %v1798 = vsel %vm1532, %v1469, 0
  %v1801 = vsel %vm1532, %v1471, 0
  %v1804 = vsel %vm1532, %v1473, 0
  %v1807 = vsel %vm1532, %v1475, 0
  %v1810 = vsel %vm1532, %v1477, 0
  %v1813 = vsel %vm1532, %v1479, 0
  %v1816 = vsel %vm1532, %v1481, 0
  %v1819 = vsel %vm1532, %v1483, 0
  %v1822 = vsel %vm1532, %v1485, 0
  %v1825 = vsel %vm1532, %v1487, 0
  %v1828 = vsel %vm1532, %v1489, 0
  %v1831 = vsel %vm1532, %v1491, 0
  %v1834 = vsel %vm1532, %v1493, 0
  %v1837 = vsel %vm1532, %v1495, 0
  %v1840 = vsel %vm1532, %v1497, 0
  %v1843 = vsel %vm1532, %v1499, 0
  %v1846 = vsel %vm1532, %v1501, 0
  %v1849 = vsel %vm1532, %v1503, 0
  %v1852 = vsel %vm1532, %v1505, 0
  %v1855 = vsel %vm1532, %v1507, 0
  %v1858 = vsel %vm1532, %v1509, 0
  %v1861 = vsel %vm1532, %v1511, 0
  %v1864 = vsel %vm1532, %v1513, 0
  %v1867 = vsel %vm1532, %v1515, 0
  %v1870 = vsel %vm1532, %v1517, 0
  %v1873 = vsel %vm1532, %v1519, 0
  %v1876 = vsel %vm1532, %v1521, 0
  %v1879 = vsel %vm1532, %v1523, 0
  %v1882 = vsel %vm1532, %v1525, 0
  %v1885 = vsel %vm1532, %v1527, 0
  %v1888 = vsel %vm1532, %v1529, 0
  %v1891 = vsel %vm1532, %v1531, 0
  %1893 = vmatprep.subr.mxu0 %v1283
  %1894 = vmatpush1.msra.mxu0 %v1282
  %1895 = vmatprep.subr.mxu0 %v1281
  %1896 = vmatpush1.msra.mxu0 %v1280
  %1897 = vmatprep.subr.mxu0 %v1279
  %1898 = vmatpush1.msra.mxu0 %v1278
  %1899 = vmatprep.subr.mxu0 %v1277
  %1900 = vmatpush1.msra.mxu0 %v1276
  %1901 = vmatprep.subr.mxu0 %v1275
  %1902 = vmatpush1.msra.mxu0 %v1274
  %1903 = vmatprep.subr.mxu0 %v1273
  %1904 = vmatpush1.msra.mxu0 %v1272
  %1905 = vmatprep.subr.mxu0 %v1271
  %1906 = vmatpush1.msra.mxu0 %v1270
  %1907 = vmatprep.subr.mxu0 %v1269
  %1908 = vmatpush1.msra.mxu0 %v1268
  %1909 = vmatprep.subr.mxu0 %v1267
  %1910 = vmatpush1.msra.mxu0 %v1266
  %1911 = vmatprep.subr.mxu0 %v1265
  %1912 = vmatpush1.msra.mxu0 %v1264
  %1913 = vmatprep.subr.mxu0 %v1263
  %1914 = vmatpush1.msra.mxu0 %v1262
  %1915 = vmatprep.subr.mxu0 %v1261
  %1916 = vmatpush1.msra.mxu0 %v1260
  %1917 = vmatprep.subr.mxu0 %v1259
  %1918 = vmatpush1.msra.mxu0 %v1258
  %1919 = vmatprep.subr.mxu0 %v1257
  %1920 = vmatpush1.msra.mxu0 %v1256
  %1921 = vmatprep.subr.mxu0 %v1255
  %1922 = vmatpush1.msra.mxu0 %v1254
  %1923 = vmatprep.subr.mxu0 %v1253
  %1924 = vmatpush1.msra.mxu0 %v1252
  %1925 = vmatprep.subr.mxu0 0.0
  %1926 = vmatpush2.msra.mxu0 0.0
  %1927 = vmatprep.subr.mxu0 0.0
  %1928 = vmatpush2.msra.mxu0 0.0
  %1929 = vmatprep.subr.mxu0 0.0
  %1930 = vmatpush2.msra.mxu0 0.0
  %1931 = vmatprep.subr.mxu0 0.0
  %1932 = vmatpush2.msra.mxu0 0.0
  %1933 = vmatprep.subr.mxu0 0.0
  %1934 = vmatpush2.msra.mxu0 0.0
  %1935 = vmatprep.subr.mxu0 0.0
  %1936 = vmatpush2.msra.mxu0 0.0
  %1937 = vmatprep.subr.mxu0 0.0
  %1938 = vmatpush2.msra.mxu0 0.0
  %1939 = vmatprep.subr.mxu0 0.0
  %1940 = vmatpush2.msra.mxu0 0.0
  %1941 = vmatprep.subr.mxu0 0.0
  %1942 = vmatpush2.msra.mxu0 0.0
  %1943 = vmatprep.subr.mxu0 0.0
  %1944 = vmatpush2.msra.mxu0 0.0
  %1945 = vmatprep.subr.mxu0 0.0
  %1946 = vmatpush2.msra.mxu0 0.0
  %1947 = vmatprep.subr.mxu0 0.0
  %1948 = vmatpush2.msra.mxu0 0.0
  %1949 = vmatprep.subr.mxu0 %v1291
  %1950 = vmatpush2.msra.mxu0 %v1290
  %1951 = vmatprep.subr.mxu0 %v1289
  %1952 = vmatpush2.msra.mxu0 %v1288
  %1953 = vmatprep.subr.mxu0 %v1287
  %1954 = vmatpush2.msra.mxu0 %v1286
  %1955 = vmatprep.subr.mxu0 %v1285
  %1956 = vmatpush2.msra.mxu0 %v1284
  %1957 = vmatprep.mubr.f32.mxu0 %v1534
  %1958 = vmatmul.mubr.f32.gmra.mxu0 %v1292
  %v1959 = vpop.f32.mrf.mxu0
  %v1960 = vadd.f32 0.0, %v1959
  %v1961 = vpop.f32.mrf.mxu0
  %v1962 = vadd.f32 0.0, %v1961
  %1963 = vmatprep.mubr.f32.mxu0 %v1537
  %1964 = vmatmul.mubr.f32.gmra.mxu0 %v1294
  %v1965 = vpop.f32.mrf.mxu0
  %v1966 = vadd.f32 0.0, %v1965
  %v1967 = vpop.f32.mrf.mxu0
  %v1968 = vadd.f32 0.0, %v1967
  %1969 = vmatprep.mubr.f32.mxu0 %v1540
  %1970 = vmatmul.mubr.f32.gmra.mxu0 %v1296
  %v1971 = vpop.f32.mrf.mxu0
  %v1972 = vadd.f32 0.0, %v1971
  %v1973 = vpop.f32.mrf.mxu0
  %v1974 = vadd.f32 0.0, %v1973
  %1975 = vmatprep.mubr.f32.mxu0 %v1543
  %1976 = vmatmul.mubr.f32.gmra.mxu0 %v1298
  %v1977 = vpop.f32.mrf.mxu0
  %v1978 = vadd.f32 0.0, %v1977
  %v1979 = vpop.f32.mrf.mxu0
  %v1980 = vadd.f32 0.0, %v1979
  %1981 = vmatprep.mubr.f32.mxu0 %v1546
  %1982 = vmatmul.mubr.f32.gmra.mxu0 %v1300
  %v1983 = vpop.f32.mrf.mxu0
  %v1984 = vadd.f32 0.0, %v1983
  %v1985 = vpop.f32.mrf.mxu0
  %v1986 = vadd.f32 0.0, %v1985
  %1987 = vmatprep.mubr.f32.mxu0 %v1549
  %1988 = vmatmul.mubr.f32.gmra.mxu0 %v1302
  %v1989 = vpop.f32.mrf.mxu0
  %v1990 = vadd.f32 0.0, %v1989
  %v1991 = vpop.f32.mrf.mxu0
  %v1992 = vadd.f32 0.0, %v1991
  %1993 = vmatprep.mubr.f32.mxu0 %v1552
  %1994 = vmatmul.mubr.f32.gmra.mxu0 %v1304
  %v1995 = vpop.f32.mrf.mxu0
  %v1996 = vadd.f32 0.0, %v1995
  %v1997 = vpop.f32.mrf.mxu0
  %v1998 = vadd.f32 0.0, %v1997
  %1999 = vmatprep.mubr.f32.mxu0 %v1555
  %2000 = vmatmul.mubr.f32.gmra.mxu0 %v1306
  %v2001 = vpop.f32.mrf.mxu0
  %v2002 = vadd.f32 0.0, %v2001
  %v2003 = vpop.f32.mrf.mxu0
  %v2004 = vadd.f32 0.0, %v2003
  %2005 = vmatprep.mubr.f32.mxu0 %v1558
  %2006 = vmatmul.mubr.f32.gmra.mxu0 %v1308
  %v2007 = vpop.f32.mrf.mxu0
  %v2008 = vadd.f32 0.0, %v2007
  %v2009 = vpop.f32.mrf.mxu0
  %v2010 = vadd.f32 0.0, %v2009
  %2011 = vmatprep.mubr.f32.mxu0 %v1561
  %2012 = vmatmul.mubr.f32.gmra.mxu0 %v1310
  %v2013 = vpop.f32.mrf.mxu0
  %v2014 = vadd.f32 0.0, %v2013
  %v2015 = vpop.f32.mrf.mxu0
  %v2016 = vadd.f32 0.0, %v2015
  %2017 = vmatprep.mubr.f32.mxu0 %v1564
  %2018 = vmatmul.mubr.f32.gmra.mxu0 %v1312
  %v2019 = vpop.f32.mrf.mxu0
  %v2020 = vadd.f32 0.0, %v2019
  %v2021 = vpop.f32.mrf.mxu0
  %v2022 = vadd.f32 0.0, %v2021
  %2023 = vmatprep.mubr.f32.mxu0 %v1567
  %2024 = vmatmul.mubr.f32.gmra.mxu0 %v1314
  %v2025 = vpop.f32.mrf.mxu0
  %v2026 = vadd.f32 0.0, %v2025
  %v2027 = vpop.f32.mrf.mxu0
  %v2028 = vadd.f32 0.0, %v2027
  %2029 = vmatprep.mubr.f32.mxu0 %v1570
  %2030 = vmatmul.mubr.f32.gmra.mxu0 %v1316
  %v2031 = vpop.f32.mrf.mxu0
  %v2032 = vadd.f32 0.0, %v2031
  %v2033 = vpop.f32.mrf.mxu0
  %v2034 = vadd.f32 0.0, %v2033
  %2035 = vmatprep.mubr.f32.mxu0 %v1573
  %2036 = vmatmul.mubr.f32.gmra.mxu0 %v1318
  %v2037 = vpop.f32.mrf.mxu0
  %v2038 = vadd.f32 0.0, %v2037
  %v2039 = vpop.f32.mrf.mxu0
  %v2040 = vadd.f32 0.0, %v2039
  %2041 = vmatprep.mubr.f32.mxu0 %v1576
  %2042 = vmatmul.mubr.f32.gmra.mxu0 %v1320
  %v2043 = vpop.f32.mrf.mxu0
  %v2044 = vadd.f32 0.0, %v2043
  %v2045 = vpop.f32.mrf.mxu0
  %v2046 = vadd.f32 0.0, %v2045
  %2047 = vmatprep.mubr.f32.mxu0 %v1579
  %2048 = vmatmul.mubr.f32.gmra.mxu0 %v1322
  %v2049 = vpop.f32.mrf.mxu0
  %v2050 = vadd.f32 0.0, %v2049
  %v2051 = vpop.f32.mrf.mxu0
  %v2052 = vadd.f32 0.0, %v2051
  %2053 = vmatprep.mubr.f32.mxu0 %v1582
  %2054 = vmatmul.mubr.f32.gmra.mxu0 %v1324
  %v2055 = vpop.f32.mrf.mxu0
  %v2056 = vadd.f32 0.0, %v2055
  %v2057 = vpop.f32.mrf.mxu0
  %v2058 = vadd.f32 0.0, %v2057
  %2059 = vmatprep.mubr.f32.mxu0 %v1585
  %2060 = vmatmul.mubr.f32.gmra.mxu0 %v1326
  %v2061 = vpop.f32.mrf.mxu0
  %v2062 = vadd.f32 0.0, %v2061
  %v2063 = vpop.f32.mrf.mxu0
  %v2064 = vadd.f32 0.0, %v2063
  %2065 = vmatprep.mubr.f32.mxu0 %v1588
  %2066 = vmatmul.mubr.f32.gmra.mxu0 %v1328
  %v2067 = vpop.f32.mrf.mxu0
  %v2068 = vadd.f32 0.0, %v2067
  %v2069 = vpop.f32.mrf.mxu0
  %v2070 = vadd.f32 0.0, %v2069
  %2071 = vmatprep.mubr.f32.mxu0 %v1591
  %2072 = vmatmul.mubr.f32.gmra.mxu0 %v1330
  %v2073 = vpop.f32.mrf.mxu0
  %v2074 = vadd.f32 0.0, %v2073
  %v2075 = vpop.f32.mrf.mxu0
  %v2076 = vadd.f32 0.0, %v2075
  %2077 = vmatprep.mubr.f32.mxu0 %v1594
  %2078 = vmatmul.mubr.f32.gmra.mxu0 %v1332
  %v2079 = vpop.f32.mrf.mxu0
  %v2080 = vadd.f32 0.0, %v2079
  %v2081 = vpop.f32.mrf.mxu0
  %v2082 = vadd.f32 0.0, %v2081
  %2083 = vmatprep.mubr.f32.mxu0 %v1597
  %2084 = vmatmul.mubr.f32.gmra.mxu0 %v1334
  %v2085 = vpop.f32.mrf.mxu0
  %v2086 = vadd.f32 0.0, %v2085
  %v2087 = vpop.f32.mrf.mxu0
  %v2088 = vadd.f32 0.0, %v2087
  %2089 = vmatprep.mubr.f32.mxu0 %v1600
  %2090 = vmatmul.mubr.f32.gmra.mxu0 %v1336
  %v2091 = vpop.f32.mrf.mxu0
  %v2092 = vadd.f32 0.0, %v2091
  %v2093 = vpop.f32.mrf.mxu0
  %v2094 = vadd.f32 0.0, %v2093
  %2095 = vmatprep.mubr.f32.mxu0 %v1603
  %2096 = vmatmul.mubr.f32.gmra.mxu0 %v1338
  %v2097 = vpop.f32.mrf.mxu0
  %v2098 = vadd.f32 0.0, %v2097
  %v2099 = vpop.f32.mrf.mxu0
  %v2100 = vadd.f32 0.0, %v2099
  %2101 = vmatprep.mubr.f32.mxu0 %v1606
  %2102 = vmatmul.mubr.f32.gmra.mxu0 %v1340
  %v2103 = vpop.f32.mrf.mxu0
  %v2104 = vadd.f32 0.0, %v2103
  %v2105 = vpop.f32.mrf.mxu0
  %v2106 = vadd.f32 0.0, %v2105
  %2107 = vmatprep.mubr.f32.mxu0 %v1609
  %2108 = vmatmul.mubr.f32.gmra.mxu0 %v1342
  %v2109 = vpop.f32.mrf.mxu0
  %v2110 = vadd.f32 0.0, %v2109
  %v2111 = vpop.f32.mrf.mxu0
  %v2112 = vadd.f32 0.0, %v2111
  %2113 = vmatprep.mubr.f32.mxu0 %v1612
  %2114 = vmatmul.mubr.f32.gmra.mxu0 %v1344
  %v2115 = vpop.f32.mrf.mxu0
  %v2116 = vadd.f32 0.0, %v2115
  %v2117 = vpop.f32.mrf.mxu0
  %v2118 = vadd.f32 0.0, %v2117
  %2119 = vmatprep.mubr.f32.mxu0 %v1615
  %2120 = vmatmul.mubr.f32.gmra.mxu0 %v1346
  %v2121 = vpop.f32.mrf.mxu0
  %v2122 = vadd.f32 0.0, %v2121
  %v2123 = vpop.f32.mrf.mxu0
  %v2124 = vadd.f32 0.0, %v2123
  %2125 = vmatprep.mubr.f32.mxu0 %v1618
  %2126 = vmatmul.mubr.f32.gmra.mxu0 %v1348
  %v2127 = vpop.f32.mrf.mxu0
  %v2128 = vadd.f32 0.0, %v2127
  %v2129 = vpop.f32.mrf.mxu0
  %v2130 = vadd.f32 0.0, %v2129
  %2131 = vmatprep.mubr.f32.mxu0 %v1621
  %2132 = vmatmul.mubr.f32.gmra.mxu0 %v1350
  %v2133 = vpop.f32.mrf.mxu0
  %v2134 = vadd.f32 0.0, %v2133
  %v2135 = vpop.f32.mrf.mxu0
  %v2136 = vadd.f32 0.0, %v2135
  %2137 = vmatprep.mubr.f32.mxu0 %v1624
  %2138 = vmatmul.mubr.f32.gmra.mxu0 %v1352
  %v2139 = vpop.f32.mrf.mxu0
  %v2140 = vadd.f32 0.0, %v2139
  %v2141 = vpop.f32.mrf.mxu0
  %v2142 = vadd.f32 0.0, %v2141
  %2143 = vmatprep.mubr.f32.mxu0 %v1627
  %2144 = vmatmul.mubr.f32.gmra.mxu0 %v1354
  %v2145 = vpop.f32.mrf.mxu0
  %v2146 = vadd.f32 0.0, %v2145
  %v2147 = vpop.f32.mrf.mxu0
  %v2148 = vadd.f32 0.0, %v2147
  %2149 = vmatprep.mubr.f32.mxu0 %v1630
  %2150 = vmatmul.mubr.f32.gmra.mxu0 %v1356
  %v2151 = vpop.f32.mrf.mxu0
  %v2152 = vadd.f32 0.0, %v2151
  %v2153 = vpop.f32.mrf.mxu0
  %v2154 = vadd.f32 0.0, %v2153
  %2155 = vmatprep.mubr.f32.mxu0 %v1633
  %2156 = vmatmul.mubr.f32.gmra.mxu0 %v1358
  %v2157 = vpop.f32.mrf.mxu0
  %v2158 = vadd.f32 0.0, %v2157
  %v2159 = vpop.f32.mrf.mxu0
  %v2160 = vadd.f32 0.0, %v2159
  %2161 = vmatprep.mubr.f32.mxu0 %v1636
  %2162 = vmatmul.mubr.f32.gmra.mxu0 %v1360
  %v2163 = vpop.f32.mrf.mxu0
  %v2164 = vadd.f32 0.0, %v2163
  %v2165 = vpop.f32.mrf.mxu0
  %v2166 = vadd.f32 0.0, %v2165
  %2167 = vmatprep.mubr.f32.mxu0 %v1639
  %2168 = vmatmul.mubr.f32.gmra.mxu0 %v1362
  %v2169 = vpop.f32.mrf.mxu0
  %v2170 = vadd.f32 0.0, %v2169
  %v2171 = vpop.f32.mrf.mxu0
  %v2172 = vadd.f32 0.0, %v2171
  %2173 = vmatprep.mubr.f32.mxu0 %v1642
  %2174 = vmatmul.mubr.f32.gmra.mxu0 %v1364
  %v2175 = vpop.f32.mrf.mxu0
  %v2176 = vadd.f32 0.0, %v2175
  %v2177 = vpop.f32.mrf.mxu0
  %v2178 = vadd.f32 0.0, %v2177
  %2179 = vmatprep.mubr.f32.mxu0 %v1645
  %2180 = vmatmul.mubr.f32.gmra.mxu0 %v1366
  %v2181 = vpop.f32.mrf.mxu0
  %v2182 = vadd.f32 0.0, %v2181
  %v2183 = vpop.f32.mrf.mxu0
  %v2184 = vadd.f32 0.0, %v2183
  %2185 = vmatprep.mubr.f32.mxu0 %v1648
  %2186 = vmatmul.mubr.f32.gmra.mxu0 %v1368
  %v2187 = vpop.f32.mrf.mxu0
  %v2188 = vadd.f32 0.0, %v2187
  %v2189 = vpop.f32.mrf.mxu0
  %v2190 = vadd.f32 0.0, %v2189
  %2191 = vmatprep.mubr.f32.mxu0 %v1651
  %2192 = vmatmul.mubr.f32.gmra.mxu0 %v1370
  %v2193 = vpop.f32.mrf.mxu0
  %v2194 = vadd.f32 0.0, %v2193
  %v2195 = vpop.f32.mrf.mxu0
  %v2196 = vadd.f32 0.0, %v2195
  %2197 = vmatprep.mubr.f32.mxu0 %v1654
  %2198 = vmatmul.mubr.f32.gmra.mxu0 %v1372
  %v2199 = vpop.f32.mrf.mxu0
  %v2200 = vadd.f32 0.0, %v2199
  %v2201 = vpop.f32.mrf.mxu0
  %v2202 = vadd.f32 0.0, %v2201
  %2203 = vmatprep.mubr.f32.mxu0 %v1657
  %2204 = vmatmul.mubr.f32.gmra.mxu0 %v1374
  %v2205 = vpop.f32.mrf.mxu0
  %v2206 = vadd.f32 0.0, %v2205
  %v2207 = vpop.f32.mrf.mxu0
  %v2208 = vadd.f32 0.0, %v2207
  %2209 = vmatprep.mubr.f32.mxu0 %v1660
  %2210 = vmatmul.mubr.f32.gmra.mxu0 %v1376
  %v2211 = vpop.f32.mrf.mxu0
  %v2212 = vadd.f32 0.0, %v2211
  %v2213 = vpop.f32.mrf.mxu0
  %v2214 = vadd.f32 0.0, %v2213
  %2215 = vmatprep.mubr.f32.mxu0 %v1663
  %2216 = vmatmul.mubr.f32.gmra.mxu0 %v1378
  %v2217 = vpop.f32.mrf.mxu0
  %v2218 = vadd.f32 0.0, %v2217
  %v2219 = vpop.f32.mrf.mxu0
  %v2220 = vadd.f32 0.0, %v2219
  %2221 = vmatprep.mubr.f32.mxu0 %v1666
  %2222 = vmatmul.mubr.f32.gmra.mxu0 %v1380
  %v2223 = vpop.f32.mrf.mxu0
  %v2224 = vadd.f32 0.0, %v2223
  %v2225 = vpop.f32.mrf.mxu0
  %v2226 = vadd.f32 0.0, %v2225
  %2227 = vmatprep.mubr.f32.mxu0 %v1669
  %2228 = vmatmul.mubr.f32.gmra.mxu0 %v1382
  %v2229 = vpop.f32.mrf.mxu0
  %v2230 = vadd.f32 0.0, %v2229
  %v2231 = vpop.f32.mrf.mxu0
  %v2232 = vadd.f32 0.0, %v2231
  %2233 = vmatprep.mubr.f32.mxu0 %v1672
  %2234 = vmatmul.mubr.f32.gmra.mxu0 %v1384
  %v2235 = vpop.f32.mrf.mxu0
  %v2236 = vadd.f32 0.0, %v2235
  %v2237 = vpop.f32.mrf.mxu0
  %v2238 = vadd.f32 0.0, %v2237
  %2239 = vmatprep.mubr.f32.mxu0 %v1675
  %2240 = vmatmul.mubr.f32.gmra.mxu0 %v1386
  %v2241 = vpop.f32.mrf.mxu0
  %v2242 = vadd.f32 0.0, %v2241
  %v2243 = vpop.f32.mrf.mxu0
  %v2244 = vadd.f32 0.0, %v2243
  %2245 = vmatprep.mubr.f32.mxu0 %v1678
  %2246 = vmatmul.mubr.f32.gmra.mxu0 %v1388
  %v2247 = vpop.f32.mrf.mxu0
  %v2248 = vadd.f32 0.0, %v2247
  %v2249 = vpop.f32.mrf.mxu0
  %v2250 = vadd.f32 0.0, %v2249
  %2251 = vmatprep.mubr.f32.mxu0 %v1681
  %2252 = vmatmul.mubr.f32.gmra.mxu0 %v1390
  %v2253 = vpop.f32.mrf.mxu0
  %v2254 = vadd.f32 0.0, %v2253
  %v2255 = vpop.f32.mrf.mxu0
  %v2256 = vadd.f32 0.0, %v2255
  %2257 = vmatprep.mubr.f32.mxu0 %v1684
  %2258 = vmatmul.mubr.f32.gmra.mxu0 %v1392
  %v2259 = vpop.f32.mrf.mxu0
  %v2260 = vadd.f32 0.0, %v2259
  %v2261 = vpop.f32.mrf.mxu0
  %v2262 = vadd.f32 0.0, %v2261
  %2263 = vmatprep.mubr.f32.mxu0 %v1687
  %2264 = vmatmul.mubr.f32.gmra.mxu0 %v1394
  %v2265 = vpop.f32.mrf.mxu0
  %v2266 = vadd.f32 0.0, %v2265
  %v2267 = vpop.f32.mrf.mxu0
  %v2268 = vadd.f32 0.0, %v2267
  %2269 = vmatprep.mubr.f32.mxu0 %v1690
  %2270 = vmatmul.mubr.f32.gmra.mxu0 %v1396
  %v2271 = vpop.f32.mrf.mxu0
  %v2272 = vadd.f32 0.0, %v2271
  %v2273 = vpop.f32.mrf.mxu0
  %v2274 = vadd.f32 0.0, %v2273
  %2275 = vmatprep.mubr.f32.mxu0 %v1693
  %2276 = vmatmul.mubr.f32.gmra.mxu0 %v1398
  %v2277 = vpop.f32.mrf.mxu0
  %v2278 = vadd.f32 0.0, %v2277
  %v2279 = vpop.f32.mrf.mxu0
  %v2280 = vadd.f32 0.0, %v2279
  %2281 = vmatprep.mubr.f32.mxu0 %v1696
  %2282 = vmatmul.mubr.f32.gmra.mxu0 %v1400
  %v2283 = vpop.f32.mrf.mxu0
  %v2284 = vadd.f32 0.0, %v2283
  %v2285 = vpop.f32.mrf.mxu0
  %v2286 = vadd.f32 0.0, %v2285
  %2287 = vmatprep.mubr.f32.mxu0 %v1699
  %2288 = vmatmul.mubr.f32.gmra.mxu0 %v1402
  %v2289 = vpop.f32.mrf.mxu0
  %v2290 = vadd.f32 0.0, %v2289
  %v2291 = vpop.f32.mrf.mxu0
  %v2292 = vadd.f32 0.0, %v2291
  %2293 = vmatprep.mubr.f32.mxu0 %v1702
  %2294 = vmatmul.mubr.f32.gmra.mxu0 %v1404
  %v2295 = vpop.f32.mrf.mxu0
  %v2296 = vadd.f32 0.0, %v2295
  %v2297 = vpop.f32.mrf.mxu0
  %v2298 = vadd.f32 0.0, %v2297
  %2299 = vmatprep.mubr.f32.mxu0 %v1705
  %2300 = vmatmul.mubr.f32.gmra.mxu0 %v1406
  %v2301 = vpop.f32.mrf.mxu0
  %v2302 = vadd.f32 0.0, %v2301
  %v2303 = vpop.f32.mrf.mxu0
  %v2304 = vadd.f32 0.0, %v2303
  %2305 = vmatprep.mubr.f32.mxu0 %v1708
  %2306 = vmatmul.mubr.f32.gmra.mxu0 %v1408
  %v2307 = vpop.f32.mrf.mxu0
  %v2308 = vadd.f32 0.0, %v2307
  %v2309 = vpop.f32.mrf.mxu0
  %v2310 = vadd.f32 0.0, %v2309
  %2311 = vmatprep.mubr.f32.mxu0 %v1711
  %2312 = vmatmul.mubr.f32.gmra.mxu0 %v1410
  %v2313 = vpop.f32.mrf.mxu0
  %v2314 = vadd.f32 0.0, %v2313
  %v2315 = vpop.f32.mrf.mxu0
  %v2316 = vadd.f32 0.0, %v2315
  %2317 = vmatprep.mubr.f32.mxu0 %v1714
  %2318 = vmatmul.mubr.f32.gmra.mxu0 %v1412
  %v2319 = vpop.f32.mrf.mxu0
  %v2320 = vadd.f32 0.0, %v2319
  %v2321 = vpop.f32.mrf.mxu0
  %v2322 = vadd.f32 0.0, %v2321
  %2323 = vmatprep.mubr.f32.mxu0 %v1717
  %2324 = vmatmul.mubr.f32.gmra.mxu0 %v1414
  %v2325 = vpop.f32.mrf.mxu0
  %v2326 = vadd.f32 0.0, %v2325
  %v2327 = vpop.f32.mrf.mxu0
  %v2328 = vadd.f32 0.0, %v2327
  %2329 = vmatprep.mubr.f32.mxu0 %v1720
  %2330 = vmatmul.mubr.f32.gmra.mxu0 %v1416
  %v2331 = vpop.f32.mrf.mxu0
  %v2332 = vadd.f32 0.0, %v2331
  %v2333 = vpop.f32.mrf.mxu0
  %v2334 = vadd.f32 0.0, %v2333
  %2335 = vmatprep.mubr.f32.mxu0 %v1723
  %2336 = vmatmul.mubr.f32.gmra.mxu0 %v1418
  %v2337 = vpop.f32.mrf.mxu0
  %v2338 = vadd.f32 0.0, %v2337
  %v2339 = vpop.f32.mrf.mxu0
  %v2340 = vadd.f32 0.0, %v2339
  %2341 = vmatprep.mubr.f32.mxu0 %v1726
  %2342 = vmatmul.mubr.f32.gmra.mxu0 %v1420
  %v2343 = vpop.f32.mrf.mxu0
  %v2344 = vadd.f32 0.0, %v2343
  %v2345 = vpop.f32.mrf.mxu0
  %v2346 = vadd.f32 0.0, %v2345
  %2347 = vmatprep.mubr.f32.mxu0 %v1729
  %2348 = vmatmul.mubr.f32.gmra.mxu0 %v1422
  %v2349 = vpop.f32.mrf.mxu0
  %v2350 = vadd.f32 0.0, %v2349
  %v2351 = vpop.f32.mrf.mxu0
  %v2352 = vadd.f32 0.0, %v2351
  %2353 = vmatprep.mubr.f32.mxu0 %v1732
  %2354 = vmatmul.mubr.f32.gmra.mxu0 %v1424
  %v2355 = vpop.f32.mrf.mxu0
  %v2356 = vadd.f32 0.0, %v2355
  %v2357 = vpop.f32.mrf.mxu0
  %v2358 = vadd.f32 0.0, %v2357
  %2359 = vmatprep.mubr.f32.mxu0 %v1735
  %2360 = vmatmul.mubr.f32.gmra.mxu0 %v1426
  %v2361 = vpop.f32.mrf.mxu0
  %v2362 = vadd.f32 0.0, %v2361
  %v2363 = vpop.f32.mrf.mxu0
  %v2364 = vadd.f32 0.0, %v2363
  %2365 = vmatprep.mubr.f32.mxu0 %v1738
  %2366 = vmatmul.mubr.f32.gmra.mxu0 %v1428
  %v2367 = vpop.f32.mrf.mxu0
  %v2368 = vadd.f32 0.0, %v2367
  %v2369 = vpop.f32.mrf.mxu0
  %v2370 = vadd.f32 0.0, %v2369
  %2371 = vmatprep.mubr.f32.mxu0 %v1741
  %2372 = vmatmul.mubr.f32.gmra.mxu0 %v1430
  %v2373 = vpop.f32.mrf.mxu0
  %v2374 = vadd.f32 0.0, %v2373
  %v2375 = vpop.f32.mrf.mxu0
  %v2376 = vadd.f32 0.0, %v2375
  %2377 = vmatprep.mubr.f32.mxu0 %v1744
  %2378 = vmatmul.mubr.f32.gmra.mxu0 %v1432
  %v2379 = vpop.f32.mrf.mxu0
  %v2380 = vadd.f32 0.0, %v2379
  %v2381 = vpop.f32.mrf.mxu0
  %v2382 = vadd.f32 0.0, %v2381
  %2383 = vmatprep.mubr.f32.mxu0 %v1747
  %2384 = vmatmul.mubr.f32.gmra.mxu0 %v1434
  %v2385 = vpop.f32.mrf.mxu0
  %v2386 = vadd.f32 0.0, %v2385
  %v2387 = vpop.f32.mrf.mxu0
  %v2388 = vadd.f32 0.0, %v2387
  %2389 = vmatprep.mubr.f32.mxu0 %v1750
  %2390 = vmatmul.mubr.f32.gmra.mxu0 %v1436
  %v2391 = vpop.f32.mrf.mxu0
  %v2392 = vadd.f32 0.0, %v2391
  %v2393 = vpop.f32.mrf.mxu0
  %v2394 = vadd.f32 0.0, %v2393
  %2395 = vmatprep.mubr.f32.mxu0 %v1753
  %2396 = vmatmul.mubr.f32.gmra.mxu0 %v1438
  %v2397 = vpop.f32.mrf.mxu0
  %v2398 = vadd.f32 0.0, %v2397
  %v2399 = vpop.f32.mrf.mxu0
  %v2400 = vadd.f32 0.0, %v2399
  %2401 = vmatprep.mubr.f32.mxu0 %v1756
  %2402 = vmatmul.mubr.f32.gmra.mxu0 %v1440
  %v2403 = vpop.f32.mrf.mxu0
  %v2404 = vadd.f32 0.0, %v2403
  %v2405 = vpop.f32.mrf.mxu0
  %v2406 = vadd.f32 0.0, %v2405
  %2407 = vmatprep.mubr.f32.mxu0 %v1759
  %2408 = vmatmul.mubr.f32.gmra.mxu0 %v1442
  %v2409 = vpop.f32.mrf.mxu0
  %v2410 = vadd.f32 0.0, %v2409
  %v2411 = vpop.f32.mrf.mxu0
  %v2412 = vadd.f32 0.0, %v2411
  %2413 = vmatprep.mubr.f32.mxu0 %v1762
  %2414 = vmatmul.mubr.f32.gmra.mxu0 %v1444
  %v2415 = vpop.f32.mrf.mxu0
  %v2416 = vadd.f32 0.0, %v2415
  %v2417 = vpop.f32.mrf.mxu0
  %v2418 = vadd.f32 0.0, %v2417
  %2419 = vmatprep.mubr.f32.mxu0 %v1765
  %2420 = vmatmul.mubr.f32.gmra.mxu0 %v1446
  %v2421 = vpop.f32.mrf.mxu0
  %v2422 = vadd.f32 0.0, %v2421
  %v2423 = vpop.f32.mrf.mxu0
  %v2424 = vadd.f32 0.0, %v2423
  %2425 = vmatprep.mubr.f32.mxu0 %v1768
  %2426 = vmatmul.mubr.f32.gmra.mxu0 %v1448
  %v2427 = vpop.f32.mrf.mxu0
  %v2428 = vadd.f32 0.0, %v2427
  %v2429 = vpop.f32.mrf.mxu0
  %v2430 = vadd.f32 0.0, %v2429
  %2431 = vmatprep.mubr.f32.mxu0 %v1771
  %2432 = vmatmul.mubr.f32.gmra.mxu0 %v1450
  %v2433 = vpop.f32.mrf.mxu0
  %v2434 = vadd.f32 0.0, %v2433
  %v2435 = vpop.f32.mrf.mxu0
  %v2436 = vadd.f32 0.0, %v2435
  %2437 = vmatprep.mubr.f32.mxu0 %v1774
  %2438 = vmatmul.mubr.f32.gmra.mxu0 %v1452
  %v2439 = vpop.f32.mrf.mxu0
  %v2440 = vadd.f32 0.0, %v2439
  %v2441 = vpop.f32.mrf.mxu0
  %v2442 = vadd.f32 0.0, %v2441
  %2443 = vmatprep.mubr.f32.mxu0 %v1777
  %2444 = vmatmul.mubr.f32.gmra.mxu0 %v1454
  %v2445 = vpop.f32.mrf.mxu0
  %v2446 = vadd.f32 0.0, %v2445
  %v2447 = vpop.f32.mrf.mxu0
  %v2448 = vadd.f32 0.0, %v2447
  %2449 = vmatprep.mubr.f32.mxu0 %v1780
  %2450 = vmatmul.mubr.f32.gmra.mxu0 %v1456
  %v2451 = vpop.f32.mrf.mxu0
  %v2452 = vadd.f32 0.0, %v2451
  %v2453 = vpop.f32.mrf.mxu0
  %v2454 = vadd.f32 0.0, %v2453
  %2455 = vmatprep.mubr.f32.mxu0 %v1783
  %2456 = vmatmul.mubr.f32.gmra.mxu0 %v1458
  %v2457 = vpop.f32.mrf.mxu0
  %v2458 = vadd.f32 0.0, %v2457
  %v2459 = vpop.f32.mrf.mxu0
  %v2460 = vadd.f32 0.0, %v2459
  %2461 = vmatprep.mubr.f32.mxu0 %v1786
  %2462 = vmatmul.mubr.f32.gmra.mxu0 %v1460
  %v2463 = vpop.f32.mrf.mxu0
  %v2464 = vadd.f32 0.0, %v2463
  %v2465 = vpop.f32.mrf.mxu0
  %v2466 = vadd.f32 0.0, %v2465
  %2467 = vmatprep.mubr.f32.mxu0 %v1789
  %2468 = vmatmul.mubr.f32.gmra.mxu0 %v1462
  %v2469 = vpop.f32.mrf.mxu0
  %v2470 = vadd.f32 0.0, %v2469
  %v2471 = vpop.f32.mrf.mxu0
  %v2472 = vadd.f32 0.0, %v2471
  %2473 = vmatprep.mubr.f32.mxu0 %v1792
  %2474 = vmatmul.mubr.f32.gmra.mxu0 %v1464
  %v2475 = vpop.f32.mrf.mxu0
  %v2476 = vadd.f32 0.0, %v2475
  %v2477 = vpop.f32.mrf.mxu0
  %v2478 = vadd.f32 0.0, %v2477
  %2479 = vmatprep.mubr.f32.mxu0 %v1795
  %2480 = vmatmul.mubr.f32.gmra.mxu0 %v1466
  %v2481 = vpop.f32.mrf.mxu0
  %v2482 = vadd.f32 0.0, %v2481
  %v2483 = vpop.f32.mrf.mxu0
  %v2484 = vadd.f32 0.0, %v2483
  %2485 = vmatprep.mubr.f32.mxu0 %v1798
  %2486 = vmatmul.mubr.f32.gmra.mxu0 %v1468
  %v2487 = vpop.f32.mrf.mxu0
  %v2488 = vadd.f32 0.0, %v2487
  %v2489 = vpop.f32.mrf.mxu0
  %v2490 = vadd.f32 0.0, %v2489
  %2491 = vmatprep.mubr.f32.mxu0 %v1801
  %2492 = vmatmul.mubr.f32.gmra.mxu0 %v1470
  %v2493 = vpop.f32.mrf.mxu0
  %v2494 = vadd.f32 0.0, %v2493
  %v2495 = vpop.f32.mrf.mxu0
  %v2496 = vadd.f32 0.0, %v2495
  %2497 = vmatprep.mubr.f32.mxu0 %v1804
  %2498 = vmatmul.mubr.f32.gmra.mxu0 %v1472
  %v2499 = vpop.f32.mrf.mxu0
  %v2500 = vadd.f32 0.0, %v2499
  %v2501 = vpop.f32.mrf.mxu0
  %v2502 = vadd.f32 0.0, %v2501
  %2503 = vmatprep.mubr.f32.mxu0 %v1807
  %2504 = vmatmul.mubr.f32.gmra.mxu0 %v1474
  %v2505 = vpop.f32.mrf.mxu0
  %v2506 = vadd.f32 0.0, %v2505
  %v2507 = vpop.f32.mrf.mxu0
  %v2508 = vadd.f32 0.0, %v2507
  %2509 = vmatprep.mubr.f32.mxu0 %v1810
  %2510 = vmatmul.mubr.f32.gmra.mxu0 %v1476
  %v2511 = vpop.f32.mrf.mxu0
  %v2512 = vadd.f32 0.0, %v2511
  %v2513 = vpop.f32.mrf.mxu0
  %v2514 = vadd.f32 0.0, %v2513
  %2515 = vmatprep.mubr.f32.mxu0 %v1813
  %2516 = vmatmul.mubr.f32.gmra.mxu0 %v1478
  %v2517 = vpop.f32.mrf.mxu0
  %v2518 = vadd.f32 0.0, %v2517
  %v2519 = vpop.f32.mrf.mxu0
  %v2520 = vadd.f32 0.0, %v2519
  %2521 = vmatprep.mubr.f32.mxu0 %v1816
  %2522 = vmatmul.mubr.f32.gmra.mxu0 %v1480
  %v2523 = vpop.f32.mrf.mxu0
  %v2524 = vadd.f32 0.0, %v2523
  %v2525 = vpop.f32.mrf.mxu0
  %v2526 = vadd.f32 0.0, %v2525
  %2527 = vmatprep.mubr.f32.mxu0 %v1819
  %2528 = vmatmul.mubr.f32.gmra.mxu0 %v1482
  %v2529 = vpop.f32.mrf.mxu0
  %v2530 = vadd.f32 0.0, %v2529
  %v2531 = vpop.f32.mrf.mxu0
  %v2532 = vadd.f32 0.0, %v2531
  %2533 = vmatprep.mubr.f32.mxu0 %v1822
  %2534 = vmatmul.mubr.f32.gmra.mxu0 %v1484
  %v2535 = vpop.f32.mrf.mxu0
  %v2536 = vadd.f32 0.0, %v2535
  %v2537 = vpop.f32.mrf.mxu0
  %v2538 = vadd.f32 0.0, %v2537
  %2539 = vmatprep.mubr.f32.mxu0 %v1825
  %2540 = vmatmul.mubr.f32.gmra.mxu0 %v1486
  %v2541 = vpop.f32.mrf.mxu0
  %v2542 = vadd.f32 0.0, %v2541
  %v2543 = vpop.f32.mrf.mxu0
  %v2544 = vadd.f32 0.0, %v2543
  %2545 = vmatprep.mubr.f32.mxu0 %v1828
  %2546 = vmatmul.mubr.f32.gmra.mxu0 %v1488
  %v2547 = vpop.f32.mrf.mxu0
  %v2548 = vadd.f32 0.0, %v2547
  %v2549 = vpop.f32.mrf.mxu0
  %v2550 = vadd.f32 0.0, %v2549
  %2551 = vmatprep.mubr.f32.mxu0 %v1831
  %2552 = vmatmul.mubr.f32.gmra.mxu0 %v1490
  %v2553 = vpop.f32.mrf.mxu0
  %v2554 = vadd.f32 0.0, %v2553
  %v2555 = vpop.f32.mrf.mxu0
  %v2556 = vadd.f32 0.0, %v2555
  %2557 = vmatprep.mubr.f32.mxu0 %v1834
  %2558 = vmatmul.mubr.f32.gmra.mxu0 %v1492
  %v2559 = vpop.f32.mrf.mxu0
  %v2560 = vadd.f32 0.0, %v2559
  %v2561 = vpop.f32.mrf.mxu0
  %v2562 = vadd.f32 0.0, %v2561
  %2563 = vmatprep.mubr.f32.mxu0 %v1837
  %2564 = vmatmul.mubr.f32.gmra.mxu0 %v1494
  %v2565 = vpop.f32.mrf.mxu0
  %v2566 = vadd.f32 0.0, %v2565
  %v2567 = vpop.f32.mrf.mxu0
  %v2568 = vadd.f32 0.0, %v2567
  %2569 = vmatprep.mubr.f32.mxu0 %v1840
  %2570 = vmatmul.mubr.f32.gmra.mxu0 %v1496
  %v2571 = vpop.f32.mrf.mxu0
  %v2572 = vadd.f32 0.0, %v2571
  %v2573 = vpop.f32.mrf.mxu0
  %v2574 = vadd.f32 0.0, %v2573
  %2575 = vmatprep.mubr.f32.mxu0 %v1843
  %2576 = vmatmul.mubr.f32.gmra.mxu0 %v1498
  %v2577 = vpop.f32.mrf.mxu0
  %v2578 = vadd.f32 0.0, %v2577
  %v2579 = vpop.f32.mrf.mxu0
  %v2580 = vadd.f32 0.0, %v2579
  %2581 = vmatprep.mubr.f32.mxu0 %v1846
  %2582 = vmatmul.mubr.f32.gmra.mxu0 %v1500
  %v2583 = vpop.f32.mrf.mxu0
  %v2584 = vadd.f32 0.0, %v2583
  %v2585 = vpop.f32.mrf.mxu0
  %v2586 = vadd.f32 0.0, %v2585
  %2587 = vmatprep.mubr.f32.mxu0 %v1849
  %2588 = vmatmul.mubr.f32.gmra.mxu0 %v1502
  %v2589 = vpop.f32.mrf.mxu0
  %v2590 = vadd.f32 0.0, %v2589
  %v2591 = vpop.f32.mrf.mxu0
  %v2592 = vadd.f32 0.0, %v2591
  %2593 = vmatprep.mubr.f32.mxu0 %v1852
  %2594 = vmatmul.mubr.f32.gmra.mxu0 %v1504
  %v2595 = vpop.f32.mrf.mxu0
  %v2596 = vadd.f32 0.0, %v2595
  %v2597 = vpop.f32.mrf.mxu0
  %v2598 = vadd.f32 0.0, %v2597
  %2599 = vmatprep.mubr.f32.mxu0 %v1855
  %2600 = vmatmul.mubr.f32.gmra.mxu0 %v1506
  %v2601 = vpop.f32.mrf.mxu0
  %v2602 = vadd.f32 0.0, %v2601
  %v2603 = vpop.f32.mrf.mxu0
  %v2604 = vadd.f32 0.0, %v2603
  %2605 = vmatprep.mubr.f32.mxu0 %v1858
  %2606 = vmatmul.mubr.f32.gmra.mxu0 %v1508
  %v2607 = vpop.f32.mrf.mxu0
  %v2608 = vadd.f32 0.0, %v2607
  %v2609 = vpop.f32.mrf.mxu0
  %v2610 = vadd.f32 0.0, %v2609
  %2611 = vmatprep.mubr.f32.mxu0 %v1861
  %2612 = vmatmul.mubr.f32.gmra.mxu0 %v1510
  %v2613 = vpop.f32.mrf.mxu0
  %v2614 = vadd.f32 0.0, %v2613
  %v2615 = vpop.f32.mrf.mxu0
  %v2616 = vadd.f32 0.0, %v2615
  %2617 = vmatprep.mubr.f32.mxu0 %v1864
  %2618 = vmatmul.mubr.f32.gmra.mxu0 %v1512
  %v2619 = vpop.f32.mrf.mxu0
  %v2620 = vadd.f32 0.0, %v2619
  %v2621 = vpop.f32.mrf.mxu0
  %v2622 = vadd.f32 0.0, %v2621
  %2623 = vmatprep.mubr.f32.mxu0 %v1867
  %2624 = vmatmul.mubr.f32.gmra.mxu0 %v1514
  %v2625 = vpop.f32.mrf.mxu0
  %v2626 = vadd.f32 0.0, %v2625
  %v2627 = vpop.f32.mrf.mxu0
  %v2628 = vadd.f32 0.0, %v2627
  %2629 = vmatprep.mubr.f32.mxu0 %v1870
  %2630 = vmatmul.mubr.f32.gmra.mxu0 %v1516
  %v2631 = vpop.f32.mrf.mxu0
  %v2632 = vadd.f32 0.0, %v2631
  %v2633 = vpop.f32.mrf.mxu0
  %v2634 = vadd.f32 0.0, %v2633
  %2635 = vmatprep.mubr.f32.mxu0 %v1873
  %2636 = vmatmul.mubr.f32.gmra.mxu0 %v1518
  %v2637 = vpop.f32.mrf.mxu0
  %v2638 = vadd.f32 0.0, %v2637
  %v2639 = vpop.f32.mrf.mxu0
  %v2640 = vadd.f32 0.0, %v2639
  %2641 = vmatprep.mubr.f32.mxu0 %v1876
  %2642 = vmatmul.mubr.f32.gmra.mxu0 %v1520
  %v2643 = vpop.f32.mrf.mxu0
  %v2644 = vadd.f32 0.0, %v2643
  %v2645 = vpop.f32.mrf.mxu0
  %v2646 = vadd.f32 0.0, %v2645
  %2647 = vmatprep.mubr.f32.mxu0 %v1879
  %2648 = vmatmul.mubr.f32.gmra.mxu0 %v1522
  %v2649 = vpop.f32.mrf.mxu0
  %v2650 = vadd.f32 0.0, %v2649
  %v2651 = vpop.f32.mrf.mxu0
  %v2652 = vadd.f32 0.0, %v2651
  %2653 = vmatprep.mubr.f32.mxu0 %v1882
  %2654 = vmatmul.mubr.f32.gmra.mxu0 %v1524
  %v2655 = vpop.f32.mrf.mxu0
  %v2656 = vadd.f32 0.0, %v2655
  %v2657 = vpop.f32.mrf.mxu0
  %v2658 = vadd.f32 0.0, %v2657
  %2659 = vmatprep.mubr.f32.mxu0 %v1885
  %2660 = vmatmul.mubr.f32.gmra.mxu0 %v1526
  %v2661 = vpop.f32.mrf.mxu0
  %v2662 = vadd.f32 0.0, %v2661
  %v2663 = vpop.f32.mrf.mxu0
  %v2664 = vadd.f32 0.0, %v2663
  %2665 = vmatprep.mubr.f32.mxu0 %v1888
  %2666 = vmatmul.mubr.f32.gmra.mxu0 %v1528
  %v2667 = vpop.f32.mrf.mxu0
  %v2668 = vadd.f32 0.0, %v2667
  %v2669 = vpop.f32.mrf.mxu0
  %v2670 = vadd.f32 0.0, %v2669
  %2671 = vmatprep.mubr.f32.mxu0 %v1891
  %2672 = vmatmul.mubr.f32.gmra.mxu0 %v1530
  %v2673 = vpop.f32.mrf.mxu0
  %v2674 = vadd.f32 0.0, %v2673
  %v2675 = vpop.f32.mrf.mxu0
  %v2676 = vadd.f32 0.0, %v2675
  %2677 = vdwg.mxu0
  %v2678 = vld [vmem:[%s4] sm:$0xff]
  %v2679 = vld [vmem:[%s4 + $0x8] sm:$0xff]
  %v2680 = vld [vmem:[%s4 + $0x10] sm:$0xff]
  %v2681 = vld [vmem:[%s4 + $0x18] sm:$0xff]
  %v2682 = vld [vmem:[%s4 + $0x20] sm:$0xff]
  %v2683 = vld [vmem:[%s4 + $0x28] sm:$0xff]
  %v2684 = vld [vmem:[%s4 + $0x30] sm:$0xff]
  %v2685 = vld [vmem:[%s4 + $0x38] sm:$0xff]
  %v2686 = vld [vmem:[%s4 + $0x40] sm:$0xff]
  %v2687 = vld [vmem:[%s4 + $0x48] sm:$0xff]
  %v2688 = vld [vmem:[%s4 + $0x50] sm:$0xff]
  %v2689 = vld [vmem:[%s4 + $0x58] sm:$0xff]
  %v2690 = vld [vmem:[%s4 + $0x60] sm:$0xff]
  %v2691 = vld [vmem:[%s4 + $0x68] sm:$0xff]
  %v2692 = vld [vmem:[%s4 + $0x70] sm:$0xff]
  %v2693 = vld [vmem:[%s4 + $0x78] sm:$0xff]
  %v2694 = vld [vmem:[%s4 + $0x80] sm:$0xff]
  %v2695 = vld [vmem:[%s4 + $0x88] sm:$0xff]
  %v2696 = vld [vmem:[%s4 + $0x90] sm:$0xff]
  %v2697 = vld [vmem:[%s4 + $0x98] sm:$0xff]
  %v2698 = vld [vmem:[%s4 + $0xa0] sm:$0xff]
  %v2699 = vld [vmem:[%s4 + $0xa8] sm:$0xff]
  %v2700 = vld [vmem:[%s4 + $0xb0] sm:$0xff]
  %v2701 = vld [vmem:[%s4 + $0xb8] sm:$0xff]
  %v2702 = vld [vmem:[%s4 + $0xc0] sm:$0xff]
  %v2703 = vld [vmem:[%s4 + $0xc8] sm:$0xff]
  %v2704 = vld [vmem:[%s4 + $0xd0] sm:$0xff]
  %v2705 = vld [vmem:[%s4 + $0xd8] sm:$0xff]
  %v2706 = vld [vmem:[%s4 + $0xe0] sm:$0xff]
  %v2707 = vld [vmem:[%s4 + $0xe8] sm:$0xff]
  %v2708 = vld [vmem:[%s4 + $0xf0] sm:$0xff]
  %v2709 = vld [vmem:[%s4 + $0xf8] sm:$0xff]
  %v2710 = vld [vmem:[%s4 + $0x100] sm:$0xff]
  %v2711 = vld [vmem:[%s4 + $0x108] sm:$0xff]
  %v2712 = vld [vmem:[%s4 + $0x110] sm:$0xff]
  %v2713 = vld [vmem:[%s4 + $0x118] sm:$0xff]
  %v2714 = vld [vmem:[%s4 + $0x120] sm:$0xff]
  %v2715 = vld [vmem:[%s4 + $0x128] sm:$0xff]
  %v2716 = vld [vmem:[%s4 + $0x130] sm:$0xff]
  %v2717 = vld [vmem:[%s4 + $0x138] sm:$0xff]
  %v2718 = vld [vmem:[%s4 + $0x140] sm:$0xff]
  %v2719 = vld [vmem:[%s4 + $0x148] sm:$0xff]
  %v2720 = vld [vmem:[%s4 + $0x150] sm:$0xff]
  %v2721 = vld [vmem:[%s4 + $0x158] sm:$0xff]
  %v2722 = vld [vmem:[%s4 + $0x160] sm:$0xff]
  %v2723 = vld [vmem:[%s4 + $0x168] sm:$0xff]
  %v2724 = vld [vmem:[%s4 + $0x170] sm:$0xff]
  %v2725 = vld [vmem:[%s4 + $0x178] sm:$0xff]
  %v2726 = vld [vmem:[%s4 + $0x180] sm:$0xff]
  %v2727 = vld [vmem:[%s4 + $0x188] sm:$0xff]
  %v2728 = vld [vmem:[%s4 + $0x190] sm:$0xff]
  %v2729 = vld [vmem:[%s4 + $0x198] sm:$0xff]
  %v2730 = vld [vmem:[%s4 + $0x1a0] sm:$0xff]
  %v2731 = vld [vmem:[%s4 + $0x1a8] sm:$0xff]
  %v2732 = vld [vmem:[%s4 + $0x1b0] sm:$0xff]
  %v2733 = vld [vmem:[%s4 + $0x1b8] sm:$0xff]
  %v2734 = vld [vmem:[%s4 + $0x1c0] sm:$0xff]
  %v2735 = vld [vmem:[%s4 + $0x1c8] sm:$0xff]
  %v2736 = vld [vmem:[%s4 + $0x1d0] sm:$0xff]
  %v2737 = vld [vmem:[%s4 + $0x1d8] sm:$0xff]
  %v2738 = vld [vmem:[%s4 + $0x1e0] sm:$0xff]
  %v2739 = vld [vmem:[%s4 + $0x1e8] sm:$0xff]
  %v2740 = vld [vmem:[%s4 + $0x1f0] sm:$0xff]
  %v2741 = vld [vmem:[%s4 + $0x1f8] sm:$0xff]
  %v2742 = vld [vmem:[%s4 + $0x200] sm:$0xff]
  %v2743 = vld [vmem:[%s4 + $0x208] sm:$0xff]
  %v2744 = vld [vmem:[%s4 + $0x210] sm:$0xff]
  %v2745 = vld [vmem:[%s4 + $0x218] sm:$0xff]
  %v2746 = vld [vmem:[%s4 + $0x220] sm:$0xff]
  %v2747 = vld [vmem:[%s4 + $0x228] sm:$0xff]
  %v2748 = vld [vmem:[%s4 + $0x230] sm:$0xff]
  %v2749 = vld [vmem:[%s4 + $0x238] sm:$0xff]
  %v2750 = vld [vmem:[%s4 + $0x240] sm:$0xff]
  %v2751 = vld [vmem:[%s4 + $0x248] sm:$0xff]
  %v2752 = vld [vmem:[%s4 + $0x250] sm:$0xff]
  %v2753 = vld [vmem:[%s4 + $0x258] sm:$0xff]
  %v2754 = vld [vmem:[%s4 + $0x260] sm:$0xff]
  %v2755 = vld [vmem:[%s4 + $0x268] sm:$0xff]
  %v2756 = vld [vmem:[%s4 + $0x270] sm:$0xff]
  %v2757 = vld [vmem:[%s4 + $0x278] sm:$0xff]
  %v2758 = vld [vmem:[%s4 + $0x280] sm:$0xff]
  %v2759 = vld [vmem:[%s4 + $0x288] sm:$0xff]
  %v2760 = vld [vmem:[%s4 + $0x290] sm:$0xff]
  %v2761 = vld [vmem:[%s4 + $0x298] sm:$0xff]
  %v2762 = vld [vmem:[%s4 + $0x2a0] sm:$0xff]
  %v2763 = vld [vmem:[%s4 + $0x2a8] sm:$0xff]
  %v2764 = vld [vmem:[%s4 + $0x2b0] sm:$0xff]
  %v2765 = vld [vmem:[%s4 + $0x2b8] sm:$0xff]
  %v2766 = vld [vmem:[%s4 + $0x2c0] sm:$0xff]
  %v2767 = vld [vmem:[%s4 + $0x2c8] sm:$0xff]
  %v2768 = vld [vmem:[%s4 + $0x2d0] sm:$0xff]
  %v2769 = vld [vmem:[%s4 + $0x2d8] sm:$0xff]
  %v2770 = vld [vmem:[%s4 + $0x2e0] sm:$0xff]
  %v2771 = vld [vmem:[%s4 + $0x2e8] sm:$0xff]
  %v2772 = vld [vmem:[%s4 + $0x2f0] sm:$0xff]
  %v2773 = vld [vmem:[%s4 + $0x2f8] sm:$0xff]
  %v2774 = vld [vmem:[%s4 + $0x300] sm:$0xff]
  %v2775 = vld [vmem:[%s4 + $0x308] sm:$0xff]
  %v2776 = vld [vmem:[%s4 + $0x310] sm:$0xff]
  %v2777 = vld [vmem:[%s4 + $0x318] sm:$0xff]
  %v2778 = vld [vmem:[%s4 + $0x320] sm:$0xff]
  %v2779 = vld [vmem:[%s4 + $0x328] sm:$0xff]
  %v2780 = vld [vmem:[%s4 + $0x330] sm:$0xff]
  %v2781 = vld [vmem:[%s4 + $0x338] sm:$0xff]
  %v2782 = vld [vmem:[%s4 + $0x340] sm:$0xff]
  %v2783 = vld [vmem:[%s4 + $0x348] sm:$0xff]
  %v2784 = vld [vmem:[%s4 + $0x350] sm:$0xff]
  %v2785 = vld [vmem:[%s4 + $0x358] sm:$0xff]
  %v2786 = vld [vmem:[%s4 + $0x360] sm:$0xff]
  %v2787 = vld [vmem:[%s4 + $0x368] sm:$0xff]
  %v2788 = vld [vmem:[%s4 + $0x370] sm:$0xff]
  %v2789 = vld [vmem:[%s4 + $0x378] sm:$0xff]
  %v2790 = vld [vmem:[%s4 + $0x380] sm:$0xff]
  %v2791 = vld [vmem:[%s4 + $0x388] sm:$0xff]
  %v2792 = vld [vmem:[%s4 + $0x390] sm:$0xff]
  %v2793 = vld [vmem:[%s4 + $0x398] sm:$0xff]
  %v2794 = vld [vmem:[%s4 + $0x3a0] sm:$0xff]
  %v2795 = vld [vmem:[%s4 + $0x3a8] sm:$0xff]
  %v2796 = vld [vmem:[%s4 + $0x3b0] sm:$0xff]
  %v2797 = vld [vmem:[%s4 + $0x3b8] sm:$0xff]
  %v2798 = vsel %vm671, %v1962, 0.0
  %v2799 = vadd.f32 %v1960, %v2798
  %2800 = vadd.xlane.f32.xlu0 %v2799
  %v2801 = vpop.xlane.xlu0 %2800
  %v2802 = vsel %vm671, %v1968, 0.0
  %v2803 = vadd.f32 %v1966, %v2802
  %2804 = vadd.xlane.f32.xlu0 %v2803
  %v2805 = vpop.xlane.xlu0 %2804
  %v2806 = vsel %vm671, %v1974, 0.0
  %v2807 = vadd.f32 %v1972, %v2806
  %2808 = vadd.xlane.f32.xlu0 %v2807
  %v2809 = vpop.xlane.xlu0 %2808
  %v2810 = vsel %vm671, %v1980, 0.0
  %v2811 = vadd.f32 %v1978, %v2810
  %2812 = vadd.xlane.f32.xlu0 %v2811
  %v2813 = vpop.xlane.xlu0 %2812
  %v2814 = vsel %vm671, %v1986, 0.0
  %v2815 = vadd.f32 %v1984, %v2814
  %2816 = vadd.xlane.f32.xlu0 %v2815
  %v2817 = vpop.xlane.xlu0 %2816
  %v2818 = vsel %vm671, %v1992, 0.0
  %v2819 = vadd.f32 %v1990, %v2818
  %2820 = vadd.xlane.f32.xlu0 %v2819
  %v2821 = vpop.xlane.xlu0 %2820
  %v2822 = vsel %vm671, %v1998, 0.0
  %v2823 = vadd.f32 %v1996, %v2822
  %2824 = vadd.xlane.f32.xlu0 %v2823
  %v2825 = vpop.xlane.xlu0 %2824
  %v2826 = vsel %vm671, %v2004, 0.0
  %v2827 = vadd.f32 %v2002, %v2826
  %2828 = vadd.xlane.f32.xlu0 %v2827
  %v2829 = vpop.xlane.xlu0 %2828
  %v2830 = vsel %vm671, %v2010, 0.0
  %v2831 = vadd.f32 %v2008, %v2830
  %2832 = vadd.xlane.f32.xlu0 %v2831
  %v2833 = vpop.xlane.xlu0 %2832
  %v2834 = vsel %vm671, %v2016, 0.0
  %v2835 = vadd.f32 %v2014, %v2834
  %2836 = vadd.xlane.f32.xlu0 %v2835
  %v2837 = vpop.xlane.xlu0 %2836
  %v2838 = vsel %vm671, %v2022, 0.0
  %v2839 = vadd.f32 %v2020, %v2838
  %2840 = vadd.xlane.f32.xlu0 %v2839
  %v2841 = vpop.xlane.xlu0 %2840
  %v2842 = vsel %vm671, %v2028, 0.0
  %v2843 = vadd.f32 %v2026, %v2842
  %2844 = vadd.xlane.f32.xlu0 %v2843
  %v2845 = vpop.xlane.xlu0 %2844
  %v2846 = vsel %vm671, %v2034, 0.0
  %v2847 = vadd.f32 %v2032, %v2846
  %2848 = vadd.xlane.f32.xlu0 %v2847
  %v2849 = vpop.xlane.xlu0 %2848
  %v2850 = vsel %vm671, %v2040, 0.0
  %v2851 = vadd.f32 %v2038, %v2850
  %2852 = vadd.xlane.f32.xlu0 %v2851
  %v2853 = vpop.xlane.xlu0 %2852
  %v2854 = vsel %vm671, %v2046, 0.0
  %v2855 = vadd.f32 %v2044, %v2854
  %2856 = vadd.xlane.f32.xlu0 %v2855
  %v2857 = vpop.xlane.xlu0 %2856
  %v2858 = vsel %vm671, %v2052, 0.0
  %v2859 = vadd.f32 %v2050, %v2858
  %2860 = vadd.xlane.f32.xlu0 %v2859
  %v2861 = vpop.xlane.xlu0 %2860
  %v2862 = vsel %vm671, %v2058, 0.0
  %v2863 = vadd.f32 %v2056, %v2862
  %2864 = vadd.xlane.f32.xlu0 %v2863
  %v2865 = vpop.xlane.xlu0 %2864
  %v2866 = vsel %vm671, %v2064, 0.0
  %v2867 = vadd.f32 %v2062, %v2866
  %2868 = vadd.xlane.f32.xlu0 %v2867
  %v2869 = vpop.xlane.xlu0 %2868
  %v2870 = vsel %vm671, %v2070, 0.0
  %v2871 = vadd.f32 %v2068, %v2870
  %2872 = vadd.xlane.f32.xlu0 %v2871
  %v2873 = vpop.xlane.xlu0 %2872
  %v2874 = vsel %vm671, %v2076, 0.0
  %v2875 = vadd.f32 %v2074, %v2874
  %2876 = vadd.xlane.f32.xlu0 %v2875
  %v2877 = vpop.xlane.xlu0 %2876
  %v2878 = vsel %vm671, %v2082, 0.0
  %v2879 = vadd.f32 %v2080, %v2878
  %2880 = vadd.xlane.f32.xlu0 %v2879
  %v2881 = vpop.xlane.xlu0 %2880
  %v2882 = vsel %vm671, %v2088, 0.0
  %v2883 = vadd.f32 %v2086, %v2882
  %2884 = vadd.xlane.f32.xlu0 %v2883
  %v2885 = vpop.xlane.xlu0 %2884
  %v2886 = vsel %vm671, %v2094, 0.0
  %v2887 = vadd.f32 %v2092, %v2886
  %2888 = vadd.xlane.f32.xlu0 %v2887
  %v2889 = vpop.xlane.xlu0 %2888
  %v2890 = vsel %vm671, %v2100, 0.0
  %v2891 = vadd.f32 %v2098, %v2890
  %2892 = vadd.xlane.f32.xlu0 %v2891
  %v2893 = vpop.xlane.xlu0 %2892
  %v2894 = vsel %vm671, %v2106, 0.0
  %v2895 = vadd.f32 %v2104, %v2894
  %2896 = vadd.xlane.f32.xlu0 %v2895
  %v2897 = vpop.xlane.xlu0 %2896
  %v2898 = vsel %vm671, %v2112, 0.0
  %v2899 = vadd.f32 %v2110, %v2898
  %2900 = vadd.xlane.f32.xlu0 %v2899
  %v2901 = vpop.xlane.xlu0 %2900
  %v2902 = vsel %vm671, %v2118, 0.0
  %v2903 = vadd.f32 %v2116, %v2902
  %2904 = vadd.xlane.f32.xlu0 %v2903
  %v2905 = vpop.xlane.xlu0 %2904
  %v2906 = vsel %vm671, %v2124, 0.0
  %v2907 = vadd.f32 %v2122, %v2906
  %2908 = vadd.xlane.f32.xlu0 %v2907
  %v2909 = vpop.xlane.xlu0 %2908
  %v2910 = vsel %vm671, %v2130, 0.0
  %v2911 = vadd.f32 %v2128, %v2910
  %2912 = vadd.xlane.f32.xlu0 %v2911
  %v2913 = vpop.xlane.xlu0 %2912
  %v2914 = vsel %vm671, %v2136, 0.0
  %v2915 = vadd.f32 %v2134, %v2914
  %2916 = vadd.xlane.f32.xlu0 %v2915
  %v2917 = vpop.xlane.xlu0 %2916
  %v2918 = vsel %vm671, %v2142, 0.0
  %v2919 = vadd.f32 %v2140, %v2918
  %2920 = vadd.xlane.f32.xlu0 %v2919
  %v2921 = vpop.xlane.xlu0 %2920
  %v2922 = vsel %vm671, %v2148, 0.0
  %v2923 = vadd.f32 %v2146, %v2922
  %2924 = vadd.xlane.f32.xlu0 %v2923
  %v2925 = vpop.xlane.xlu0 %2924
  %v2926 = vsel %vm671, %v2154, 0.0
  %v2927 = vadd.f32 %v2152, %v2926
  %2928 = vadd.xlane.f32.xlu0 %v2927
  %v2929 = vpop.xlane.xlu0 %2928
  %v2930 = vsel %vm671, %v2160, 0.0
  %v2931 = vadd.f32 %v2158, %v2930
  %2932 = vadd.xlane.f32.xlu0 %v2931
  %v2933 = vpop.xlane.xlu0 %2932
  %v2934 = vsel %vm671, %v2166, 0.0
  %v2935 = vadd.f32 %v2164, %v2934
  %2936 = vadd.xlane.f32.xlu0 %v2935
  %v2937 = vpop.xlane.xlu0 %2936
  %v2938 = vsel %vm671, %v2172, 0.0
  %v2939 = vadd.f32 %v2170, %v2938
  %2940 = vadd.xlane.f32.xlu0 %v2939
  %v2941 = vpop.xlane.xlu0 %2940
  %v2942 = vsel %vm671, %v2178, 0.0
  %v2943 = vadd.f32 %v2176, %v2942
  %2944 = vadd.xlane.f32.xlu0 %v2943
  %v2945 = vpop.xlane.xlu0 %2944
  %v2946 = vsel %vm671, %v2184, 0.0
  %v2947 = vadd.f32 %v2182, %v2946
  %2948 = vadd.xlane.f32.xlu0 %v2947
  %v2949 = vpop.xlane.xlu0 %2948
  %v2950 = vsel %vm671, %v2190, 0.0
  %v2951 = vadd.f32 %v2188, %v2950
  %2952 = vadd.xlane.f32.xlu0 %v2951
  %v2953 = vpop.xlane.xlu0 %2952
  %v2954 = vsel %vm671, %v2196, 0.0
  %v2955 = vadd.f32 %v2194, %v2954
  %2956 = vadd.xlane.f32.xlu0 %v2955
  %v2957 = vpop.xlane.xlu0 %2956
  %v2958 = vsel %vm671, %v2202, 0.0
  %v2959 = vadd.f32 %v2200, %v2958
  %2960 = vadd.xlane.f32.xlu0 %v2959
  %v2961 = vpop.xlane.xlu0 %2960
  %v2962 = vsel %vm671, %v2208, 0.0
  %v2963 = vadd.f32 %v2206, %v2962
  %2964 = vadd.xlane.f32.xlu0 %v2963
  %v2965 = vpop.xlane.xlu0 %2964
  %v2966 = vsel %vm671, %v2214, 0.0
  %v2967 = vadd.f32 %v2212, %v2966
  %2968 = vadd.xlane.f32.xlu0 %v2967
  %v2969 = vpop.xlane.xlu0 %2968
  %v2970 = vsel %vm671, %v2220, 0.0
  %v2971 = vadd.f32 %v2218, %v2970
  %2972 = vadd.xlane.f32.xlu0 %v2971
  %v2973 = vpop.xlane.xlu0 %2972
  %v2974 = vsel %vm671, %v2226, 0.0
  %v2975 = vadd.f32 %v2224, %v2974
  %2976 = vadd.xlane.f32.xlu0 %v2975
  %v2977 = vpop.xlane.xlu0 %2976
  %v2978 = vsel %vm671, %v2232, 0.0
  %v2979 = vadd.f32 %v2230, %v2978
  %2980 = vadd.xlane.f32.xlu0 %v2979
  %v2981 = vpop.xlane.xlu0 %2980
  %v2982 = vsel %vm671, %v2238, 0.0
  %v2983 = vadd.f32 %v2236, %v2982
  %2984 = vadd.xlane.f32.xlu0 %v2983
  %v2985 = vpop.xlane.xlu0 %2984
  %v2986 = vsel %vm671, %v2244, 0.0
  %v2987 = vadd.f32 %v2242, %v2986
  %2988 = vadd.xlane.f32.xlu0 %v2987
  %v2989 = vpop.xlane.xlu0 %2988
  %v2990 = vsel %vm671, %v2250, 0.0
  %v2991 = vadd.f32 %v2248, %v2990
  %2992 = vadd.xlane.f32.xlu0 %v2991
  %v2993 = vpop.xlane.xlu0 %2992
  %v2994 = vsel %vm671, %v2256, 0.0
  %v2995 = vadd.f32 %v2254, %v2994
  %2996 = vadd.xlane.f32.xlu0 %v2995
  %v2997 = vpop.xlane.xlu0 %2996
  %v2998 = vsel %vm671, %v2262, 0.0
  %v2999 = vadd.f32 %v2260, %v2998
  %3000 = vadd.xlane.f32.xlu0 %v2999
  %v3001 = vpop.xlane.xlu0 %3000
  %v3002 = vsel %vm671, %v2268, 0.0
  %v3003 = vadd.f32 %v2266, %v3002
  %3004 = vadd.xlane.f32.xlu0 %v3003
  %v3005 = vpop.xlane.xlu0 %3004
  %v3006 = vsel %vm671, %v2274, 0.0
  %v3007 = vadd.f32 %v2272, %v3006
  %3008 = vadd.xlane.f32.xlu0 %v3007
  %v3009 = vpop.xlane.xlu0 %3008
  %v3010 = vsel %vm671, %v2280, 0.0
  %v3011 = vadd.f32 %v2278, %v3010
  %3012 = vadd.xlane.f32.xlu0 %v3011
  %v3013 = vpop.xlane.xlu0 %3012
  %v3014 = vsel %vm671, %v2286, 0.0
  %v3015 = vadd.f32 %v2284, %v3014
  %3016 = vadd.xlane.f32.xlu0 %v3015
  %v3017 = vpop.xlane.xlu0 %3016
  %v3018 = vsel %vm671, %v2292, 0.0
  %v3019 = vadd.f32 %v2290, %v3018
  %3020 = vadd.xlane.f32.xlu0 %v3019
  %v3021 = vpop.xlane.xlu0 %3020
  %v3022 = vsel %vm671, %v2298, 0.0
  %v3023 = vadd.f32 %v2296, %v3022
  %3024 = vadd.xlane.f32.xlu0 %v3023
  %v3025 = vpop.xlane.xlu0 %3024
  %v3026 = vsel %vm671, %v2304, 0.0
  %v3027 = vadd.f32 %v2302, %v3026
  %3028 = vadd.xlane.f32.xlu0 %v3027
  %v3029 = vpop.xlane.xlu0 %3028
  %v3030 = vsel %vm671, %v2310, 0.0
  %v3031 = vadd.f32 %v2308, %v3030
  %3032 = vadd.xlane.f32.xlu0 %v3031
  %v3033 = vpop.xlane.xlu0 %3032
  %v3034 = vsel %vm671, %v2316, 0.0
  %v3035 = vadd.f32 %v2314, %v3034
  %3036 = vadd.xlane.f32.xlu0 %v3035
  %v3037 = vpop.xlane.xlu0 %3036
  %v3038 = vsel %vm671, %v2322, 0.0
  %v3039 = vadd.f32 %v2320, %v3038
  %3040 = vadd.xlane.f32.xlu0 %v3039
  %v3041 = vpop.xlane.xlu0 %3040
  %v3042 = vsel %vm671, %v2328, 0.0
  %v3043 = vadd.f32 %v2326, %v3042
  %3044 = vadd.xlane.f32.xlu0 %v3043
  %v3045 = vpop.xlane.xlu0 %3044
  %v3046 = vsel %vm671, %v2334, 0.0
  %v3047 = vadd.f32 %v2332, %v3046
  %3048 = vadd.xlane.f32.xlu0 %v3047
  %v3049 = vpop.xlane.xlu0 %3048
  %v3050 = vsel %vm671, %v2340, 0.0
  %v3051 = vadd.f32 %v2338, %v3050
  %3052 = vadd.xlane.f32.xlu0 %v3051
  %v3053 = vpop.xlane.xlu0 %3052
  %v3054 = vsel %vm671, %v2346, 0.0
  %v3055 = vadd.f32 %v2344, %v3054
  %3056 = vadd.xlane.f32.xlu0 %v3055
  %v3057 = vpop.xlane.xlu0 %3056
  %v3058 = vsel %vm671, %v2352, 0.0
  %v3059 = vadd.f32 %v2350, %v3058
  %3060 = vadd.xlane.f32.xlu0 %v3059
  %v3061 = vpop.xlane.xlu0 %3060
  %v3062 = vsel %vm671, %v2358, 0.0
  %v3063 = vadd.f32 %v2356, %v3062
  %3064 = vadd.xlane.f32.xlu0 %v3063
  %v3065 = vpop.xlane.xlu0 %3064
  %v3066 = vsel %vm671, %v2364, 0.0
  %v3067 = vadd.f32 %v2362, %v3066
  %3068 = vadd.xlane.f32.xlu0 %v3067
  %v3069 = vpop.xlane.xlu0 %3068
  %v3070 = vsel %vm671, %v2370, 0.0
  %v3071 = vadd.f32 %v2368, %v3070
  %3072 = vadd.xlane.f32.xlu0 %v3071
  %v3073 = vpop.xlane.xlu0 %3072
  %v3074 = vsel %vm671, %v2376, 0.0
  %v3075 = vadd.f32 %v2374, %v3074
  %3076 = vadd.xlane.f32.xlu0 %v3075
  %v3077 = vpop.xlane.xlu0 %3076
  %v3078 = vsel %vm671, %v2382, 0.0
  %v3079 = vadd.f32 %v2380, %v3078
  %3080 = vadd.xlane.f32.xlu0 %v3079
  %v3081 = vpop.xlane.xlu0 %3080
  %v3082 = vsel %vm671, %v2388, 0.0
  %v3083 = vadd.f32 %v2386, %v3082
  %3084 = vadd.xlane.f32.xlu0 %v3083
  %v3085 = vpop.xlane.xlu0 %3084
  %v3086 = vsel %vm671, %v2394, 0.0
  %v3087 = vadd.f32 %v2392, %v3086
  %3088 = vadd.xlane.f32.xlu0 %v3087
  %v3089 = vpop.xlane.xlu0 %3088
  %v3090 = vsel %vm671, %v2400, 0.0
  %v3091 = vadd.f32 %v2398, %v3090
  %3092 = vadd.xlane.f32.xlu0 %v3091
  %v3093 = vpop.xlane.xlu0 %3092
  %v3094 = vsel %vm671, %v2406, 0.0
  %v3095 = vadd.f32 %v2404, %v3094
  %3096 = vadd.xlane.f32.xlu0 %v3095
  %v3097 = vpop.xlane.xlu0 %3096
  %v3098 = vsel %vm671, %v2412, 0.0
  %v3099 = vadd.f32 %v2410, %v3098
  %3100 = vadd.xlane.f32.xlu0 %v3099
  %v3101 = vpop.xlane.xlu0 %3100
  %v3102 = vsel %vm671, %v2418, 0.0
  %v3103 = vadd.f32 %v2416, %v3102
  %3104 = vadd.xlane.f32.xlu0 %v3103
  %v3105 = vpop.xlane.xlu0 %3104
  %v3106 = vsel %vm671, %v2424, 0.0
  %v3107 = vadd.f32 %v2422, %v3106
  %3108 = vadd.xlane.f32.xlu0 %v3107
  %v3109 = vpop.xlane.xlu0 %3108
  %v3110 = vsel %vm671, %v2430, 0.0
  %v3111 = vadd.f32 %v2428, %v3110
  %3112 = vadd.xlane.f32.xlu0 %v3111
  %v3113 = vpop.xlane.xlu0 %3112
  %v3114 = vsel %vm671, %v2436, 0.0
  %v3115 = vadd.f32 %v2434, %v3114
  %3116 = vadd.xlane.f32.xlu0 %v3115
  %v3117 = vpop.xlane.xlu0 %3116
  %v3118 = vsel %vm671, %v2442, 0.0
  %v3119 = vadd.f32 %v2440, %v3118
  %3120 = vadd.xlane.f32.xlu0 %v3119
  %v3121 = vpop.xlane.xlu0 %3120
  %v3122 = vsel %vm671, %v2448, 0.0
  %v3123 = vadd.f32 %v2446, %v3122
  %3124 = vadd.xlane.f32.xlu0 %v3123
  %v3125 = vpop.xlane.xlu0 %3124
  %v3126 = vsel %vm671, %v2454, 0.0
  %v3127 = vadd.f32 %v2452, %v3126
  %3128 = vadd.xlane.f32.xlu0 %v3127
  %v3129 = vpop.xlane.xlu0 %3128
  %v3130 = vsel %vm671, %v2460, 0.0
  %v3131 = vadd.f32 %v2458, %v3130
  %3132 = vadd.xlane.f32.xlu0 %v3131
  %v3133 = vpop.xlane.xlu0 %3132
  %v3134 = vsel %vm671, %v2466, 0.0
  %v3135 = vadd.f32 %v2464, %v3134
  %3136 = vadd.xlane.f32.xlu0 %v3135
  %v3137 = vpop.xlane.xlu0 %3136
  %v3138 = vsel %vm671, %v2472, 0.0
  %v3139 = vadd.f32 %v2470, %v3138
  %3140 = vadd.xlane.f32.xlu0 %v3139
  %v3141 = vpop.xlane.xlu0 %3140
  %v3142 = vsel %vm671, %v2478, 0.0
  %v3143 = vadd.f32 %v2476, %v3142
  %3144 = vadd.xlane.f32.xlu0 %v3143
  %v3145 = vpop.xlane.xlu0 %3144
  %v3146 = vsel %vm671, %v2484, 0.0
  %v3147 = vadd.f32 %v2482, %v3146
  %3148 = vadd.xlane.f32.xlu0 %v3147
  %v3149 = vpop.xlane.xlu0 %3148
  %v3150 = vsel %vm671, %v2490, 0.0
  %v3151 = vadd.f32 %v2488, %v3150
  %3152 = vadd.xlane.f32.xlu0 %v3151
  %v3153 = vpop.xlane.xlu0 %3152
  %v3154 = vsel %vm671, %v2496, 0.0
  %v3155 = vadd.f32 %v2494, %v3154
  %3156 = vadd.xlane.f32.xlu0 %v3155
  %v3157 = vpop.xlane.xlu0 %3156
  %v3158 = vsel %vm671, %v2502, 0.0
  %v3159 = vadd.f32 %v2500, %v3158
  %3160 = vadd.xlane.f32.xlu0 %v3159
  %v3161 = vpop.xlane.xlu0 %3160
  %v3162 = vsel %vm671, %v2508, 0.0
  %v3163 = vadd.f32 %v2506, %v3162
  %3164 = vadd.xlane.f32.xlu0 %v3163
  %v3165 = vpop.xlane.xlu0 %3164
  %v3166 = vsel %vm671, %v2514, 0.0
  %v3167 = vadd.f32 %v2512, %v3166
  %3168 = vadd.xlane.f32.xlu0 %v3167
  %v3169 = vpop.xlane.xlu0 %3168
  %v3170 = vsel %vm671, %v2520, 0.0
  %v3171 = vadd.f32 %v2518, %v3170
  %3172 = vadd.xlane.f32.xlu0 %v3171
  %v3173 = vpop.xlane.xlu0 %3172
  %v3174 = vsel %vm671, %v2526, 0.0
  %v3175 = vadd.f32 %v2524, %v3174
  %3176 = vadd.xlane.f32.xlu0 %v3175
  %v3177 = vpop.xlane.xlu0 %3176
  %v3178 = vsel %vm671, %v2532, 0.0
  %v3179 = vadd.f32 %v2530, %v3178
  %3180 = vadd.xlane.f32.xlu0 %v3179
  %v3181 = vpop.xlane.xlu0 %3180
  %v3182 = vsel %vm671, %v2538, 0.0
  %v3183 = vadd.f32 %v2536, %v3182
  %3184 = vadd.xlane.f32.xlu0 %v3183
  %v3185 = vpop.xlane.xlu0 %3184
  %v3186 = vsel %vm671, %v2544, 0.0
  %v3187 = vadd.f32 %v2542, %v3186
  %3188 = vadd.xlane.f32.xlu0 %v3187
  %v3189 = vpop.xlane.xlu0 %3188
  %v3190 = vsel %vm671, %v2550, 0.0
  %v3191 = vadd.f32 %v2548, %v3190
  %3192 = vadd.xlane.f32.xlu0 %v3191
  %v3193 = vpop.xlane.xlu0 %3192
  %v3194 = vsel %vm671, %v2556, 0.0
  %v3195 = vadd.f32 %v2554, %v3194
  %3196 = vadd.xlane.f32.xlu0 %v3195
  %v3197 = vpop.xlane.xlu0 %3196
  %v3198 = vsel %vm671, %v2562, 0.0
  %v3199 = vadd.f32 %v2560, %v3198
  %3200 = vadd.xlane.f32.xlu0 %v3199
  %v3201 = vpop.xlane.xlu0 %3200
  %v3202 = vsel %vm671, %v2568, 0.0
  %v3203 = vadd.f32 %v2566, %v3202
  %3204 = vadd.xlane.f32.xlu0 %v3203
  %v3205 = vpop.xlane.xlu0 %3204
  %v3206 = vsel %vm671, %v2574, 0.0
  %v3207 = vadd.f32 %v2572, %v3206
  %3208 = vadd.xlane.f32.xlu0 %v3207
  %v3209 = vpop.xlane.xlu0 %3208
  %v3210 = vsel %vm671, %v2580, 0.0
  %v3211 = vadd.f32 %v2578, %v3210
  %3212 = vadd.xlane.f32.xlu0 %v3211
  %v3213 = vpop.xlane.xlu0 %3212
  %v3214 = vsel %vm671, %v2586, 0.0
  %v3215 = vadd.f32 %v2584, %v3214
  %3216 = vadd.xlane.f32.xlu0 %v3215
  %v3217 = vpop.xlane.xlu0 %3216
  %v3218 = vsel %vm671, %v2592, 0.0
  %v3219 = vadd.f32 %v2590, %v3218
  %3220 = vadd.xlane.f32.xlu0 %v3219
  %v3221 = vpop.xlane.xlu0 %3220
  %v3222 = vsel %vm671, %v2598, 0.0
  %v3223 = vadd.f32 %v2596, %v3222
  %3224 = vadd.xlane.f32.xlu0 %v3223
  %v3225 = vpop.xlane.xlu0 %3224
  %v3226 = vsel %vm671, %v2604, 0.0
  %v3227 = vadd.f32 %v2602, %v3226
  %3228 = vadd.xlane.f32.xlu0 %v3227
  %v3229 = vpop.xlane.xlu0 %3228
  %v3230 = vsel %vm671, %v2610, 0.0
  %v3231 = vadd.f32 %v2608, %v3230
  %3232 = vadd.xlane.f32.xlu0 %v3231
  %v3233 = vpop.xlane.xlu0 %3232
  %v3234 = vsel %vm671, %v2616, 0.0
  %v3235 = vadd.f32 %v2614, %v3234
  %3236 = vadd.xlane.f32.xlu0 %v3235
  %v3237 = vpop.xlane.xlu0 %3236
  %v3238 = vsel %vm671, %v2622, 0.0
  %v3239 = vadd.f32 %v2620, %v3238
  %3240 = vadd.xlane.f32.xlu0 %v3239
  %v3241 = vpop.xlane.xlu0 %3240
  %v3242 = vsel %vm671, %v2628, 0.0
  %v3243 = vadd.f32 %v2626, %v3242
  %3244 = vadd.xlane.f32.xlu0 %v3243
  %v3245 = vpop.xlane.xlu0 %3244
  %v3246 = vsel %vm671, %v2634, 0.0
  %v3247 = vadd.f32 %v2632, %v3246
  %3248 = vadd.xlane.f32.xlu0 %v3247
  %v3249 = vpop.xlane.xlu0 %3248
  %v3250 = vsel %vm671, %v2640, 0.0
  %v3251 = vadd.f32 %v2638, %v3250
  %3252 = vadd.xlane.f32.xlu0 %v3251
  %v3253 = vpop.xlane.xlu0 %3252
  %v3254 = vsel %vm671, %v2646, 0.0
  %v3255 = vadd.f32 %v2644, %v3254
  %3256 = vadd.xlane.f32.xlu0 %v3255
  %v3257 = vpop.xlane.xlu0 %3256
  %v3258 = vsel %vm671, %v2652, 0.0
  %v3259 = vadd.f32 %v2650, %v3258
  %3260 = vadd.xlane.f32.xlu0 %v3259
  %v3261 = vpop.xlane.xlu0 %3260
  %v3262 = vsel %vm671, %v2658, 0.0
  %v3263 = vadd.f32 %v2656, %v3262
  %3264 = vadd.xlane.f32.xlu0 %v3263
  %v3265 = vpop.xlane.xlu0 %3264
  %v3266 = vsel %vm671, %v2664, 0.0
  %v3267 = vadd.f32 %v2662, %v3266
  %3268 = vadd.xlane.f32.xlu0 %v3267
  %v3269 = vpop.xlane.xlu0 %3268
  %v3270 = vsel %vm671, %v2670, 0.0
  %v3271 = vadd.f32 %v2668, %v3270
  %3272 = vadd.xlane.f32.xlu0 %v3271
  %v3273 = vpop.xlane.xlu0 %3272
  %v3274 = vsel %vm671, %v2676, 0.0
  %v3275 = vadd.f32 %v2674, %v3274
  %3276 = vadd.xlane.f32.xlu0 %v3275
  %v3277 = vpop.xlane.xlu0 %3276
  %v3278 = vmul.f32 %v2801, 0.0051020407
  %v3279 = vmul.f32 %v2805, 0.0051020407
  %v3280 = vmul.f32 %v2809, 0.0051020407
  %v3281 = vmul.f32 %v2813, 0.0051020407
  %v3282 = vmul.f32 %v2817, 0.0051020407
  %v3283 = vmul.f32 %v2821, 0.0051020407
  %v3284 = vmul.f32 %v2825, 0.0051020407
  %v3285 = vmul.f32 %v2829, 0.0051020407
  %v3286 = vmul.f32 %v2833, 0.0051020407
  %v3287 = vmul.f32 %v2837, 0.0051020407
  %v3288 = vmul.f32 %v2841, 0.0051020407
  %v3289 = vmul.f32 %v2845, 0.0051020407
  %v3290 = vmul.f32 %v2849, 0.0051020407
  %v3291 = vmul.f32 %v2853, 0.0051020407
  %v3292 = vmul.f32 %v2857, 0.0051020407
  %v3293 = vmul.f32 %v2861, 0.0051020407
  %v3294 = vmul.f32 %v2865, 0.0051020407
  %v3295 = vmul.f32 %v2869, 0.0051020407
  %v3296 = vmul.f32 %v2873, 0.0051020407
  %v3297 = vmul.f32 %v2877, 0.0051020407
  %v3298 = vmul.f32 %v2881, 0.0051020407
  %v3299 = vmul.f32 %v2885, 0.0051020407
  %v3300 = vmul.f32 %v2889, 0.0051020407
  %v3301 = vmul.f32 %v2893, 0.0051020407
  %v3302 = vmul.f32 %v2897, 0.0051020407
  %v3303 = vmul.f32 %v2901, 0.0051020407
  %v3304 = vmul.f32 %v2905, 0.0051020407
  %v3305 = vmul.f32 %v2909, 0.0051020407
  %v3306 = vmul.f32 %v2913, 0.0051020407
  %v3307 = vmul.f32 %v2917, 0.0051020407
  %v3308 = vmul.f32 %v2921, 0.0051020407
  %v3309 = vmul.f32 %v2925, 0.0051020407
  %v3310 = vmul.f32 %v2929, 0.0051020407
  %v3311 = vmul.f32 %v2933, 0.0051020407
  %v3312 = vmul.f32 %v2937, 0.0051020407
  %v3313 = vmul.f32 %v2941, 0.0051020407
  %v3314 = vmul.f32 %v2945, 0.0051020407
  %v3315 = vmul.f32 %v2949, 0.0051020407
  %v3316 = vmul.f32 %v2953, 0.0051020407
  %v3317 = vmul.f32 %v2957, 0.0051020407
  %v3318 = vmul.f32 %v2961, 0.0051020407
  %v3319 = vmul.f32 %v2965, 0.0051020407
  %v3320 = vmul.f32 %v2969, 0.0051020407
  %v3321 = vmul.f32 %v2973, 0.0051020407
  %v3322 = vmul.f32 %v2977, 0.0051020407
  %v3323 = vmul.f32 %v2981, 0.0051020407
  %v3324 = vmul.f32 %v2985, 0.0051020407
  %v3325 = vmul.f32 %v2989, 0.0051020407
  %v3326 = vmul.f32 %v2993, 0.0051020407
  %v3327 = vmul.f32 %v2997, 0.0051020407
  %v3328 = vmul.f32 %v3001, 0.0051020407
  %v3329 = vmul.f32 %v3005, 0.0051020407
  %v3330 = vmul.f32 %v3009, 0.0051020407
  %v3331 = vmul.f32 %v3013, 0.0051020407
  %v3332 = vmul.f32 %v3017, 0.0051020407
  %v3333 = vmul.f32 %v3021, 0.0051020407
  %v3334 = vmul.f32 %v3025, 0.0051020407
  %v3335 = vmul.f32 %v3029, 0.0051020407
  %v3336 = vmul.f32 %v3033, 0.0051020407
  %v3337 = vmul.f32 %v3037, 0.0051020407
  %v3338 = vmul.f32 %v3041, 0.0051020407
  %v3339 = vmul.f32 %v3045, 0.0051020407
  %v3340 = vmul.f32 %v3049, 0.0051020407
  %v3341 = vmul.f32 %v3053, 0.0051020407
  %v3342 = vmul.f32 %v3057, 0.0051020407
  %v3343 = vmul.f32 %v3061, 0.0051020407
  %v3344 = vmul.f32 %v3065, 0.0051020407
  %v3345 = vmul.f32 %v3069, 0.0051020407
  %v3346 = vmul.f32 %v3073, 0.0051020407
  %v3347 = vmul.f32 %v3077, 0.0051020407
  %v3348 = vmul.f32 %v3081, 0.0051020407
  %v3349 = vmul.f32 %v3085, 0.0051020407
  %v3350 = vmul.f32 %v3089, 0.0051020407
  %v3351 = vmul.f32 %v3093, 0.0051020407
  %v3352 = vmul.f32 %v3097, 0.0051020407
  %v3353 = vmul.f32 %v3101, 0.0051020407
  %v3354 = vmul.f32 %v3105, 0.0051020407
  %v3355 = vmul.f32 %v3109, 0.0051020407
  %v3356 = vmul.f32 %v3113, 0.0051020407
  %v3357 = vmul.f32 %v3117, 0.0051020407
  %v3358 = vmul.f32 %v3121, 0.0051020407
  %v3359 = vmul.f32 %v3125, 0.0051020407
  %v3360 = vmul.f32 %v3129, 0.0051020407
  %v3361 = vmul.f32 %v3133, 0.0051020407
  %v3362 = vmul.f32 %v3137, 0.0051020407
  %v3363 = vmul.f32 %v3141, 0.0051020407
  %v3364 = vmul.f32 %v3145, 0.0051020407
  %v3365 = vmul.f32 %v3149, 0.0051020407
  %v3366 = vmul.f32 %v3153, 0.0051020407
  %v3367 = vmul.f32 %v3157, 0.0051020407
  %v3368 = vmul.f32 %v3161, 0.0051020407
  %v3369 = vmul.f32 %v3165, 0.0051020407
  %v3370 = vmul.f32 %v3169, 0.0051020407
  %v3371 = vmul.f32 %v3173, 0.0051020407
  %v3372 = vmul.f32 %v3177, 0.0051020407
  %v3373 = vmul.f32 %v3181, 0.0051020407
  %v3374 = vmul.f32 %v3185, 0.0051020407
  %v3375 = vmul.f32 %v3189, 0.0051020407
  %v3376 = vmul.f32 %v3193, 0.0051020407
  %v3377 = vmul.f32 %v3197, 0.0051020407
  %v3378 = vmul.f32 %v3201, 0.0051020407
  %v3379 = vmul.f32 %v3205, 0.0051020407
  %v3380 = vmul.f32 %v3209, 0.0051020407
  %v3381 = vmul.f32 %v3213, 0.0051020407
  %v3382 = vmul.f32 %v3217, 0.0051020407
  %v3383 = vmul.f32 %v3221, 0.0051020407
  %v3384 = vmul.f32 %v3225, 0.0051020407
  %v3385 = vmul.f32 %v3229, 0.0051020407
  %v3386 = vmul.f32 %v3233, 0.0051020407
  %v3387 = vmul.f32 %v3237, 0.0051020407
  %v3388 = vmul.f32 %v3241, 0.0051020407
  %v3389 = vmul.f32 %v3245, 0.0051020407
  %v3390 = vmul.f32 %v3249, 0.0051020407
  %v3391 = vmul.f32 %v3253, 0.0051020407
  %v3392 = vmul.f32 %v3257, 0.0051020407
  %v3393 = vmul.f32 %v3261, 0.0051020407
  %v3394 = vmul.f32 %v3265, 0.0051020407
  %v3395 = vmul.f32 %v3269, 0.0051020407
  %v3396 = vmul.f32 %v3273, 0.0051020407
  %v3397 = vmul.f32 %v3277, 0.0051020407
  %v3398 = vsub.f32 %v1960, %v3278
  %v3399 = vsub.f32 %v1962, %v3278
  %v3400 = vsub.f32 %v1966, %v3279
  %v3401 = vsub.f32 %v1968, %v3279
  %v3402 = vsub.f32 %v1972, %v3280
  %v3403 = vsub.f32 %v1974, %v3280
  %v3404 = vsub.f32 %v1978, %v3281
  %v3405 = vsub.f32 %v1980, %v3281
  %v3406 = vsub.f32 %v1984, %v3282
  %v3407 = vsub.f32 %v1986, %v3282
  %v3408 = vsub.f32 %v1990, %v3283
  %v3409 = vsub.f32 %v1992, %v3283
  %v3410 = vsub.f32 %v1996, %v3284
  %v3411 = vsub.f32 %v1998, %v3284
  %v3412 = vsub.f32 %v2002, %v3285
  %v3413 = vsub.f32 %v2004, %v3285
  %v3414 = vsub.f32 %v2008, %v3286
  %v3415 = vsub.f32 %v2010, %v3286
  %v3416 = vsub.f32 %v2014, %v3287
  %v3417 = vsub.f32 %v2016, %v3287
  %v3418 = vsub.f32 %v2020, %v3288
  %v3419 = vsub.f32 %v2022, %v3288
  %v3420 = vsub.f32 %v2026, %v3289
  %v3421 = vsub.f32 %v2028, %v3289
  %v3422 = vsub.f32 %v2032, %v3290
  %v3423 = vsub.f32 %v2034, %v3290
  %v3424 = vsub.f32 %v2038, %v3291
  %v3425 = vsub.f32 %v2040, %v3291
  %v3426 = vsub.f32 %v2044, %v3292
  %v3427 = vsub.f32 %v2046, %v3292
  %v3428 = vsub.f32 %v2050, %v3293
  %v3429 = vsub.f32 %v2052, %v3293
  %v3430 = vsub.f32 %v2056, %v3294
  %v3431 = vsub.f32 %v2058, %v3294
  %v3432 = vsub.f32 %v2062, %v3295
  %v3433 = vsub.f32 %v2064, %v3295
  %v3434 = vsub.f32 %v2068, %v3296
  %v3435 = vsub.f32 %v2070, %v3296
  %v3436 = vsub.f32 %v2074, %v3297
  %v3437 = vsub.f32 %v2076, %v3297
  %v3438 = vsub.f32 %v2080, %v3298
  %v3439 = vsub.f32 %v2082, %v3298
  %v3440 = vsub.f32 %v2086, %v3299
  %v3441 = vsub.f32 %v2088, %v3299
  %v3442 = vsub.f32 %v2092, %v3300
  %v3443 = vsub.f32 %v2094, %v3300
  %v3444 = vsub.f32 %v2098, %v3301
  %v3445 = vsub.f32 %v2100, %v3301
  %v3446 = vsub.f32 %v2104, %v3302
  %v3447 = vsub.f32 %v2106, %v3302
  %v3448 = vsub.f32 %v2110, %v3303
  %v3449 = vsub.f32 %v2112, %v3303
  %v3450 = vsub.f32 %v2116, %v3304
  %v3451 = vsub.f32 %v2118, %v3304
  %v3452 = vsub.f32 %v2122, %v3305
  %v3453 = vsub.f32 %v2124, %v3305
  %v3454 = vsub.f32 %v2128, %v3306
  %v3455 = vsub.f32 %v2130, %v3306
  %v3456 = vsub.f32 %v2134, %v3307
  %v3457 = vsub.f32 %v2136, %v3307
  %v3458 = vsub.f32 %v2140, %v3308
  %v3459 = vsub.f32 %v2142, %v3308
  %v3460 = vsub.f32 %v2146, %v3309
  %v3461 = vsub.f32 %v2148, %v3309
  %v3462 = vsub.f32 %v2152, %v3310
  %v3463 = vsub.f32 %v2154, %v3310
  %v3464 = vsub.f32 %v2158, %v3311
  %v3465 = vsub.f32 %v2160, %v3311
  %v3466 = vsub.f32 %v2164, %v3312
  %v3467 = vsub.f32 %v2166, %v3312
  %v3468 = vsub.f32 %v2170, %v3313
  %v3469 = vsub.f32 %v2172, %v3313
  %v3470 = vsub.f32 %v2176, %v3314
  %v3471 = vsub.f32 %v2178, %v3314
  %v3472 = vsub.f32 %v2182, %v3315
  %v3473 = vsub.f32 %v2184, %v3315
  %v3474 = vsub.f32 %v2188, %v3316
  %v3475 = vsub.f32 %v2190, %v3316
  %v3476 = vsub.f32 %v2194, %v3317
  %v3477 = vsub.f32 %v2196, %v3317
  %v3478 = vsub.f32 %v2200, %v3318
  %v3479 = vsub.f32 %v2202, %v3318
  %v3480 = vsub.f32 %v2206, %v3319
  %v3481 = vsub.f32 %v2208, %v3319
  %v3482 = vsub.f32 %v2212, %v3320
  %v3483 = vsub.f32 %v2214, %v3320
  %v3484 = vsub.f32 %v2218, %v3321
  %v3485 = vsub.f32 %v2220, %v3321
  %v3486 = vsub.f32 %v2224, %v3322
  %v3487 = vsub.f32 %v2226, %v3322
  %v3488 = vsub.f32 %v2230, %v3323
  %v3489 = vsub.f32 %v2232, %v3323
  %v3490 = vsub.f32 %v2236, %v3324
  %v3491 = vsub.f32 %v2238, %v3324
  %v3492 = vsub.f32 %v2242, %v3325
  %v3493 = vsub.f32 %v2244, %v3325
  %v3494 = vsub.f32 %v2248, %v3326
  %v3495 = vsub.f32 %v2250, %v3326
  %v3496 = vsub.f32 %v2254, %v3327
  %v3497 = vsub.f32 %v2256, %v3327
  %v3498 = vsub.f32 %v2260, %v3328
  %v3499 = vsub.f32 %v2262, %v3328
  %v3500 = vsub.f32 %v2266, %v3329
  %v3501 = vsub.f32 %v2268, %v3329
  %v3502 = vsub.f32 %v2272, %v3330
  %v3503 = vsub.f32 %v2274, %v3330
  %v3504 = vsub.f32 %v2278, %v3331
  %v3505 = vsub.f32 %v2280, %v3331
  %v3506 = vsub.f32 %v2284, %v3332
  %v3507 = vsub.f32 %v2286, %v3332
  %v3508 = vsub.f32 %v2290, %v3333
  %v3509 = vsub.f32 %v2292, %v3333
  %v3510 = vsub.f32 %v2296, %v3334
  %v3511 = vsub.f32 %v2298, %v3334
  %v3512 = vsub.f32 %v2302, %v3335
  %v3513 = vsub.f32 %v2304, %v3335
  %v3514 = vsub.f32 %v2308, %v3336
  %v3515 = vsub.f32 %v2310, %v3336
  %v3516 = vsub.f32 %v2314, %v3337
  %v3517 = vsub.f32 %v2316, %v3337
  %v3518 = vsub.f32 %v2320, %v3338
  %v3519 = vsub.f32 %v2322, %v3338
  %v3520 = vsub.f32 %v2326, %v3339
  %v3521 = vsub.f32 %v2328, %v3339
  %v3522 = vsub.f32 %v2332, %v3340
  %v3523 = vsub.f32 %v2334, %v3340
  %v3524 = vsub.f32 %v2338, %v3341
  %v3525 = vsub.f32 %v2340, %v3341
  %v3526 = vsub.f32 %v2344, %v3342
  %v3527 = vsub.f32 %v2346, %v3342
  %v3528 = vsub.f32 %v2350, %v3343
  %v3529 = vsub.f32 %v2352, %v3343
  %v3530 = vsub.f32 %v2356, %v3344
  %v3531 = vsub.f32 %v2358, %v3344
  %v3532 = vsub.f32 %v2362, %v3345
  %v3533 = vsub.f32 %v2364, %v3345
  %v3534 = vsub.f32 %v2368, %v3346
  %v3535 = vsub.f32 %v2370, %v3346
  %v3536 = vsub.f32 %v2374, %v3347
  %v3537 = vsub.f32 %v2376, %v3347
  %v3538 = vsub.f32 %v2380, %v3348
  %v3539 = vsub.f32 %v2382, %v3348
  %v3540 = vsub.f32 %v2386, %v3349
  %v3541 = vsub.f32 %v2388, %v3349
  %v3542 = vsub.f32 %v2392, %v3350
  %v3543 = vsub.f32 %v2394, %v3350
  %v3544 = vsub.f32 %v2398, %v3351
  %v3545 = vsub.f32 %v2400, %v3351
  %v3546 = vsub.f32 %v2404, %v3352
  %v3547 = vsub.f32 %v2406, %v3352
  %v3548 = vsub.f32 %v2410, %v3353
  %v3549 = vsub.f32 %v2412, %v3353
  %v3550 = vsub.f32 %v2416, %v3354
  %v3551 = vsub.f32 %v2418, %v3354
  %v3552 = vsub.f32 %v2422, %v3355
  %v3553 = vsub.f32 %v2424, %v3355
  %v3554 = vsub.f32 %v2428, %v3356
  %v3555 = vsub.f32 %v2430, %v3356
  %v3556 = vsub.f32 %v2434, %v3357
  %v3557 = vsub.f32 %v2436, %v3357
  %v3558 = vsub.f32 %v2440, %v3358
  %v3559 = vsub.f32 %v2442, %v3358
  %v3560 = vsub.f32 %v2446, %v3359
  %v3561 = vsub.f32 %v2448, %v3359
  %v3562 = vsub.f32 %v2452, %v3360
  %v3563 = vsub.f32 %v2454, %v3360
  %v3564 = vsub.f32 %v2458, %v3361
  %v3565 = vsub.f32 %v2460, %v3361
  %v3566 = vsub.f32 %v2464, %v3362
  %v3567 = vsub.f32 %v2466, %v3362
  %v3568 = vsub.f32 %v2470, %v3363
  %v3569 = vsub.f32 %v2472, %v3363
  %v3570 = vsub.f32 %v2476, %v3364
  %v3571 = vsub.f32 %v2478, %v3364
  %v3572 = vsub.f32 %v2482, %v3365
  %v3573 = vsub.f32 %v2484, %v3365
  %v3574 = vsub.f32 %v2488, %v3366
  %v3575 = vsub.f32 %v2490, %v3366
  %v3576 = vsub.f32 %v2494, %v3367
  %v3577 = vsub.f32 %v2496, %v3367
  %v3578 = vsub.f32 %v2500, %v3368
  %v3579 = vsub.f32 %v2502, %v3368
  %v3580 = vsub.f32 %v2506, %v3369
  %v3581 = vsub.f32 %v2508, %v3369
  %v3582 = vsub.f32 %v2512, %v3370
  %v3583 = vsub.f32 %v2514, %v3370
  %v3584 = vsub.f32 %v2518, %v3371
  %v3585 = vsub.f32 %v2520, %v3371
  %v3586 = vsub.f32 %v2524, %v3372
  %v3587 = vsub.f32 %v2526, %v3372
  %v3588 = vsub.f32 %v2530, %v3373
  %v3589 = vsub.f32 %v2532, %v3373
  %v3590 = vsub.f32 %v2536, %v3374
  %v3591 = vsub.f32 %v2538, %v3374
  %v3592 = vsub.f32 %v2542, %v3375
  %v3593 = vsub.f32 %v2544, %v3375
  %v3594 = vsub.f32 %v2548, %v3376
  %v3595 = vsub.f32 %v2550, %v3376
  %v3596 = vsub.f32 %v2554, %v3377
  %v3597 = vsub.f32 %v2556, %v3377
  %v3598 = vsub.f32 %v2560, %v3378
  %v3599 = vsub.f32 %v2562, %v3378
  %v3600 = vsub.f32 %v2566, %v3379
  %v3601 = vsub.f32 %v2568, %v3379
  %v3602 = vsub.f32 %v2572, %v3380
  %v3603 = vsub.f32 %v2574, %v3380
  %v3604 = vsub.f32 %v2578, %v3381
  %v3605 = vsub.f32 %v2580, %v3381
  %v3606 = vsub.f32 %v2584, %v3382
  %v3607 = vsub.f32 %v2586, %v3382
  %v3608 = vsub.f32 %v2590, %v3383
  %v3609 = vsub.f32 %v2592, %v3383
  %v3610 = vsub.f32 %v2596, %v3384
  %v3611 = vsub.f32 %v2598, %v3384
  %v3612 = vsub.f32 %v2602, %v3385
  %v3613 = vsub.f32 %v2604, %v3385
  %v3614 = vsub.f32 %v2608, %v3386
  %v3615 = vsub.f32 %v2610, %v3386
  %v3616 = vsub.f32 %v2614, %v3387
  %v3617 = vsub.f32 %v2616, %v3387
  %v3618 = vsub.f32 %v2620, %v3388
  %v3619 = vsub.f32 %v2622, %v3388
  %v3620 = vsub.f32 %v2626, %v3389
  %v3621 = vsub.f32 %v2628, %v3389
  %v3622 = vsub.f32 %v2632, %v3390
  %v3623 = vsub.f32 %v2634, %v3390
  %v3624 = vsub.f32 %v2638, %v3391
  %v3625 = vsub.f32 %v2640, %v3391
  %v3626 = vsub.f32 %v2644, %v3392
  %v3627 = vsub.f32 %v2646, %v3392
  %v3628 = vsub.f32 %v2650, %v3393
  %v3629 = vsub.f32 %v2652, %v3393
  %v3630 = vsub.f32 %v2656, %v3394
  %v3631 = vsub.f32 %v2658, %v3394
  %v3632 = vsub.f32 %v2662, %v3395
  %v3633 = vsub.f32 %v2664, %v3395
  %v3634 = vsub.f32 %v2668, %v3396
  %v3635 = vsub.f32 %v2670, %v3396
  %v3636 = vsub.f32 %v2674, %v3397
  %v3637 = vsub.f32 %v2676, %v3397
  %v3638 = vmul.f32 %v3398, %v3398
  %v3639 = vmul.f32 %v3399, %v3399
  %v3640 = vmul.f32 %v3400, %v3400
  %v3641 = vmul.f32 %v3401, %v3401
  %v3642 = vmul.f32 %v3402, %v3402
  %v3643 = vmul.f32 %v3403, %v3403
  %v3644 = vmul.f32 %v3404, %v3404
  %v3645 = vmul.f32 %v3405, %v3405
  %v3646 = vmul.f32 %v3406, %v3406
  %v3647 = vmul.f32 %v3407, %v3407
  %v3648 = vmul.f32 %v3408, %v3408
  %v3649 = vmul.f32 %v3409, %v3409
  %v3650 = vmul.f32 %v3410, %v3410
  %v3651 = vmul.f32 %v3411, %v3411
  %v3652 = vmul.f32 %v3412, %v3412
  %v3653 = vmul.f32 %v3413, %v3413
  %v3654 = vmul.f32 %v3414, %v3414
  %v3655 = vmul.f32 %v3415, %v3415
  %v3656 = vmul.f32 %v3416, %v3416
  %v3657 = vmul.f32 %v3417, %v3417
  %v3658 = vmul.f32 %v3418, %v3418
  %v3659 = vmul.f32 %v3419, %v3419
  %v3660 = vmul.f32 %v3420, %v3420
  %v3661 = vmul.f32 %v3421, %v3421
  %v3662 = vmul.f32 %v3422, %v3422
  %v3663 = vmul.f32 %v3423, %v3423
  %v3664 = vmul.f32 %v3424, %v3424
  %v3665 = vmul.f32 %v3425, %v3425
  %v3666 = vmul.f32 %v3426, %v3426
  %v3667 = vmul.f32 %v3427, %v3427
  %v3668 = vmul.f32 %v3428, %v3428
  %v3669 = vmul.f32 %v3429, %v3429
  %v3670 = vmul.f32 %v3430, %v3430
  %v3671 = vmul.f32 %v3431, %v3431
  %v3672 = vmul.f32 %v3432, %v3432
  %v3673 = vmul.f32 %v3433, %v3433
  %v3674 = vmul.f32 %v3434, %v3434
  %v3675 = vmul.f32 %v3435, %v3435
  %v3676 = vmul.f32 %v3436, %v3436
  %v3677 = vmul.f32 %v3437, %v3437
  %v3678 = vmul.f32 %v3438, %v3438
  %v3679 = vmul.f32 %v3439, %v3439
  %v3680 = vmul.f32 %v3440, %v3440
  %v3681 = vmul.f32 %v3441, %v3441
  %v3682 = vmul.f32 %v3442, %v3442
  %v3683 = vmul.f32 %v3443, %v3443
  %v3684 = vmul.f32 %v3444, %v3444
  %v3685 = vmul.f32 %v3445, %v3445
  %v3686 = vmul.f32 %v3446, %v3446
  %v3687 = vmul.f32 %v3447, %v3447
  %v3688 = vmul.f32 %v3448, %v3448
  %v3689 = vmul.f32 %v3449, %v3449
  %v3690 = vmul.f32 %v3450, %v3450
  %v3691 = vmul.f32 %v3451, %v3451
  %v3692 = vmul.f32 %v3452, %v3452
  %v3693 = vmul.f32 %v3453, %v3453
  %v3694 = vmul.f32 %v3454, %v3454
  %v3695 = vmul.f32 %v3455, %v3455
  %v3696 = vmul.f32 %v3456, %v3456
  %v3697 = vmul.f32 %v3457, %v3457
  %v3698 = vmul.f32 %v3458, %v3458
  %v3699 = vmul.f32 %v3459, %v3459
  %v3700 = vmul.f32 %v3460, %v3460
  %v3701 = vmul.f32 %v3461, %v3461
  %v3702 = vmul.f32 %v3462, %v3462
  %v3703 = vmul.f32 %v3463, %v3463
  %v3704 = vmul.f32 %v3464, %v3464
  %v3705 = vmul.f32 %v3465, %v3465
  %v3706 = vmul.f32 %v3466, %v3466
  %v3707 = vmul.f32 %v3467, %v3467
  %v3708 = vmul.f32 %v3468, %v3468
  %v3709 = vmul.f32 %v3469, %v3469
  %v3710 = vmul.f32 %v3470, %v3470
  %v3711 = vmul.f32 %v3471, %v3471
  %v3712 = vmul.f32 %v3472, %v3472
  %v3713 = vmul.f32 %v3473, %v3473
  %v3714 = vmul.f32 %v3474, %v3474
  %v3715 = vmul.f32 %v3475, %v3475
  %v3716 = vmul.f32 %v3476, %v3476
  %v3717 = vmul.f32 %v3477, %v3477
  %v3718 = vmul.f32 %v3478, %v3478
  %v3719 = vmul.f32 %v3479, %v3479
  %v3720 = vmul.f32 %v3480, %v3480
  %v3721 = vmul.f32 %v3481, %v3481
  %v3722 = vmul.f32 %v3482, %v3482
  %v3723 = vmul.f32 %v3483, %v3483
  %v3724 = vmul.f32 %v3484, %v3484
  %v3725 = vmul.f32 %v3485, %v3485
  %v3726 = vmul.f32 %v3486, %v3486
  %v3727 = vmul.f32 %v3487, %v3487
  %v3728 = vmul.f32 %v3488, %v3488
  %v3729 = vmul.f32 %v3489, %v3489
  %v3730 = vmul.f32 %v3490, %v3490
  %v3731 = vmul.f32 %v3491, %v3491
  %v3732 = vmul.f32 %v3492, %v3492
  %v3733 = vmul.f32 %v3493, %v3493
  %v3734 = vmul.f32 %v3494, %v3494
  %v3735 = vmul.f32 %v3495, %v3495
  %v3736 = vmul.f32 %v3496, %v3496
  %v3737 = vmul.f32 %v3497, %v3497
  %v3738 = vmul.f32 %v3498, %v3498
  %v3739 = vmul.f32 %v3499, %v3499
  %v3740 = vmul.f32 %v3500, %v3500
  %v3741 = vmul.f32 %v3501, %v3501
  %v3742 = vmul.f32 %v3502, %v3502
  %v3743 = vmul.f32 %v3503, %v3503
  %v3744 = vmul.f32 %v3504, %v3504
  %v3745 = vmul.f32 %v3505, %v3505
  %v3746 = vmul.f32 %v3506, %v3506
  %v3747 = vmul.f32 %v3507, %v3507
  %v3748 = vmul.f32 %v3508, %v3508
  %v3749 = vmul.f32 %v3509, %v3509
  %v3750 = vmul.f32 %v3510, %v3510
  %v3751 = vmul.f32 %v3511, %v3511
  %v3752 = vmul.f32 %v3512, %v3512
  %v3753 = vmul.f32 %v3513, %v3513
  %v3754 = vmul.f32 %v3514, %v3514
  %v3755 = vmul.f32 %v3515, %v3515
  %v3756 = vmul.f32 %v3516, %v3516
  %v3757 = vmul.f32 %v3517, %v3517
  %v3758 = vmul.f32 %v3518, %v3518
  %v3759 = vmul.f32 %v3519, %v3519
  %v3760 = vmul.f32 %v3520, %v3520
  %v3761 = vmul.f32 %v3521, %v3521
  %v3762 = vmul.f32 %v3522, %v3522
  %v3763 = vmul.f32 %v3523, %v3523
  %v3764 = vmul.f32 %v3524, %v3524
  %v3765 = vmul.f32 %v3525, %v3525
  %v3766 = vmul.f32 %v3526, %v3526
  %v3767 = vmul.f32 %v3527, %v3527
  %v3768 = vmul.f32 %v3528, %v3528
  %v3769 = vmul.f32 %v3529, %v3529
  %v3770 = vmul.f32 %v3530, %v3530
  %v3771 = vmul.f32 %v3531, %v3531
  %v3772 = vmul.f32 %v3532, %v3532
  %v3773 = vmul.f32 %v3533, %v3533
  %v3774 = vmul.f32 %v3534, %v3534
  %v3775 = vmul.f32 %v3535, %v3535
  %v3776 = vmul.f32 %v3536, %v3536
  %v3777 = vmul.f32 %v3537, %v3537
  %v3778 = vmul.f32 %v3538, %v3538
  %v3779 = vmul.f32 %v3539, %v3539
  %v3780 = vmul.f32 %v3540, %v3540
  %v3781 = vmul.f32 %v3541, %v3541
  %v3782 = vmul.f32 %v3542, %v3542
  %v3783 = vmul.f32 %v3543, %v3543
  %v3784 = vmul.f32 %v3544, %v3544
  %v3785 = vmul.f32 %v3545, %v3545
  %v3786 = vmul.f32 %v3546, %v3546
  %v3787 = vmul.f32 %v3547, %v3547
  %v3788 = vmul.f32 %v3548, %v3548
  %v3789 = vmul.f32 %v3549, %v3549
  %v3790 = vmul.f32 %v3550, %v3550
  %v3791 = vmul.f32 %v3551, %v3551
  %v3792 = vmul.f32 %v3552, %v3552
  %v3793 = vmul.f32 %v3553, %v3553
  %v3794 = vmul.f32 %v3554, %v3554
  %v3795 = vmul.f32 %v3555, %v3555
  %v3796 = vmul.f32 %v3556, %v3556
  %v3797 = vmul.f32 %v3557, %v3557
  %v3798 = vmul.f32 %v3558, %v3558
  %v3799 = vmul.f32 %v3559, %v3559
  %v3800 = vmul.f32 %v3560, %v3560
  %v3801 = vmul.f32 %v3561, %v3561
  %v3802 = vmul.f32 %v3562, %v3562
  %v3803 = vmul.f32 %v3563, %v3563
  %v3804 = vmul.f32 %v3564, %v3564
  %v3805 = vmul.f32 %v3565, %v3565
  %v3806 = vmul.f32 %v3566, %v3566
  %v3807 = vmul.f32 %v3567, %v3567
  %v3808 = vmul.f32 %v3568, %v3568
  %v3809 = vmul.f32 %v3569, %v3569
  %v3810 = vmul.f32 %v3570, %v3570
  %v3811 = vmul.f32 %v3571, %v3571
  %v3812 = vmul.f32 %v3572, %v3572
  %v3813 = vmul.f32 %v3573, %v3573
  %v3814 = vmul.f32 %v3574, %v3574
  %v3815 = vmul.f32 %v3575, %v3575
  %v3816 = vmul.f32 %v3576, %v3576
  %v3817 = vmul.f32 %v3577, %v3577
  %v3818 = vmul.f32 %v3578, %v3578
  %v3819 = vmul.f32 %v3579, %v3579
  %v3820 = vmul.f32 %v3580, %v3580
  %v3821 = vmul.f32 %v3581, %v3581
  %v3822 = vmul.f32 %v3582, %v3582
  %v3823 = vmul.f32 %v3583, %v3583
  %v3824 = vmul.f32 %v3584, %v3584
  %v3825 = vmul.f32 %v3585, %v3585
  %v3826 = vmul.f32 %v3586, %v3586
  %v3827 = vmul.f32 %v3587, %v3587
  %v3828 = vmul.f32 %v3588, %v3588
  %v3829 = vmul.f32 %v3589, %v3589
  %v3830 = vmul.f32 %v3590, %v3590
  %v3831 = vmul.f32 %v3591, %v3591
  %v3832 = vmul.f32 %v3592, %v3592
  %v3833 = vmul.f32 %v3593, %v3593
  %v3834 = vmul.f32 %v3594, %v3594
  %v3835 = vmul.f32 %v3595, %v3595
  %v3836 = vmul.f32 %v3596, %v3596
  %v3837 = vmul.f32 %v3597, %v3597
  %v3838 = vmul.f32 %v3598, %v3598
  %v3839 = vmul.f32 %v3599, %v3599
  %v3840 = vmul.f32 %v3600, %v3600
  %v3841 = vmul.f32 %v3601, %v3601
  %v3842 = vmul.f32 %v3602, %v3602
  %v3843 = vmul.f32 %v3603, %v3603
  %v3844 = vmul.f32 %v3604, %v3604
  %v3845 = vmul.f32 %v3605, %v3605
  %v3846 = vmul.f32 %v3606, %v3606
  %v3847 = vmul.f32 %v3607, %v3607
  %v3848 = vmul.f32 %v3608, %v3608
  %v3849 = vmul.f32 %v3609, %v3609
  %v3850 = vmul.f32 %v3610, %v3610
  %v3851 = vmul.f32 %v3611, %v3611
  %v3852 = vmul.f32 %v3612, %v3612
  %v3853 = vmul.f32 %v3613, %v3613
  %v3854 = vmul.f32 %v3614, %v3614
  %v3855 = vmul.f32 %v3615, %v3615
  %v3856 = vmul.f32 %v3616, %v3616
  %v3857 = vmul.f32 %v3617, %v3617
  %v3858 = vmul.f32 %v3618, %v3618
  %v3859 = vmul.f32 %v3619, %v3619
  %v3860 = vmul.f32 %v3620, %v3620
  %v3861 = vmul.f32 %v3621, %v3621
  %v3862 = vmul.f32 %v3622, %v3622
  %v3863 = vmul.f32 %v3623, %v3623
  %v3864 = vmul.f32 %v3624, %v3624
  %v3865 = vmul.f32 %v3625, %v3625
  %v3866 = vmul.f32 %v3626, %v3626
  %v3867 = vmul.f32 %v3627, %v3627
  %v3868 = vmul.f32 %v3628, %v3628
  %v3869 = vmul.f32 %v3629, %v3629
  %v3870 = vmul.f32 %v3630, %v3630
  %v3871 = vmul.f32 %v3631, %v3631
  %v3872 = vmul.f32 %v3632, %v3632
  %v3873 = vmul.f32 %v3633, %v3633
  %v3874 = vmul.f32 %v3634, %v3634
  %v3875 = vmul.f32 %v3635, %v3635
  %v3876 = vmul.f32 %v3636, %v3636
  %v3877 = vmul.f32 %v3637, %v3637
  %v3878 = vsel %vm671, %v3639, 0.0
  %v3879 = vadd.f32 %v3638, %v3878
  %3880 = vadd.xlane.f32.xlu0 %v3879
  %v3881 = vpop.xlane.xlu0 %3880
  %v3882 = vsel %vm671, %v3641, 0.0
  %v3883 = vadd.f32 %v3640, %v3882
  %3884 = vadd.xlane.f32.xlu0 %v3883
  %v3885 = vpop.xlane.xlu0 %3884
  %v3886 = vsel %vm671, %v3643, 0.0
  %v3887 = vadd.f32 %v3642, %v3886
  %3888 = vadd.xlane.f32.xlu0 %v3887
  %v3889 = vpop.xlane.xlu0 %3888
  %v3890 = vsel %vm671, %v3645, 0.0
  %v3891 = vadd.f32 %v3644, %v3890
  %3892 = vadd.xlane.f32.xlu0 %v3891
  %v3893 = vpop.xlane.xlu0 %3892
  %v3894 = vsel %vm671, %v3647, 0.0
  %v3895 = vadd.f32 %v3646, %v3894
  %3896 = vadd.xlane.f32.xlu0 %v3895
  %v3897 = vpop.xlane.xlu0 %3896
  %v3898 = vsel %vm671, %v3649, 0.0
  %v3899 = vadd.f32 %v3648, %v3898
  %3900 = vadd.xlane.f32.xlu0 %v3899
  %v3901 = vpop.xlane.xlu0 %3900
  %v3902 = vsel %vm671, %v3651, 0.0
  %v3903 = vadd.f32 %v3650, %v3902
  %3904 = vadd.xlane.f32.xlu0 %v3903
  %v3905 = vpop.xlane.xlu0 %3904
  %v3906 = vsel %vm671, %v3653, 0.0
  %v3907 = vadd.f32 %v3652, %v3906
  %3908 = vadd.xlane.f32.xlu0 %v3907
  %v3909 = vpop.xlane.xlu0 %3908
  %v3910 = vsel %vm671, %v3655, 0.0
  %v3911 = vadd.f32 %v3654, %v3910
  %3912 = vadd.xlane.f32.xlu0 %v3911
  %v3913 = vpop.xlane.xlu0 %3912
  %v3914 = vsel %vm671, %v3657, 0.0
  %v3915 = vadd.f32 %v3656, %v3914
  %3916 = vadd.xlane.f32.xlu0 %v3915
  %v3917 = vpop.xlane.xlu0 %3916
  %v3918 = vsel %vm671, %v3659, 0.0
  %v3919 = vadd.f32 %v3658, %v3918
  %3920 = vadd.xlane.f32.xlu0 %v3919
  %v3921 = vpop.xlane.xlu0 %3920
  %v3922 = vsel %vm671, %v3661, 0.0
  %v3923 = vadd.f32 %v3660, %v3922
  %3924 = vadd.xlane.f32.xlu0 %v3923
  %v3925 = vpop.xlane.xlu0 %3924
  %v3926 = vsel %vm671, %v3663, 0.0
  %v3927 = vadd.f32 %v3662, %v3926
  %3928 = vadd.xlane.f32.xlu0 %v3927
  %v3929 = vpop.xlane.xlu0 %3928
  %v3930 = vsel %vm671, %v3665, 0.0
  %v3931 = vadd.f32 %v3664, %v3930
  %3932 = vadd.xlane.f32.xlu0 %v3931
  %v3933 = vpop.xlane.xlu0 %3932
  %v3934 = vsel %vm671, %v3667, 0.0
  %v3935 = vadd.f32 %v3666, %v3934
  %3936 = vadd.xlane.f32.xlu0 %v3935
  %v3937 = vpop.xlane.xlu0 %3936
  %v3938 = vsel %vm671, %v3669, 0.0
  %v3939 = vadd.f32 %v3668, %v3938
  %3940 = vadd.xlane.f32.xlu0 %v3939
  %v3941 = vpop.xlane.xlu0 %3940
  %v3942 = vsel %vm671, %v3671, 0.0
  %v3943 = vadd.f32 %v3670, %v3942
  %3944 = vadd.xlane.f32.xlu0 %v3943
  %v3945 = vpop.xlane.xlu0 %3944
  %v3946 = vsel %vm671, %v3673, 0.0
  %v3947 = vadd.f32 %v3672, %v3946
  %3948 = vadd.xlane.f32.xlu0 %v3947
  %v3949 = vpop.xlane.xlu0 %3948
  %v3950 = vsel %vm671, %v3675, 0.0
  %v3951 = vadd.f32 %v3674, %v3950
  %3952 = vadd.xlane.f32.xlu0 %v3951
  %v3953 = vpop.xlane.xlu0 %3952
  %v3954 = vsel %vm671, %v3677, 0.0
  %v3955 = vadd.f32 %v3676, %v3954
  %3956 = vadd.xlane.f32.xlu0 %v3955
  %v3957 = vpop.xlane.xlu0 %3956
  %v3958 = vsel %vm671, %v3679, 0.0
  %v3959 = vadd.f32 %v3678, %v3958
  %3960 = vadd.xlane.f32.xlu0 %v3959
  %v3961 = vpop.xlane.xlu0 %3960
  %v3962 = vsel %vm671, %v3681, 0.0
  %v3963 = vadd.f32 %v3680, %v3962
  %3964 = vadd.xlane.f32.xlu0 %v3963
  %v3965 = vpop.xlane.xlu0 %3964
  %v3966 = vsel %vm671, %v3683, 0.0
  %v3967 = vadd.f32 %v3682, %v3966
  %3968 = vadd.xlane.f32.xlu0 %v3967
  %v3969 = vpop.xlane.xlu0 %3968
  %v3970 = vsel %vm671, %v3685, 0.0
  %v3971 = vadd.f32 %v3684, %v3970
  %3972 = vadd.xlane.f32.xlu0 %v3971
  %v3973 = vpop.xlane.xlu0 %3972
  %v3974 = vsel %vm671, %v3687, 0.0
  %v3975 = vadd.f32 %v3686, %v3974
  %3976 = vadd.xlane.f32.xlu0 %v3975
  %v3977 = vpop.xlane.xlu0 %3976
  %v3978 = vsel %vm671, %v3689, 0.0
  %v3979 = vadd.f32 %v3688, %v3978
  %3980 = vadd.xlane.f32.xlu0 %v3979
  %v3981 = vpop.xlane.xlu0 %3980
  %v3982 = vsel %vm671, %v3691, 0.0
  %v3983 = vadd.f32 %v3690, %v3982
  %3984 = vadd.xlane.f32.xlu0 %v3983
  %v3985 = vpop.xlane.xlu0 %3984
  %v3986 = vsel %vm671, %v3693, 0.0
  %v3987 = vadd.f32 %v3692, %v3986
  %3988 = vadd.xlane.f32.xlu0 %v3987
  %v3989 = vpop.xlane.xlu0 %3988
  %v3990 = vsel %vm671, %v3695, 0.0
  %v3991 = vadd.f32 %v3694, %v3990
  %3992 = vadd.xlane.f32.xlu0 %v3991
  %v3993 = vpop.xlane.xlu0 %3992
  %v3994 = vsel %vm671, %v3697, 0.0
  %v3995 = vadd.f32 %v3696, %v3994
  %3996 = vadd.xlane.f32.xlu0 %v3995
  %v3997 = vpop.xlane.xlu0 %3996
  %v3998 = vsel %vm671, %v3699, 0.0
  %v3999 = vadd.f32 %v3698, %v3998
  %4000 = vadd.xlane.f32.xlu0 %v3999
  %v4001 = vpop.xlane.xlu0 %4000
  %v4002 = vsel %vm671, %v3701, 0.0
  %v4003 = vadd.f32 %v3700, %v4002
  %4004 = vadd.xlane.f32.xlu0 %v4003
  %v4005 = vpop.xlane.xlu0 %4004
  %v4006 = vsel %vm671, %v3703, 0.0
  %v4007 = vadd.f32 %v3702, %v4006
  %4008 = vadd.xlane.f32.xlu0 %v4007
  %v4009 = vpop.xlane.xlu0 %4008
  %v4010 = vsel %vm671, %v3705, 0.0
  %v4011 = vadd.f32 %v3704, %v4010
  %4012 = vadd.xlane.f32.xlu0 %v4011
  %v4013 = vpop.xlane.xlu0 %4012
  %v4014 = vsel %vm671, %v3707, 0.0
  %v4015 = vadd.f32 %v3706, %v4014
  %4016 = vadd.xlane.f32.xlu0 %v4015
  %v4017 = vpop.xlane.xlu0 %4016
  %v4018 = vsel %vm671, %v3709, 0.0
  %v4019 = vadd.f32 %v3708, %v4018
  %4020 = vadd.xlane.f32.xlu0 %v4019
  %v4021 = vpop.xlane.xlu0 %4020
  %v4022 = vsel %vm671, %v3711, 0.0
  %v4023 = vadd.f32 %v3710, %v4022
  %4024 = vadd.xlane.f32.xlu0 %v4023
  %v4025 = vpop.xlane.xlu0 %4024
  %v4026 = vsel %vm671, %v3713, 0.0
  %v4027 = vadd.f32 %v3712, %v4026
  %4028 = vadd.xlane.f32.xlu0 %v4027
  %v4029 = vpop.xlane.xlu0 %4028
  %v4030 = vsel %vm671, %v3715, 0.0
  %v4031 = vadd.f32 %v3714, %v4030
  %4032 = vadd.xlane.f32.xlu0 %v4031
  %v4033 = vpop.xlane.xlu0 %4032
  %v4034 = vsel %vm671, %v3717, 0.0
  %v4035 = vadd.f32 %v3716, %v4034
  %4036 = vadd.xlane.f32.xlu0 %v4035
  %v4037 = vpop.xlane.xlu0 %4036
  %v4038 = vsel %vm671, %v3719, 0.0
  %v4039 = vadd.f32 %v3718, %v4038
  %4040 = vadd.xlane.f32.xlu0 %v4039
  %v4041 = vpop.xlane.xlu0 %4040
  %v4042 = vsel %vm671, %v3721, 0.0
  %v4043 = vadd.f32 %v3720, %v4042
  %4044 = vadd.xlane.f32.xlu0 %v4043
  %v4045 = vpop.xlane.xlu0 %4044
  %v4046 = vsel %vm671, %v3723, 0.0
  %v4047 = vadd.f32 %v3722, %v4046
  %4048 = vadd.xlane.f32.xlu0 %v4047
  %v4049 = vpop.xlane.xlu0 %4048
  %v4050 = vsel %vm671, %v3725, 0.0
  %v4051 = vadd.f32 %v3724, %v4050
  %4052 = vadd.xlane.f32.xlu0 %v4051
  %v4053 = vpop.xlane.xlu0 %4052
  %v4054 = vsel %vm671, %v3727, 0.0
  %v4055 = vadd.f32 %v3726, %v4054
  %4056 = vadd.xlane.f32.xlu0 %v4055
  %v4057 = vpop.xlane.xlu0 %4056
  %v4058 = vsel %vm671, %v3729, 0.0
  %v4059 = vadd.f32 %v3728, %v4058
  %4060 = vadd.xlane.f32.xlu0 %v4059
  %v4061 = vpop.xlane.xlu0 %4060
  %v4062 = vsel %vm671, %v3731, 0.0
  %v4063 = vadd.f32 %v3730, %v4062
  %4064 = vadd.xlane.f32.xlu0 %v4063
  %v4065 = vpop.xlane.xlu0 %4064
  %v4066 = vsel %vm671, %v3733, 0.0
  %v4067 = vadd.f32 %v3732, %v4066
  %4068 = vadd.xlane.f32.xlu0 %v4067
  %v4069 = vpop.xlane.xlu0 %4068
  %v4070 = vsel %vm671, %v3735, 0.0
  %v4071 = vadd.f32 %v3734, %v4070
  %4072 = vadd.xlane.f32.xlu0 %v4071
  %v4073 = vpop.xlane.xlu0 %4072
  %v4074 = vsel %vm671, %v3737, 0.0
  %v4075 = vadd.f32 %v3736, %v4074
  %4076 = vadd.xlane.f32.xlu0 %v4075
  %v4077 = vpop.xlane.xlu0 %4076
  %v4078 = vsel %vm671, %v3739, 0.0
  %v4079 = vadd.f32 %v3738, %v4078
  %4080 = vadd.xlane.f32.xlu0 %v4079
  %v4081 = vpop.xlane.xlu0 %4080
  %v4082 = vsel %vm671, %v3741, 0.0
  %v4083 = vadd.f32 %v3740, %v4082
  %4084 = vadd.xlane.f32.xlu0 %v4083
  %v4085 = vpop.xlane.xlu0 %4084
  %v4086 = vsel %vm671, %v3743, 0.0
  %v4087 = vadd.f32 %v3742, %v4086
  %4088 = vadd.xlane.f32.xlu0 %v4087
  %v4089 = vpop.xlane.xlu0 %4088
  %v4090 = vsel %vm671, %v3745, 0.0
  %v4091 = vadd.f32 %v3744, %v4090
  %4092 = vadd.xlane.f32.xlu0 %v4091
  %v4093 = vpop.xlane.xlu0 %4092
  %v4094 = vsel %vm671, %v3747, 0.0
  %v4095 = vadd.f32 %v3746, %v4094
  %4096 = vadd.xlane.f32.xlu0 %v4095
  %v4097 = vpop.xlane.xlu0 %4096
  %v4098 = vsel %vm671, %v3749, 0.0
  %v4099 = vadd.f32 %v3748, %v4098
  %4100 = vadd.xlane.f32.xlu0 %v4099
  %v4101 = vpop.xlane.xlu0 %4100
  %v4102 = vsel %vm671, %v3751, 0.0
  %v4103 = vadd.f32 %v3750, %v4102
  %4104 = vadd.xlane.f32.xlu0 %v4103
  %v4105 = vpop.xlane.xlu0 %4104
  %v4106 = vsel %vm671, %v3753, 0.0
  %v4107 = vadd.f32 %v3752, %v4106
  %4108 = vadd.xlane.f32.xlu0 %v4107
  %v4109 = vpop.xlane.xlu0 %4108
  %v4110 = vsel %vm671, %v3755, 0.0
  %v4111 = vadd.f32 %v3754, %v4110
  %4112 = vadd.xlane.f32.xlu0 %v4111
  %v4113 = vpop.xlane.xlu0 %4112
  %v4114 = vsel %vm671, %v3757, 0.0
  %v4115 = vadd.f32 %v3756, %v4114
  %4116 = vadd.xlane.f32.xlu0 %v4115
  %v4117 = vpop.xlane.xlu0 %4116
  %v4118 = vsel %vm671, %v3759, 0.0
  %v4119 = vadd.f32 %v3758, %v4118
  %4120 = vadd.xlane.f32.xlu0 %v4119
  %v4121 = vpop.xlane.xlu0 %4120
  %v4122 = vsel %vm671, %v3761, 0.0
  %v4123 = vadd.f32 %v3760, %v4122
  %4124 = vadd.xlane.f32.xlu0 %v4123
  %v4125 = vpop.xlane.xlu0 %4124
  %v4126 = vsel %vm671, %v3763, 0.0
  %v4127 = vadd.f32 %v3762, %v4126
  %4128 = vadd.xlane.f32.xlu0 %v4127
  %v4129 = vpop.xlane.xlu0 %4128
  %v4130 = vsel %vm671, %v3765, 0.0
  %v4131 = vadd.f32 %v3764, %v4130
  %4132 = vadd.xlane.f32.xlu0 %v4131
  %v4133 = vpop.xlane.xlu0 %4132
  %v4134 = vsel %vm671, %v3767, 0.0
  %v4135 = vadd.f32 %v3766, %v4134
  %4136 = vadd.xlane.f32.xlu0 %v4135
  %v4137 = vpop.xlane.xlu0 %4136
  %v4138 = vsel %vm671, %v3769, 0.0
  %v4139 = vadd.f32 %v3768, %v4138
  %4140 = vadd.xlane.f32.xlu0 %v4139
  %v4141 = vpop.xlane.xlu0 %4140
  %v4142 = vsel %vm671, %v3771, 0.0
  %v4143 = vadd.f32 %v3770, %v4142
  %4144 = vadd.xlane.f32.xlu0 %v4143
  %v4145 = vpop.xlane.xlu0 %4144
  %v4146 = vsel %vm671, %v3773, 0.0
  %v4147 = vadd.f32 %v3772, %v4146
  %4148 = vadd.xlane.f32.xlu0 %v4147
  %v4149 = vpop.xlane.xlu0 %4148
  %v4150 = vsel %vm671, %v3775, 0.0
  %v4151 = vadd.f32 %v3774, %v4150
  %4152 = vadd.xlane.f32.xlu0 %v4151
  %v4153 = vpop.xlane.xlu0 %4152
  %v4154 = vsel %vm671, %v3777, 0.0
  %v4155 = vadd.f32 %v3776, %v4154
  %4156 = vadd.xlane.f32.xlu0 %v4155
  %v4157 = vpop.xlane.xlu0 %4156
  %v4158 = vsel %vm671, %v3779, 0.0
  %v4159 = vadd.f32 %v3778, %v4158
  %4160 = vadd.xlane.f32.xlu0 %v4159
  %v4161 = vpop.xlane.xlu0 %4160
  %v4162 = vsel %vm671, %v3781, 0.0
  %v4163 = vadd.f32 %v3780, %v4162
  %4164 = vadd.xlane.f32.xlu0 %v4163
  %v4165 = vpop.xlane.xlu0 %4164
  %v4166 = vsel %vm671, %v3783, 0.0
  %v4167 = vadd.f32 %v3782, %v4166
  %4168 = vadd.xlane.f32.xlu0 %v4167
  %v4169 = vpop.xlane.xlu0 %4168
  %v4170 = vsel %vm671, %v3785, 0.0
  %v4171 = vadd.f32 %v3784, %v4170
  %4172 = vadd.xlane.f32.xlu0 %v4171
  %v4173 = vpop.xlane.xlu0 %4172
  %v4174 = vsel %vm671, %v3787, 0.0
  %v4175 = vadd.f32 %v3786, %v4174
  %4176 = vadd.xlane.f32.xlu0 %v4175
  %v4177 = vpop.xlane.xlu0 %4176
  %v4178 = vsel %vm671, %v3789, 0.0
  %v4179 = vadd.f32 %v3788, %v4178
  %4180 = vadd.xlane.f32.xlu0 %v4179
  %v4181 = vpop.xlane.xlu0 %4180
  %v4182 = vsel %vm671, %v3791, 0.0
  %v4183 = vadd.f32 %v3790, %v4182
  %4184 = vadd.xlane.f32.xlu0 %v4183
  %v4185 = vpop.xlane.xlu0 %4184
  %v4186 = vsel %vm671, %v3793, 0.0
  %v4187 = vadd.f32 %v3792, %v4186
  %4188 = vadd.xlane.f32.xlu0 %v4187
  %v4189 = vpop.xlane.xlu0 %4188
  %v4190 = vsel %vm671, %v3795, 0.0
  %v4191 = vadd.f32 %v3794, %v4190
  %4192 = vadd.xlane.f32.xlu0 %v4191
  %v4193 = vpop.xlane.xlu0 %4192
  %v4194 = vsel %vm671, %v3797, 0.0
  %v4195 = vadd.f32 %v3796, %v4194
  %4196 = vadd.xlane.f32.xlu0 %v4195
  %v4197 = vpop.xlane.xlu0 %4196
  %v4198 = vsel %vm671, %v3799, 0.0
  %v4199 = vadd.f32 %v3798, %v4198
  %4200 = vadd.xlane.f32.xlu0 %v4199
  %v4201 = vpop.xlane.xlu0 %4200
  %v4202 = vsel %vm671, %v3801, 0.0
  %v4203 = vadd.f32 %v3800, %v4202
  %4204 = vadd.xlane.f32.xlu0 %v4203
  %v4205 = vpop.xlane.xlu0 %4204
  %v4206 = vsel %vm671, %v3803, 0.0
  %v4207 = vadd.f32 %v3802, %v4206
  %4208 = vadd.xlane.f32.xlu0 %v4207
  %v4209 = vpop.xlane.xlu0 %4208
  %v4210 = vsel %vm671, %v3805, 0.0
  %v4211 = vadd.f32 %v3804, %v4210
  %4212 = vadd.xlane.f32.xlu0 %v4211
  %v4213 = vpop.xlane.xlu0 %4212
  %v4214 = vsel %vm671, %v3807, 0.0
  %v4215 = vadd.f32 %v3806, %v4214
  %4216 = vadd.xlane.f32.xlu0 %v4215
  %v4217 = vpop.xlane.xlu0 %4216
  %v4218 = vsel %vm671, %v3809, 0.0
  %v4219 = vadd.f32 %v3808, %v4218
  %4220 = vadd.xlane.f32.xlu0 %v4219
  %v4221 = vpop.xlane.xlu0 %4220
  %v4222 = vsel %vm671, %v3811, 0.0
  %v4223 = vadd.f32 %v3810, %v4222
  %4224 = vadd.xlane.f32.xlu0 %v4223
  %v4225 = vpop.xlane.xlu0 %4224
  %v4226 = vsel %vm671, %v3813, 0.0
  %v4227 = vadd.f32 %v3812, %v4226
  %4228 = vadd.xlane.f32.xlu0 %v4227
  %v4229 = vpop.xlane.xlu0 %4228
  %v4230 = vsel %vm671, %v3815, 0.0
  %v4231 = vadd.f32 %v3814, %v4230
  %4232 = vadd.xlane.f32.xlu0 %v4231
  %v4233 = vpop.xlane.xlu0 %4232
  %v4234 = vsel %vm671, %v3817, 0.0
  %v4235 = vadd.f32 %v3816, %v4234
  %4236 = vadd.xlane.f32.xlu0 %v4235
  %v4237 = vpop.xlane.xlu0 %4236
  %v4238 = vsel %vm671, %v3819, 0.0
  %v4239 = vadd.f32 %v3818, %v4238
  %4240 = vadd.xlane.f32.xlu0 %v4239
  %v4241 = vpop.xlane.xlu0 %4240
  %v4242 = vsel %vm671, %v3821, 0.0
  %v4243 = vadd.f32 %v3820, %v4242
  %4244 = vadd.xlane.f32.xlu0 %v4243
  %v4245 = vpop.xlane.xlu0 %4244
  %v4246 = vsel %vm671, %v3823, 0.0
  %v4247 = vadd.f32 %v3822, %v4246
  %4248 = vadd.xlane.f32.xlu0 %v4247
  %v4249 = vpop.xlane.xlu0 %4248
  %v4250 = vsel %vm671, %v3825, 0.0
  %v4251 = vadd.f32 %v3824, %v4250
  %4252 = vadd.xlane.f32.xlu0 %v4251
  %v4253 = vpop.xlane.xlu0 %4252
  %v4254 = vsel %vm671, %v3827, 0.0
  %v4255 = vadd.f32 %v3826, %v4254
  %4256 = vadd.xlane.f32.xlu0 %v4255
  %v4257 = vpop.xlane.xlu0 %4256
  %v4258 = vsel %vm671, %v3829, 0.0
  %v4259 = vadd.f32 %v3828, %v4258
  %4260 = vadd.xlane.f32.xlu0 %v4259
  %v4261 = vpop.xlane.xlu0 %4260
  %v4262 = vsel %vm671, %v3831, 0.0
  %v4263 = vadd.f32 %v3830, %v4262
  %4264 = vadd.xlane.f32.xlu0 %v4263
  %v4265 = vpop.xlane.xlu0 %4264
  %v4266 = vsel %vm671, %v3833, 0.0
  %v4267 = vadd.f32 %v3832, %v4266
  %4268 = vadd.xlane.f32.xlu0 %v4267
  %v4269 = vpop.xlane.xlu0 %4268
  %v4270 = vsel %vm671, %v3835, 0.0
  %v4271 = vadd.f32 %v3834, %v4270
  %4272 = vadd.xlane.f32.xlu0 %v4271
  %v4273 = vpop.xlane.xlu0 %4272
  %v4274 = vsel %vm671, %v3837, 0.0
  %v4275 = vadd.f32 %v3836, %v4274
  %4276 = vadd.xlane.f32.xlu0 %v4275
  %v4277 = vpop.xlane.xlu0 %4276
  %v4278 = vsel %vm671, %v3839, 0.0
  %v4279 = vadd.f32 %v3838, %v4278
  %4280 = vadd.xlane.f32.xlu0 %v4279
  %v4281 = vpop.xlane.xlu0 %4280
  %v4282 = vsel %vm671, %v3841, 0.0
  %v4283 = vadd.f32 %v3840, %v4282
  %4284 = vadd.xlane.f32.xlu0 %v4283
  %v4285 = vpop.xlane.xlu0 %4284
  %v4286 = vsel %vm671, %v3843, 0.0
  %v4287 = vadd.f32 %v3842, %v4286
  %4288 = vadd.xlane.f32.xlu0 %v4287
  %v4289 = vpop.xlane.xlu0 %4288
  %v4290 = vsel %vm671, %v3845, 0.0
  %v4291 = vadd.f32 %v3844, %v4290
  %4292 = vadd.xlane.f32.xlu0 %v4291
  %v4293 = vpop.xlane.xlu0 %4292
  %v4294 = vsel %vm671, %v3847, 0.0
  %v4295 = vadd.f32 %v3846, %v4294
  %4296 = vadd.xlane.f32.xlu0 %v4295
  %v4297 = vpop.xlane.xlu0 %4296
  %v4298 = vsel %vm671, %v3849, 0.0
  %v4299 = vadd.f32 %v3848, %v4298
  %4300 = vadd.xlane.f32.xlu0 %v4299
  %v4301 = vpop.xlane.xlu0 %4300
  %v4302 = vsel %vm671, %v3851, 0.0
  %v4303 = vadd.f32 %v3850, %v4302
  %4304 = vadd.xlane.f32.xlu0 %v4303
  %v4305 = vpop.xlane.xlu0 %4304
  %v4306 = vsel %vm671, %v3853, 0.0
  %v4307 = vadd.f32 %v3852, %v4306
  %4308 = vadd.xlane.f32.xlu0 %v4307
  %v4309 = vpop.xlane.xlu0 %4308
  %v4310 = vsel %vm671, %v3855, 0.0
  %v4311 = vadd.f32 %v3854, %v4310
  %4312 = vadd.xlane.f32.xlu0 %v4311
  %v4313 = vpop.xlane.xlu0 %4312
  %v4314 = vsel %vm671, %v3857, 0.0
  %v4315 = vadd.f32 %v3856, %v4314
  %4316 = vadd.xlane.f32.xlu0 %v4315
  %v4317 = vpop.xlane.xlu0 %4316
  %v4318 = vsel %vm671, %v3859, 0.0
  %v4319 = vadd.f32 %v3858, %v4318
  %4320 = vadd.xlane.f32.xlu0 %v4319
  %v4321 = vpop.xlane.xlu0 %4320
  %v4322 = vsel %vm671, %v3861, 0.0
  %v4323 = vadd.f32 %v3860, %v4322
  %4324 = vadd.xlane.f32.xlu0 %v4323
  %v4325 = vpop.xlane.xlu0 %4324
  %v4326 = vsel %vm671, %v3863, 0.0
  %v4327 = vadd.f32 %v3862, %v4326
  %4328 = vadd.xlane.f32.xlu0 %v4327
  %v4329 = vpop.xlane.xlu0 %4328
  %v4330 = vsel %vm671, %v3865, 0.0
  %v4331 = vadd.f32 %v3864, %v4330
  %4332 = vadd.xlane.f32.xlu0 %v4331
  %v4333 = vpop.xlane.xlu0 %4332
  %v4334 = vsel %vm671, %v3867, 0.0
  %v4335 = vadd.f32 %v3866, %v4334
  %4336 = vadd.xlane.f32.xlu0 %v4335
  %v4337 = vpop.xlane.xlu0 %4336
  %v4338 = vsel %vm671, %v3869, 0.0
  %v4339 = vadd.f32 %v3868, %v4338
  %4340 = vadd.xlane.f32.xlu0 %v4339
  %v4341 = vpop.xlane.xlu0 %4340
  %v4342 = vsel %vm671, %v3871, 0.0
  %v4343 = vadd.f32 %v3870, %v4342
  %4344 = vadd.xlane.f32.xlu0 %v4343
  %v4345 = vpop.xlane.xlu0 %4344
  %v4346 = vsel %vm671, %v3873, 0.0
  %v4347 = vadd.f32 %v3872, %v4346
  %4348 = vadd.xlane.f32.xlu0 %v4347
  %v4349 = vpop.xlane.xlu0 %4348
  %v4350 = vsel %vm671, %v3875, 0.0
  %v4351 = vadd.f32 %v3874, %v4350
  %4352 = vadd.xlane.f32.xlu0 %v4351
  %v4353 = vpop.xlane.xlu0 %4352
  %v4354 = vsel %vm671, %v3877, 0.0
  %v4355 = vadd.f32 %v3876, %v4354
  %4356 = vadd.xlane.f32.xlu0 %v4355
  %v4357 = vpop.xlane.xlu0 %4356
  %v4358 = vmul.f32 %v3881, 0.0051020407
  %v4359 = vmul.f32 %v3885, 0.0051020407
  %v4360 = vmul.f32 %v3889, 0.0051020407
  %v4361 = vmul.f32 %v3893, 0.0051020407
  %v4362 = vmul.f32 %v3897, 0.0051020407
  %v4363 = vmul.f32 %v3901, 0.0051020407
  %v4364 = vmul.f32 %v3905, 0.0051020407
  %v4365 = vmul.f32 %v3909, 0.0051020407
  %v4366 = vmul.f32 %v3913, 0.0051020407
  %v4367 = vmul.f32 %v3917, 0.0051020407
  %v4368 = vmul.f32 %v3921, 0.0051020407
  %v4369 = vmul.f32 %v3925, 0.0051020407
  %v4370 = vmul.f32 %v3929, 0.0051020407
  %v4371 = vmul.f32 %v3933, 0.0051020407
  %v4372 = vmul.f32 %v3937, 0.0051020407
  %v4373 = vmul.f32 %v3941, 0.0051020407
  %v4374 = vmul.f32 %v3945, 0.0051020407
  %v4375 = vmul.f32 %v3949, 0.0051020407
  %v4376 = vmul.f32 %v3953, 0.0051020407
  %v4377 = vmul.f32 %v3957, 0.0051020407
  %v4378 = vmul.f32 %v3961, 0.0051020407
  %v4379 = vmul.f32 %v3965, 0.0051020407
  %v4380 = vmul.f32 %v3969, 0.0051020407
  %v4381 = vmul.f32 %v3973, 0.0051020407
  %v4382 = vmul.f32 %v3977, 0.0051020407
  %v4383 = vmul.f32 %v3981, 0.0051020407
  %v4384 = vmul.f32 %v3985, 0.0051020407
  %v4385 = vmul.f32 %v3989, 0.0051020407
  %v4386 = vmul.f32 %v3993, 0.0051020407
  %v4387 = vmul.f32 %v3997, 0.0051020407
  %v4388 = vmul.f32 %v4001, 0.0051020407
  %v4389 = vmul.f32 %v4005, 0.0051020407
  %v4390 = vmul.f32 %v4009, 0.0051020407
  %v4391 = vmul.f32 %v4013, 0.0051020407
  %v4392 = vmul.f32 %v4017, 0.0051020407
  %v4393 = vmul.f32 %v4021, 0.0051020407
  %v4394 = vmul.f32 %v4025, 0.0051020407
  %v4395 = vmul.f32 %v4029, 0.0051020407
  %v4396 = vmul.f32 %v4033, 0.0051020407
  %v4397 = vmul.f32 %v4037, 0.0051020407
  %v4398 = vmul.f32 %v4041, 0.0051020407
  %v4399 = vmul.f32 %v4045, 0.0051020407
  %v4400 = vmul.f32 %v4049, 0.0051020407
  %v4401 = vmul.f32 %v4053, 0.0051020407
  %v4402 = vmul.f32 %v4057, 0.0051020407
  %v4403 = vmul.f32 %v4061, 0.0051020407
  %v4404 = vmul.f32 %v4065, 0.0051020407
  %v4405 = vmul.f32 %v4069, 0.0051020407
  %v4406 = vmul.f32 %v4073, 0.0051020407
  %v4407 = vmul.f32 %v4077, 0.0051020407
  %v4408 = vmul.f32 %v4081, 0.0051020407
  %v4409 = vmul.f32 %v4085, 0.0051020407
  %v4410 = vmul.f32 %v4089, 0.0051020407
  %v4411 = vmul.f32 %v4093, 0.0051020407
  %v4412 = vmul.f32 %v4097, 0.0051020407
  %v4413 = vmul.f32 %v4101, 0.0051020407
  %v4414 = vmul.f32 %v4105, 0.0051020407
  %v4415 = vmul.f32 %v4109, 0.0051020407
  %v4416 = vmul.f32 %v4113, 0.0051020407
  %v4417 = vmul.f32 %v4117, 0.0051020407
  %v4418 = vmul.f32 %v4121, 0.0051020407
  %v4419 = vmul.f32 %v4125, 0.0051020407
  %v4420 = vmul.f32 %v4129, 0.0051020407
  %v4421 = vmul.f32 %v4133, 0.0051020407
  %v4422 = vmul.f32 %v4137, 0.0051020407
  %v4423 = vmul.f32 %v4141, 0.0051020407
  %v4424 = vmul.f32 %v4145, 0.0051020407
  %v4425 = vmul.f32 %v4149, 0.0051020407
  %v4426 = vmul.f32 %v4153, 0.0051020407
  %v4427 = vmul.f32 %v4157, 0.0051020407
  %v4428 = vmul.f32 %v4161, 0.0051020407
  %v4429 = vmul.f32 %v4165, 0.0051020407
  %v4430 = vmul.f32 %v4169, 0.0051020407
  %v4431 = vmul.f32 %v4173, 0.0051020407
  %v4432 = vmul.f32 %v4177, 0.0051020407
  %v4433 = vmul.f32 %v4181, 0.0051020407
  %v4434 = vmul.f32 %v4185, 0.0051020407
  %v4435 = vmul.f32 %v4189, 0.0051020407
  %v4436 = vmul.f32 %v4193, 0.0051020407
  %v4437 = vmul.f32 %v4197, 0.0051020407
  %v4438 = vmul.f32 %v4201, 0.0051020407
  %v4439 = vmul.f32 %v4205, 0.0051020407
  %v4440 = vmul.f32 %v4209, 0.0051020407
  %v4441 = vmul.f32 %v4213, 0.0051020407
  %v4442 = vmul.f32 %v4217, 0.0051020407
  %v4443 = vmul.f32 %v4221, 0.0051020407
  %v4444 = vmul.f32 %v4225, 0.0051020407
  %v4445 = vmul.f32 %v4229, 0.0051020407
  %v4446 = vmul.f32 %v4233, 0.0051020407
  %v4447 = vmul.f32 %v4237, 0.0051020407
  %v4448 = vmul.f32 %v4241, 0.0051020407
  %v4449 = vmul.f32 %v4245, 0.0051020407
  %v4450 = vmul.f32 %v4249, 0.0051020407
  %v4451 = vmul.f32 %v4253, 0.0051020407
  %v4452 = vmul.f32 %v4257, 0.0051020407
  %v4453 = vmul.f32 %v4261, 0.0051020407
  %v4454 = vmul.f32 %v4265, 0.0051020407
  %v4455 = vmul.f32 %v4269, 0.0051020407
  %v4456 = vmul.f32 %v4273, 0.0051020407
  %v4457 = vmul.f32 %v4277, 0.0051020407
  %v4458 = vmul.f32 %v4281, 0.0051020407
  %v4459 = vmul.f32 %v4285, 0.0051020407
  %v4460 = vmul.f32 %v4289, 0.0051020407
  %v4461 = vmul.f32 %v4293, 0.0051020407
  %v4462 = vmul.f32 %v4297, 0.0051020407
  %v4463 = vmul.f32 %v4301, 0.0051020407
  %v4464 = vmul.f32 %v4305, 0.0051020407
  %v4465 = vmul.f32 %v4309, 0.0051020407
  %v4466 = vmul.f32 %v4313, 0.0051020407
  %v4467 = vmul.f32 %v4317, 0.0051020407
  %v4468 = vmul.f32 %v4321, 0.0051020407
  %v4469 = vmul.f32 %v4325, 0.0051020407
  %v4470 = vmul.f32 %v4329, 0.0051020407
  %v4471 = vmul.f32 %v4333, 0.0051020407
  %v4472 = vmul.f32 %v4337, 0.0051020407
  %v4473 = vmul.f32 %v4341, 0.0051020407
  %v4474 = vmul.f32 %v4345, 0.0051020407
  %v4475 = vmul.f32 %v4349, 0.0051020407
  %v4476 = vmul.f32 %v4353, 0.0051020407
  %v4477 = vmul.f32 %v4357, 0.0051020407
  %v4478 = vadd.f32 %v4358, 1e-05
  %v4479 = vadd.f32 %v4359, 1e-05
  %v4480 = vadd.f32 %v4360, 1e-05
  %v4481 = vadd.f32 %v4361, 1e-05
  %v4482 = vadd.f32 %v4362, 1e-05
  %v4483 = vadd.f32 %v4363, 1e-05
  %v4484 = vadd.f32 %v4364, 1e-05
  %v4485 = vadd.f32 %v4365, 1e-05
  %v4486 = vadd.f32 %v4366, 1e-05
  %v4487 = vadd.f32 %v4367, 1e-05
  %v4488 = vadd.f32 %v4368, 1e-05
  %v4489 = vadd.f32 %v4369, 1e-05
  %v4490 = vadd.f32 %v4370, 1e-05
  %v4491 = vadd.f32 %v4371, 1e-05
  %v4492 = vadd.f32 %v4372, 1e-05
  %v4493 = vadd.f32 %v4373, 1e-05
  %v4494 = vadd.f32 %v4374, 1e-05
  %v4495 = vadd.f32 %v4375, 1e-05
  %v4496 = vadd.f32 %v4376, 1e-05
  %v4497 = vadd.f32 %v4377, 1e-05
  %v4498 = vadd.f32 %v4378, 1e-05
  %v4499 = vadd.f32 %v4379, 1e-05
  %v4500 = vadd.f32 %v4380, 1e-05
  %v4501 = vadd.f32 %v4381, 1e-05
  %v4502 = vadd.f32 %v4382, 1e-05
  %v4503 = vadd.f32 %v4383, 1e-05
  %v4504 = vadd.f32 %v4384, 1e-05
  %v4505 = vadd.f32 %v4385, 1e-05
  %v4506 = vadd.f32 %v4386, 1e-05
  %v4507 = vadd.f32 %v4387, 1e-05
  %v4508 = vadd.f32 %v4388, 1e-05
  %v4509 = vadd.f32 %v4389, 1e-05
  %v4510 = vadd.f32 %v4390, 1e-05
  %v4511 = vadd.f32 %v4391, 1e-05
  %v4512 = vadd.f32 %v4392, 1e-05
  %v4513 = vadd.f32 %v4393, 1e-05
  %v4514 = vadd.f32 %v4394, 1e-05
  %v4515 = vadd.f32 %v4395, 1e-05
  %v4516 = vadd.f32 %v4396, 1e-05
  %v4517 = vadd.f32 %v4397, 1e-05
  %v4518 = vadd.f32 %v4398, 1e-05
  %v4519 = vadd.f32 %v4399, 1e-05
  %v4520 = vadd.f32 %v4400, 1e-05
  %v4521 = vadd.f32 %v4401, 1e-05
  %v4522 = vadd.f32 %v4402, 1e-05
  %v4523 = vadd.f32 %v4403, 1e-05
  %v4524 = vadd.f32 %v4404, 1e-05
  %v4525 = vadd.f32 %v4405, 1e-05
  %v4526 = vadd.f32 %v4406, 1e-05
  %v4527 = vadd.f32 %v4407, 1e-05
  %v4528 = vadd.f32 %v4408, 1e-05
  %v4529 = vadd.f32 %v4409, 1e-05
  %v4530 = vadd.f32 %v4410, 1e-05
  %v4531 = vadd.f32 %v4411, 1e-05
  %v4532 = vadd.f32 %v4412, 1e-05
  %v4533 = vadd.f32 %v4413, 1e-05
  %v4534 = vadd.f32 %v4414, 1e-05
  %v4535 = vadd.f32 %v4415, 1e-05
  %v4536 = vadd.f32 %v4416, 1e-05
  %v4537 = vadd.f32 %v4417, 1e-05
  %v4538 = vadd.f32 %v4418, 1e-05
  %v4539 = vadd.f32 %v4419, 1e-05
  %v4540 = vadd.f32 %v4420, 1e-05
  %v4541 = vadd.f32 %v4421, 1e-05
  %v4542 = vadd.f32 %v4422, 1e-05
  %v4543 = vadd.f32 %v4423, 1e-05
  %v4544 = vadd.f32 %v4424, 1e-05
  %v4545 = vadd.f32 %v4425, 1e-05
  %v4546 = vadd.f32 %v4426, 1e-05
  %v4547 = vadd.f32 %v4427, 1e-05
  %v4548 = vadd.f32 %v4428, 1e-05
  %v4549 = vadd.f32 %v4429, 1e-05
  %v4550 = vadd.f32 %v4430, 1e-05
  %v4551 = vadd.f32 %v4431, 1e-05
  %v4552 = vadd.f32 %v4432, 1e-05
  %v4553 = vadd.f32 %v4433, 1e-05
  %v4554 = vadd.f32 %v4434, 1e-05
  %v4555 = vadd.f32 %v4435, 1e-05
  %v4556 = vadd.f32 %v4436, 1e-05
  %v4557 = vadd.f32 %v4437, 1e-05
  %v4558 = vadd.f32 %v4438, 1e-05
  %v4559 = vadd.f32 %v4439, 1e-05
  %v4560 = vadd.f32 %v4440, 1e-05
  %v4561 = vadd.f32 %v4441, 1e-05
  %v4562 = vadd.f32 %v4442, 1e-05
  %v4563 = vadd.f32 %v4443, 1e-05
  %v4564 = vadd.f32 %v4444, 1e-05
  %v4565 = vadd.f32 %v4445, 1e-05
  %v4566 = vadd.f32 %v4446, 1e-05
  %v4567 = vadd.f32 %v4447, 1e-05
  %v4568 = vadd.f32 %v4448, 1e-05
  %v4569 = vadd.f32 %v4449, 1e-05
  %v4570 = vadd.f32 %v4450, 1e-05
  %v4571 = vadd.f32 %v4451, 1e-05
  %v4572 = vadd.f32 %v4452, 1e-05
  %v4573 = vadd.f32 %v4453, 1e-05
  %v4574 = vadd.f32 %v4454, 1e-05
  %v4575 = vadd.f32 %v4455, 1e-05
  %v4576 = vadd.f32 %v4456, 1e-05
  %v4577 = vadd.f32 %v4457, 1e-05
  %v4578 = vadd.f32 %v4458, 1e-05
  %v4579 = vadd.f32 %v4459, 1e-05
  %v4580 = vadd.f32 %v4460, 1e-05
  %v4581 = vadd.f32 %v4461, 1e-05
  %v4582 = vadd.f32 %v4462, 1e-05
  %v4583 = vadd.f32 %v4463, 1e-05
  %v4584 = vadd.f32 %v4464, 1e-05
  %v4585 = vadd.f32 %v4465, 1e-05
  %v4586 = vadd.f32 %v4466, 1e-05
  %v4587 = vadd.f32 %v4467, 1e-05
  %v4588 = vadd.f32 %v4468, 1e-05
  %v4589 = vadd.f32 %v4469, 1e-05
  %v4590 = vadd.f32 %v4470, 1e-05
  %v4591 = vadd.f32 %v4471, 1e-05
  %v4592 = vadd.f32 %v4472, 1e-05
  %v4593 = vadd.f32 %v4473, 1e-05
  %v4594 = vadd.f32 %v4474, 1e-05
  %v4595 = vadd.f32 %v4475, 1e-05
  %v4596 = vadd.f32 %v4476, 1e-05
  %v4597 = vadd.f32 %v4477, 1e-05
  %v4598 = vrsqrt.pop %v4478
  %v4599 = vrsqrt.pop %v4479
  %v4600 = vrsqrt.pop %v4480
  %v4601 = vrsqrt.pop %v4481
  %v4602 = vrsqrt.pop %v4482
  %v4603 = vrsqrt.pop %v4483
  %v4604 = vrsqrt.pop %v4484
  %v4605 = vrsqrt.pop %v4485
  %v4606 = vrsqrt.pop %v4486
  %v4607 = vrsqrt.pop %v4487
  %v4608 = vrsqrt.pop %v4488
  %v4609 = vrsqrt.pop %v4489
  %v4610 = vrsqrt.pop %v4490
  %v4611 = vrsqrt.pop %v4491
  %v4612 = vrsqrt.pop %v4492
  %v4613 = vrsqrt.pop %v4493
  %v4614 = vrsqrt.pop %v4494
  %v4615 = vrsqrt.pop %v4495
  %v4616 = vrsqrt.pop %v4496
  %v4617 = vrsqrt.pop %v4497
  %v4618 = vrsqrt.pop %v4498
  %v4619 = vrsqrt.pop %v4499
  %v4620 = vrsqrt.pop %v4500
  %v4621 = vrsqrt.pop %v4501
  %v4622 = vrsqrt.pop %v4502
  %v4623 = vrsqrt.pop %v4503
  %v4624 = vrsqrt.pop %v4504
  %v4625 = vrsqrt.pop %v4505
  %v4626 = vrsqrt.pop %v4506
  %v4627 = vrsqrt.pop %v4507
  %v4628 = vrsqrt.pop %v4508
  %v4629 = vrsqrt.pop %v4509
  %v4630 = vrsqrt.pop %v4510
  %v4631 = vrsqrt.pop %v4511
  %v4632 = vrsqrt.pop %v4512
  %v4633 = vrsqrt.pop %v4513
  %v4634 = vrsqrt.pop %v4514
  %v4635 = vrsqrt.pop %v4515
  %v4636 = vrsqrt.pop %v4516
  %v4637 = vrsqrt.pop %v4517
  %v4638 = vrsqrt.pop %v4518
  %v4639 = vrsqrt.pop %v4519
  %v4640 = vrsqrt.pop %v4520
  %v4641 = vrsqrt.pop %v4521
  %v4642 = vrsqrt.pop %v4522
  %v4643 = vrsqrt.pop %v4523
  %v4644 = vrsqrt.pop %v4524
  %v4645 = vrsqrt.pop %v4525
  %v4646 = vrsqrt.pop %v4526
  %v4647 = vrsqrt.pop %v4527
  %v4648 = vrsqrt.pop %v4528
  %v4649 = vrsqrt.pop %v4529
  %v4650 = vrsqrt.pop %v4530
  %v4651 = vrsqrt.pop %v4531
  %v4652 = vrsqrt.pop %v4532
  %v4653 = vrsqrt.pop %v4533
  %v4654 = vrsqrt.pop %v4534
  %v4655 = vrsqrt.pop %v4535
  %v4656 = vrsqrt.pop %v4536
  %v4657 = vrsqrt.pop %v4537
  %v4658 = vrsqrt.pop %v4538
  %v4659 = vrsqrt.pop %v4539
  %v4660 = vrsqrt.pop %v4540
  %v4661 = vrsqrt.pop %v4541
  %v4662 = vrsqrt.pop %v4542
  %v4663 = vrsqrt.pop %v4543
  %v4664 = vrsqrt.pop %v4544
  %v4665 = vrsqrt.pop %v4545
  %v4666 = vrsqrt.pop %v4546
  %v4667 = vrsqrt.pop %v4547
  %v4668 = vrsqrt.pop %v4548
  %v4669 = vrsqrt.pop %v4549
  %v4670 = vrsqrt.pop %v4550
  %v4671 = vrsqrt.pop %v4551
  %v4672 = vrsqrt.pop %v4552
  %v4673 = vrsqrt.pop %v4553
  %v4674 = vrsqrt.pop %v4554
  %v4675 = vrsqrt.pop %v4555
  %v4676 = vrsqrt.pop %v4556
  %v4677 = vrsqrt.pop %v4557
  %v4678 = vrsqrt.pop %v4558
  %v4679 = vrsqrt.pop %v4559
  %v4680 = vrsqrt.pop %v4560
  %v4681 = vrsqrt.pop %v4561
  %v4682 = vrsqrt.pop %v4562
  %v4683 = vrsqrt.pop %v4563
  %v4684 = vrsqrt.pop %v4564
  %v4685 = vrsqrt.pop %v4565
  %v4686 = vrsqrt.pop %v4566
  %v4687 = vrsqrt.pop %v4567
  %v4688 = vrsqrt.pop %v4568
  %v4689 = vrsqrt.pop %v4569
  %v4690 = vrsqrt.pop %v4570
  %v4691 = vrsqrt.pop %v4571
  %v4692 = vrsqrt.pop %v4572
  %v4693 = vrsqrt.pop %v4573
  %v4694 = vrsqrt.pop %v4574
  %v4695 = vrsqrt.pop %v4575
  %v4696 = vrsqrt.pop %v4576
  %v4697 = vrsqrt.pop %v4577
  %v4698 = vrsqrt.pop %v4578
  %v4699 = vrsqrt.pop %v4579
  %v4700 = vrsqrt.pop %v4580
  %v4701 = vrsqrt.pop %v4581
  %v4702 = vrsqrt.pop %v4582
  %v4703 = vrsqrt.pop %v4583
  %v4704 = vrsqrt.pop %v4584
  %v4705 = vrsqrt.pop %v4585
  %v4706 = vrsqrt.pop %v4586
  %v4707 = vrsqrt.pop %v4587
  %v4708 = vrsqrt.pop %v4588
  %v4709 = vrsqrt.pop %v4589
  %v4710 = vrsqrt.pop %v4590
  %v4711 = vrsqrt.pop %v4591
  %v4712 = vrsqrt.pop %v4592
  %v4713 = vrsqrt.pop %v4593
  %v4714 = vrsqrt.pop %v4594
  %v4715 = vrsqrt.pop %v4595
  %v4716 = vrsqrt.pop %v4596
  %v4717 = vrsqrt.pop %v4597
  %v4718 = vmul.f32 %v2678, %v4598
  %v4719 = vmul.f32 %v2679, %v4599
  %v4720 = vmul.f32 %v2680, %v4600
  %v4721 = vmul.f32 %v2681, %v4601
  %v4722 = vmul.f32 %v2682, %v4602
  %v4723 = vmul.f32 %v2683, %v4603
  %v4724 = vmul.f32 %v2684, %v4604
  %v4725 = vmul.f32 %v2685, %v4605
  %v4726 = vmul.f32 %v2686, %v4606
  %v4727 = vmul.f32 %v2687, %v4607
  %v4728 = vmul.f32 %v2688, %v4608
  %v4729 = vmul.f32 %v2689, %v4609
  %v4730 = vmul.f32 %v2690, %v4610
  %v4731 = vmul.f32 %v2691, %v4611
  %v4732 = vmul.f32 %v2692, %v4612
  %v4733 = vmul.f32 %v2693, %v4613
  %v4734 = vmul.f32 %v2694, %v4614
  %v4735 = vmul.f32 %v2695, %v4615
  %v4736 = vmul.f32 %v2696, %v4616
  %v4737 = vmul.f32 %v2697, %v4617
  %v4738 = vmul.f32 %v2698, %v4618
  %v4739 = vmul.f32 %v2699, %v4619
  %v4740 = vmul.f32 %v2700, %v4620
  %v4741 = vmul.f32 %v2701, %v4621
  %v4742 = vmul.f32 %v2702, %v4622
  %v4743 = vmul.f32 %v2703, %v4623
  %v4744 = vmul.f32 %v2704, %v4624
  %v4745 = vmul.f32 %v2705, %v4625
  %v4746 = vmul.f32 %v2706, %v4626
  %v4747 = vmul.f32 %v2707, %v4627
  %v4748 = vmul.f32 %v2708, %v4628
  %v4749 = vmul.f32 %v2709, %v4629
  %v4750 = vmul.f32 %v2710, %v4630
  %v4751 = vmul.f32 %v2711, %v4631
  %v4752 = vmul.f32 %v2712, %v4632
  %v4753 = vmul.f32 %v2713, %v4633
  %v4754 = vmul.f32 %v2714, %v4634
  %v4755 = vmul.f32 %v2715, %v4635
  %v4756 = vmul.f32 %v2716, %v4636
  %v4757 = vmul.f32 %v2717, %v4637
  %v4758 = vmul.f32 %v2718, %v4638
  %v4759 = vmul.f32 %v2719, %v4639
  %v4760 = vmul.f32 %v2720, %v4640
  %v4761 = vmul.f32 %v2721, %v4641
  %v4762 = vmul.f32 %v2722, %v4642
  %v4763 = vmul.f32 %v2723, %v4643
  %v4764 = vmul.f32 %v2724, %v4644
  %v4765 = vmul.f32 %v2725, %v4645
  %v4766 = vmul.f32 %v2726, %v4646
  %v4767 = vmul.f32 %v2727, %v4647
  %v4768 = vmul.f32 %v2728, %v4648
  %v4769 = vmul.f32 %v2729, %v4649
  %v4770 = vmul.f32 %v2730, %v4650
  %v4771 = vmul.f32 %v2731, %v4651
  %v4772 = vmul.f32 %v2732, %v4652
  %v4773 = vmul.f32 %v2733, %v4653
  %v4774 = vmul.f32 %v2734, %v4654
  %v4775 = vmul.f32 %v2735, %v4655
  %v4776 = vmul.f32 %v2736, %v4656
  %v4777 = vmul.f32 %v2737, %v4657
  %v4778 = vmul.f32 %v2738, %v4658
  %v4779 = vmul.f32 %v2739, %v4659
  %v4780 = vmul.f32 %v2740, %v4660
  %v4781 = vmul.f32 %v2741, %v4661
  %v4782 = vmul.f32 %v2742, %v4662
  %v4783 = vmul.f32 %v2743, %v4663
  %v4784 = vmul.f32 %v2744, %v4664
  %v4785 = vmul.f32 %v2745, %v4665
  %v4786 = vmul.f32 %v2746, %v4666
  %v4787 = vmul.f32 %v2747, %v4667
  %v4788 = vmul.f32 %v2748, %v4668
  %v4789 = vmul.f32 %v2749, %v4669
  %v4790 = vmul.f32 %v2750, %v4670
  %v4791 = vmul.f32 %v2751, %v4671
  %v4792 = vmul.f32 %v2752, %v4672
  %v4793 = vmul.f32 %v2753, %v4673
  %v4794 = vmul.f32 %v2754, %v4674
  %v4795 = vmul.f32 %v2755, %v4675
  %v4796 = vmul.f32 %v2756, %v4676
  %v4797 = vmul.f32 %v2757, %v4677
  %v4798 = vmul.f32 %v2758, %v4678
  %v4799 = vmul.f32 %v2759, %v4679
  %v4800 = vmul.f32 %v2760, %v4680
  %v4801 = vmul.f32 %v2761, %v4681
  %v4802 = vmul.f32 %v2762, %v4682
  %v4803 = vmul.f32 %v2763, %v4683
  %v4804 = vmul.f32 %v2764, %v4684
  %v4805 = vmul.f32 %v2765, %v4685
  %v4806 = vmul.f32 %v2766, %v4686
  %v4807 = vmul.f32 %v2767, %v4687
  %v4808 = vmul.f32 %v2768, %v4688
  %v4809 = vmul.f32 %v2769, %v4689
  %v4810 = vmul.f32 %v2770, %v4690
  %v4811 = vmul.f32 %v2771, %v4691
  %v4812 = vmul.f32 %v2772, %v4692
  %v4813 = vmul.f32 %v2773, %v4693
  %v4814 = vmul.f32 %v2774, %v4694
  %v4815 = vmul.f32 %v2775, %v4695
  %v4816 = vmul.f32 %v2776, %v4696
  %v4817 = vmul.f32 %v2777, %v4697
  %v4818 = vmul.f32 %v2778, %v4698
  %v4819 = vmul.f32 %v2779, %v4699
  %v4820 = vmul.f32 %v2780, %v4700
  %v4821 = vmul.f32 %v2781, %v4701
  %v4822 = vmul.f32 %v2782, %v4702
  %v4823 = vmul.f32 %v2783, %v4703
  %v4824 = vmul.f32 %v2784, %v4704
  %v4825 = vmul.f32 %v2785, %v4705
  %v4826 = vmul.f32 %v2786, %v4706
  %v4827 = vmul.f32 %v2787, %v4707
  %v4828 = vmul.f32 %v2788, %v4708
  %v4829 = vmul.f32 %v2789, %v4709
  %v4830 = vmul.f32 %v2790, %v4710
  %v4831 = vmul.f32 %v2791, %v4711
  %v4832 = vmul.f32 %v2792, %v4712
  %v4833 = vmul.f32 %v2793, %v4713
  %v4834 = vmul.f32 %v2794, %v4714
  %v4835 = vmul.f32 %v2795, %v4715
  %v4836 = vmul.f32 %v2796, %v4716
  %v4837 = vmul.f32 %v2797, %v4717
  %4839 = vset.pattern.permute.xlu0 0
  %4840 = vperm.xlu0 %4839, %v4718
  %v4841 = vpop.permute.xlu0 %4840
  %4844 = vset.pattern.permute.xlu0 0
  %4845 = vperm.xlu0 %4844, %v4719
  %v4846 = vpop.permute.xlu0 %4845
  %4849 = vset.pattern.permute.xlu0 0
  %4850 = vperm.xlu0 %4849, %v4720
  %v4851 = vpop.permute.xlu0 %4850
  %4854 = vset.pattern.permute.xlu0 0
  %4855 = vperm.xlu0 %4854, %v4721
  %v4856 = vpop.permute.xlu0 %4855
  %4859 = vset.pattern.permute.xlu0 0
  %4860 = vperm.xlu0 %4859, %v4722
  %v4861 = vpop.permute.xlu0 %4860
  %4864 = vset.pattern.permute.xlu0 0
  %4865 = vperm.xlu0 %4864, %v4723
  %v4866 = vpop.permute.xlu0 %4865
  %4869 = vset.pattern.permute.xlu0 0
  %4870 = vperm.xlu0 %4869, %v4724
  %v4871 = vpop.permute.xlu0 %4870
  %4874 = vset.pattern.permute.xlu0 0
  %4875 = vperm.xlu0 %4874, %v4725
  %v4876 = vpop.permute.xlu0 %4875
  %4879 = vset.pattern.permute.xlu0 0
  %4880 = vperm.xlu0 %4879, %v4726
  %v4881 = vpop.permute.xlu0 %4880
  %4884 = vset.pattern.permute.xlu0 0
  %4885 = vperm.xlu0 %4884, %v4727
  %v4886 = vpop.permute.xlu0 %4885
  %4889 = vset.pattern.permute.xlu0 0
  %4890 = vperm.xlu0 %4889, %v4728
  %v4891 = vpop.permute.xlu0 %4890
  %4894 = vset.pattern.permute.xlu0 0
  %4895 = vperm.xlu0 %4894, %v4729
  %v4896 = vpop.permute.xlu0 %4895
  %4899 = vset.pattern.permute.xlu0 0
  %4900 = vperm.xlu0 %4899, %v4730
  %v4901 = vpop.permute.xlu0 %4900
  %4904 = vset.pattern.permute.xlu0 0
  %4905 = vperm.xlu0 %4904, %v4731
  %v4906 = vpop.permute.xlu0 %4905
  %4909 = vset.pattern.permute.xlu0 0
  %4910 = vperm.xlu0 %4909, %v4732
  %v4911 = vpop.permute.xlu0 %4910
  %4914 = vset.pattern.permute.xlu0 0
  %4915 = vperm.xlu0 %4914, %v4733
  %v4916 = vpop.permute.xlu0 %4915
  %4919 = vset.pattern.permute.xlu0 0
  %4920 = vperm.xlu0 %4919, %v4734
  %v4921 = vpop.permute.xlu0 %4920
  %4924 = vset.pattern.permute.xlu0 0
  %4925 = vperm.xlu0 %4924, %v4735
  %v4926 = vpop.permute.xlu0 %4925
  %4929 = vset.pattern.permute.xlu0 0
  %4930 = vperm.xlu0 %4929, %v4736
  %v4931 = vpop.permute.xlu0 %4930
  %4934 = vset.pattern.permute.xlu0 0
  %4935 = vperm.xlu0 %4934, %v4737
  %v4936 = vpop.permute.xlu0 %4935
  %4939 = vset.pattern.permute.xlu0 0
  %4940 = vperm.xlu0 %4939, %v4738
  %v4941 = vpop.permute.xlu0 %4940
  %4944 = vset.pattern.permute.xlu0 0
  %4945 = vperm.xlu0 %4944, %v4739
  %v4946 = vpop.permute.xlu0 %4945
  %4949 = vset.pattern.permute.xlu0 0
  %4950 = vperm.xlu0 %4949, %v4740
  %v4951 = vpop.permute.xlu0 %4950
  %4954 = vset.pattern.permute.xlu0 0
  %4955 = vperm.xlu0 %4954, %v4741
  %v4956 = vpop.permute.xlu0 %4955
  %4959 = vset.pattern.permute.xlu0 0
  %4960 = vperm.xlu0 %4959, %v4742
  %v4961 = vpop.permute.xlu0 %4960
  %4964 = vset.pattern.permute.xlu0 0
  %4965 = vperm.xlu0 %4964, %v4743
  %v4966 = vpop.permute.xlu0 %4965
  %4969 = vset.pattern.permute.xlu0 0
  %4970 = vperm.xlu0 %4969, %v4744
  %v4971 = vpop.permute.xlu0 %4970
  %4974 = vset.pattern.permute.xlu0 0
  %4975 = vperm.xlu0 %4974, %v4745
  %v4976 = vpop.permute.xlu0 %4975
  %4979 = vset.pattern.permute.xlu0 0
  %4980 = vperm.xlu0 %4979, %v4746
  %v4981 = vpop.permute.xlu0 %4980
  %4984 = vset.pattern.permute.xlu0 0
  %4985 = vperm.xlu0 %4984, %v4747
  %v4986 = vpop.permute.xlu0 %4985
  %4989 = vset.pattern.permute.xlu0 0
  %4990 = vperm.xlu0 %4989, %v4748
  %v4991 = vpop.permute.xlu0 %4990
  %4994 = vset.pattern.permute.xlu0 0
  %4995 = vperm.xlu0 %4994, %v4749
  %v4996 = vpop.permute.xlu0 %4995
  %4999 = vset.pattern.permute.xlu0 0
  %5000 = vperm.xlu0 %4999, %v4750
  %v5001 = vpop.permute.xlu0 %5000
  %5004 = vset.pattern.permute.xlu0 0
  %5005 = vperm.xlu0 %5004, %v4751
  %v5006 = vpop.permute.xlu0 %5005
  %5009 = vset.pattern.permute.xlu0 0
  %5010 = vperm.xlu0 %5009, %v4752
  %v5011 = vpop.permute.xlu0 %5010
  %5014 = vset.pattern.permute.xlu0 0
  %5015 = vperm.xlu0 %5014, %v4753
  %v5016 = vpop.permute.xlu0 %5015
  %5019 = vset.pattern.permute.xlu0 0
  %5020 = vperm.xlu0 %5019, %v4754
  %v5021 = vpop.permute.xlu0 %5020
  %5024 = vset.pattern.permute.xlu0 0
  %5025 = vperm.xlu0 %5024, %v4755
  %v5026 = vpop.permute.xlu0 %5025
  %5029 = vset.pattern.permute.xlu0 0
  %5030 = vperm.xlu0 %5029, %v4756
  %v5031 = vpop.permute.xlu0 %5030
  %5034 = vset.pattern.permute.xlu0 0
  %5035 = vperm.xlu0 %5034, %v4757
  %v5036 = vpop.permute.xlu0 %5035
  %5039 = vset.pattern.permute.xlu0 0
  %5040 = vperm.xlu0 %5039, %v4758
  %v5041 = vpop.permute.xlu0 %5040
  %5044 = vset.pattern.permute.xlu0 0
  %5045 = vperm.xlu0 %5044, %v4759
  %v5046 = vpop.permute.xlu0 %5045
  %5049 = vset.pattern.permute.xlu0 0
  %5050 = vperm.xlu0 %5049, %v4760
  %v5051 = vpop.permute.xlu0 %5050
  %5054 = vset.pattern.permute.xlu0 0
  %5055 = vperm.xlu0 %5054, %v4761
  %v5056 = vpop.permute.xlu0 %5055
  %5059 = vset.pattern.permute.xlu0 0
  %5060 = vperm.xlu0 %5059, %v4762
  %v5061 = vpop.permute.xlu0 %5060
  %5064 = vset.pattern.permute.xlu0 0
  %5065 = vperm.xlu0 %5064, %v4763
  %v5066 = vpop.permute.xlu0 %5065
  %5069 = vset.pattern.permute.xlu0 0
  %5070 = vperm.xlu0 %5069, %v4764
  %v5071 = vpop.permute.xlu0 %5070
  %5074 = vset.pattern.permute.xlu0 0
  %5075 = vperm.xlu0 %5074, %v4765
  %v5076 = vpop.permute.xlu0 %5075
  %5079 = vset.pattern.permute.xlu0 0
  %5080 = vperm.xlu0 %5079, %v4766
  %v5081 = vpop.permute.xlu0 %5080
  %5084 = vset.pattern.permute.xlu0 0
  %5085 = vperm.xlu0 %5084, %v4767
  %v5086 = vpop.permute.xlu0 %5085
  %5089 = vset.pattern.permute.xlu0 0
  %5090 = vperm.xlu0 %5089, %v4768
  %v5091 = vpop.permute.xlu0 %5090
  %5094 = vset.pattern.permute.xlu0 0
  %5095 = vperm.xlu0 %5094, %v4769
  %v5096 = vpop.permute.xlu0 %5095
  %5099 = vset.pattern.permute.xlu0 0
  %5100 = vperm.xlu0 %5099, %v4770
  %v5101 = vpop.permute.xlu0 %5100
  %5104 = vset.pattern.permute.xlu0 0
  %5105 = vperm.xlu0 %5104, %v4771
  %v5106 = vpop.permute.xlu0 %5105
  %5109 = vset.pattern.permute.xlu0 0
  %5110 = vperm.xlu0 %5109, %v4772
  %v5111 = vpop.permute.xlu0 %5110
  %5114 = vset.pattern.permute.xlu0 0
  %5115 = vperm.xlu0 %5114, %v4773
  %v5116 = vpop.permute.xlu0 %5115
  %5119 = vset.pattern.permute.xlu0 0
  %5120 = vperm.xlu0 %5119, %v4774
  %v5121 = vpop.permute.xlu0 %5120
  %5124 = vset.pattern.permute.xlu0 0
  %5125 = vperm.xlu0 %5124, %v4775
  %v5126 = vpop.permute.xlu0 %5125
  %5129 = vset.pattern.permute.xlu0 0
  %5130 = vperm.xlu0 %5129, %v4776
  %v5131 = vpop.permute.xlu0 %5130
  %5134 = vset.pattern.permute.xlu0 0
  %5135 = vperm.xlu0 %5134, %v4777
  %v5136 = vpop.permute.xlu0 %5135
  %5139 = vset.pattern.permute.xlu0 0
  %5140 = vperm.xlu0 %5139, %v4778
  %v5141 = vpop.permute.xlu0 %5140
  %5144 = vset.pattern.permute.xlu0 0
  %5145 = vperm.xlu0 %5144, %v4779
  %v5146 = vpop.permute.xlu0 %5145
  %5149 = vset.pattern.permute.xlu0 0
  %5150 = vperm.xlu0 %5149, %v4780
  %v5151 = vpop.permute.xlu0 %5150
  %5154 = vset.pattern.permute.xlu0 0
  %5155 = vperm.xlu0 %5154, %v4781
  %v5156 = vpop.permute.xlu0 %5155
  %5159 = vset.pattern.permute.xlu0 0
  %5160 = vperm.xlu0 %5159, %v4782
  %v5161 = vpop.permute.xlu0 %5160
  %5164 = vset.pattern.permute.xlu0 0
  %5165 = vperm.xlu0 %5164, %v4783
  %v5166 = vpop.permute.xlu0 %5165
  %5169 = vset.pattern.permute.xlu0 0
  %5170 = vperm.xlu0 %5169, %v4784
  %v5171 = vpop.permute.xlu0 %5170
  %5174 = vset.pattern.permute.xlu0 0
  %5175 = vperm.xlu0 %5174, %v4785
  %v5176 = vpop.permute.xlu0 %5175
  %5179 = vset.pattern.permute.xlu0 0
  %5180 = vperm.xlu0 %5179, %v4786
  %v5181 = vpop.permute.xlu0 %5180
  %5184 = vset.pattern.permute.xlu0 0
  %5185 = vperm.xlu0 %5184, %v4787
  %v5186 = vpop.permute.xlu0 %5185
  %5189 = vset.pattern.permute.xlu0 0
  %5190 = vperm.xlu0 %5189, %v4788
  %v5191 = vpop.permute.xlu0 %5190
  %5194 = vset.pattern.permute.xlu0 0
  %5195 = vperm.xlu0 %5194, %v4789
  %v5196 = vpop.permute.xlu0 %5195
  %5199 = vset.pattern.permute.xlu0 0
  %5200 = vperm.xlu0 %5199, %v4790
  %v5201 = vpop.permute.xlu0 %5200
  %5204 = vset.pattern.permute.xlu0 0
  %5205 = vperm.xlu0 %5204, %v4791
  %v5206 = vpop.permute.xlu0 %5205
  %5209 = vset.pattern.permute.xlu0 0
  %5210 = vperm.xlu0 %5209, %v4792
  %v5211 = vpop.permute.xlu0 %5210
  %5214 = vset.pattern.permute.xlu0 0
  %5215 = vperm.xlu0 %5214, %v4793
  %v5216 = vpop.permute.xlu0 %5215
  %5219 = vset.pattern.permute.xlu0 0
  %5220 = vperm.xlu0 %5219, %v4794
  %v5221 = vpop.permute.xlu0 %5220
  %5224 = vset.pattern.permute.xlu0 0
  %5225 = vperm.xlu0 %5224, %v4795
  %v5226 = vpop.permute.xlu0 %5225
  %5229 = vset.pattern.permute.xlu0 0
  %5230 = vperm.xlu0 %5229, %v4796
  %v5231 = vpop.permute.xlu0 %5230
  %5234 = vset.pattern.permute.xlu0 0
  %5235 = vperm.xlu0 %5234, %v4797
  %v5236 = vpop.permute.xlu0 %5235
  %5239 = vset.pattern.permute.xlu0 0
  %5240 = vperm.xlu0 %5239, %v4798
  %v5241 = vpop.permute.xlu0 %5240
  %5244 = vset.pattern.permute.xlu0 0
  %5245 = vperm.xlu0 %5244, %v4799
  %v5246 = vpop.permute.xlu0 %5245
  %5249 = vset.pattern.permute.xlu0 0
  %5250 = vperm.xlu0 %5249, %v4800
  %v5251 = vpop.permute.xlu0 %5250
  %5254 = vset.pattern.permute.xlu0 0
  %5255 = vperm.xlu0 %5254, %v4801
  %v5256 = vpop.permute.xlu0 %5255
  %5259 = vset.pattern.permute.xlu0 0
  %5260 = vperm.xlu0 %5259, %v4802
  %v5261 = vpop.permute.xlu0 %5260
  %5264 = vset.pattern.permute.xlu0 0
  %5265 = vperm.xlu0 %5264, %v4803
  %v5266 = vpop.permute.xlu0 %5265
  %5269 = vset.pattern.permute.xlu0 0
  %5270 = vperm.xlu0 %5269, %v4804
  %v5271 = vpop.permute.xlu0 %5270
  %5274 = vset.pattern.permute.xlu0 0
  %5275 = vperm.xlu0 %5274, %v4805
  %v5276 = vpop.permute.xlu0 %5275
  %5279 = vset.pattern.permute.xlu0 0
  %5280 = vperm.xlu0 %5279, %v4806
  %v5281 = vpop.permute.xlu0 %5280
  %5284 = vset.pattern.permute.xlu0 0
  %5285 = vperm.xlu0 %5284, %v4807
  %v5286 = vpop.permute.xlu0 %5285
  %5289 = vset.pattern.permute.xlu0 0
  %5290 = vperm.xlu0 %5289, %v4808
  %v5291 = vpop.permute.xlu0 %5290
  %5294 = vset.pattern.permute.xlu0 0
  %5295 = vperm.xlu0 %5294, %v4809
  %v5296 = vpop.permute.xlu0 %5295
  %5299 = vset.pattern.permute.xlu0 0
  %5300 = vperm.xlu0 %5299, %v4810
  %v5301 = vpop.permute.xlu0 %5300
  %5304 = vset.pattern.permute.xlu0 0
  %5305 = vperm.xlu0 %5304, %v4811
  %v5306 = vpop.permute.xlu0 %5305
  %5309 = vset.pattern.permute.xlu0 0
  %5310 = vperm.xlu0 %5309, %v4812
  %v5311 = vpop.permute.xlu0 %5310
  %5314 = vset.pattern.permute.xlu0 0
  %5315 = vperm.xlu0 %5314, %v4813
  %v5316 = vpop.permute.xlu0 %5315
  %5319 = vset.pattern.permute.xlu0 0
  %5320 = vperm.xlu0 %5319, %v4814
  %v5321 = vpop.permute.xlu0 %5320
  %5324 = vset.pattern.permute.xlu0 0
  %5325 = vperm.xlu0 %5324, %v4815
  %v5326 = vpop.permute.xlu0 %5325
  %5329 = vset.pattern.permute.xlu0 0
  %5330 = vperm.xlu0 %5329, %v4816
  %v5331 = vpop.permute.xlu0 %5330
  %5334 = vset.pattern.permute.xlu0 0
  %5335 = vperm.xlu0 %5334, %v4817
  %v5336 = vpop.permute.xlu0 %5335
  %5339 = vset.pattern.permute.xlu0 0
  %5340 = vperm.xlu0 %5339, %v4818
  %v5341 = vpop.permute.xlu0 %5340
  %5344 = vset.pattern.permute.xlu0 0
  %5345 = vperm.xlu0 %5344, %v4819
  %v5346 = vpop.permute.xlu0 %5345
  %5349 = vset.pattern.permute.xlu0 0
  %5350 = vperm.xlu0 %5349, %v4820
  %v5351 = vpop.permute.xlu0 %5350
  %5354 = vset.pattern.permute.xlu0 0
  %5355 = vperm.xlu0 %5354, %v4821
  %v5356 = vpop.permute.xlu0 %5355
  %5359 = vset.pattern.permute.xlu0 0
  %5360 = vperm.xlu0 %5359, %v4822
  %v5361 = vpop.permute.xlu0 %5360
  %5364 = vset.pattern.permute.xlu0 0
  %5365 = vperm.xlu0 %5364, %v4823
  %v5366 = vpop.permute.xlu0 %5365
  %5369 = vset.pattern.permute.xlu0 0
  %5370 = vperm.xlu0 %5369, %v4824
  %v5371 = vpop.permute.xlu0 %5370
  %5374 = vset.pattern.permute.xlu0 0
  %5375 = vperm.xlu0 %5374, %v4825
  %v5376 = vpop.permute.xlu0 %5375
  %5379 = vset.pattern.permute.xlu0 0
  %5380 = vperm.xlu0 %5379, %v4826
  %v5381 = vpop.permute.xlu0 %5380
  %5384 = vset.pattern.permute.xlu0 0
  %5385 = vperm.xlu0 %5384, %v4827
  %v5386 = vpop.permute.xlu0 %5385
  %5389 = vset.pattern.permute.xlu0 0
  %5390 = vperm.xlu0 %5389, %v4828
  %v5391 = vpop.permute.xlu0 %5390
  %5394 = vset.pattern.permute.xlu0 0
  %5395 = vperm.xlu0 %5394, %v4829
  %v5396 = vpop.permute.xlu0 %5395
  %5399 = vset.pattern.permute.xlu0 0
  %5400 = vperm.xlu0 %5399, %v4830
  %v5401 = vpop.permute.xlu0 %5400
  %5404 = vset.pattern.permute.xlu0 0
  %5405 = vperm.xlu0 %5404, %v4831
  %v5406 = vpop.permute.xlu0 %5405
  %5409 = vset.pattern.permute.xlu0 0
  %5410 = vperm.xlu0 %5409, %v4832
  %v5411 = vpop.permute.xlu0 %5410
  %5414 = vset.pattern.permute.xlu0 0
  %5415 = vperm.xlu0 %5414, %v4833
  %v5416 = vpop.permute.xlu0 %5415
  %5419 = vset.pattern.permute.xlu0 0
  %5420 = vperm.xlu0 %5419, %v4834
  %v5421 = vpop.permute.xlu0 %5420
  %5424 = vset.pattern.permute.xlu0 0
  %5425 = vperm.xlu0 %5424, %v4835
  %v5426 = vpop.permute.xlu0 %5425
  %5429 = vset.pattern.permute.xlu0 0
  %5430 = vperm.xlu0 %5429, %v4836
  %v5431 = vpop.permute.xlu0 %5430
  %5434 = vset.pattern.permute.xlu0 0
  %5435 = vperm.xlu0 %5434, %v4837
  %v5436 = vpop.permute.xlu0 %5435
  %v5438 = vmul.f32 %v3398, %v4841
  %v5439 = vmul.f32 %v3399, %v4841
  %v5440 = vmul.f32 %v3400, %v4846
  %v5441 = vmul.f32 %v3401, %v4846
  %v5442 = vmul.f32 %v3402, %v4851
  %v5443 = vmul.f32 %v3403, %v4851
  %v5444 = vmul.f32 %v3404, %v4856
  %v5445 = vmul.f32 %v3405, %v4856
  %v5446 = vmul.f32 %v3406, %v4861
  %v5447 = vmul.f32 %v3407, %v4861
  %v5448 = vmul.f32 %v3408, %v4866
  %v5449 = vmul.f32 %v3409, %v4866
  %v5450 = vmul.f32 %v3410, %v4871
  %v5451 = vmul.f32 %v3411, %v4871
  %v5452 = vmul.f32 %v3412, %v4876
  %v5453 = vmul.f32 %v3413, %v4876
  %v5454 = vmul.f32 %v3414, %v4881
  %v5455 = vmul.f32 %v3415, %v4881
  %v5456 = vmul.f32 %v3416, %v4886
  %v5457 = vmul.f32 %v3417, %v4886
  %v5458 = vmul.f32 %v3418, %v4891
  %v5459 = vmul.f32 %v3419, %v4891
  %v5460 = vmul.f32 %v3420, %v4896
  %v5461 = vmul.f32 %v3421, %v4896
  %v5462 = vmul.f32 %v3422, %v4901
  %v5463 = vmul.f32 %v3423, %v4901
  %v5464 = vmul.f32 %v3424, %v4906
  %v5465 = vmul.f32 %v3425, %v4906
  %v5466 = vmul.f32 %v3426, %v4911
  %v5467 = vmul.f32 %v3427, %v4911
  %v5468 = vmul.f32 %v3428, %v4916
  %v5469 = vmul.f32 %v3429, %v4916
  %v5470 = vmul.f32 %v3430, %v4921
  %v5471 = vmul.f32 %v3431, %v4921
  %v5472 = vmul.f32 %v3432, %v4926
  %v5473 = vmul.f32 %v3433, %v4926
  %v5474 = vmul.f32 %v3434, %v4931
  %v5475 = vmul.f32 %v3435, %v4931
  %v5476 = vmul.f32 %v3436, %v4936
  %v5477 = vmul.f32 %v3437, %v4936
  %v5478 = vmul.f32 %v3438, %v4941
  %v5479 = vmul.f32 %v3439, %v4941
  %v5480 = vmul.f32 %v3440, %v4946
  %v5481 = vmul.f32 %v3441, %v4946
  %v5482 = vmul.f32 %v3442, %v4951
  %v5483 = vmul.f32 %v3443, %v4951
  %v5484 = vmul.f32 %v3444, %v4956
  %v5485 = vmul.f32 %v3445, %v4956
  %v5486 = vmul.f32 %v3446, %v4961
  %v5487 = vmul.f32 %v3447, %v4961
  %v5488 = vmul.f32 %v3448, %v4966
  %v5489 = vmul.f32 %v3449, %v4966
  %v5490 = vmul.f32 %v3450, %v4971
  %v5491 = vmul.f32 %v3451, %v4971
  %v5492 = vmul.f32 %v3452, %v4976
  %v5493 = vmul.f32 %v3453, %v4976
  %v5494 = vmul.f32 %v3454, %v4981
  %v5495 = vmul.f32 %v3455, %v4981
  %v5496 = vmul.f32 %v3456, %v4986
  %v5497 = vmul.f32 %v3457, %v4986
  %v5498 = vmul.f32 %v3458, %v4991
  %v5499 = vmul.f32 %v3459, %v4991
  %v5500 = vmul.f32 %v3460, %v4996
  %v5501 = vmul.f32 %v3461, %v4996
  %v5502 = vmul.f32 %v3462, %v5001
  %v5503 = vmul.f32 %v3463, %v5001
  %v5504 = vmul.f32 %v3464, %v5006
  %v5505 = vmul.f32 %v3465, %v5006
  %v5506 = vmul.f32 %v3466, %v5011
  %v5507 = vmul.f32 %v3467, %v5011
  %v5508 = vmul.f32 %v3468, %v5016
  %v5509 = vmul.f32 %v3469, %v5016
  %v5510 = vmul.f32 %v3470, %v5021
  %v5511 = vmul.f32 %v3471, %v5021
  %v5512 = vmul.f32 %v3472, %v5026
  %v5513 = vmul.f32 %v3473, %v5026
  %v5514 = vmul.f32 %v3474, %v5031
  %v5515 = vmul.f32 %v3475, %v5031
  %v5516 = vmul.f32 %v3476, %v5036
  %v5517 = vmul.f32 %v3477, %v5036
  %v5518 = vmul.f32 %v3478, %v5041
  %v5519 = vmul.f32 %v3479, %v5041
  %v5520 = vmul.f32 %v3480, %v5046
  %v5521 = vmul.f32 %v3481, %v5046
  %v5522 = vmul.f32 %v3482, %v5051
  %v5523 = vmul.f32 %v3483, %v5051
  %v5524 = vmul.f32 %v3484, %v5056
  %v5525 = vmul.f32 %v3485, %v5056
  %v5526 = vmul.f32 %v3486, %v5061
  %v5527 = vmul.f32 %v3487, %v5061
  %v5528 = vmul.f32 %v3488, %v5066
  %v5529 = vmul.f32 %v3489, %v5066
  %v5530 = vmul.f32 %v3490, %v5071
  %v5531 = vmul.f32 %v3491, %v5071
  %v5532 = vmul.f32 %v3492, %v5076
  %v5533 = vmul.f32 %v3493, %v5076
  %v5534 = vmul.f32 %v3494, %v5081
  %v5535 = vmul.f32 %v3495, %v5081
  %v5536 = vmul.f32 %v3496, %v5086
  %v5537 = vmul.f32 %v3497, %v5086
  %v5538 = vmul.f32 %v3498, %v5091
  %v5539 = vmul.f32 %v3499, %v5091
  %v5540 = vmul.f32 %v3500, %v5096
  %v5541 = vmul.f32 %v3501, %v5096
  %v5542 = vmul.f32 %v3502, %v5101
  %v5543 = vmul.f32 %v3503, %v5101
  %v5544 = vmul.f32 %v3504, %v5106
  %v5545 = vmul.f32 %v3505, %v5106
  %v5546 = vmul.f32 %v3506, %v5111
  %v5547 = vmul.f32 %v3507, %v5111
  %v5548 = vmul.f32 %v3508, %v5116
  %v5549 = vmul.f32 %v3509, %v5116
  %v5550 = vmul.f32 %v3510, %v5121
  %v5551 = vmul.f32 %v3511, %v5121
  %v5552 = vmul.f32 %v3512, %v5126
  %v5553 = vmul.f32 %v3513, %v5126
  %v5554 = vmul.f32 %v3514, %v5131
  %v5555 = vmul.f32 %v3515, %v5131
  %v5556 = vmul.f32 %v3516, %v5136
  %v5557 = vmul.f32 %v3517, %v5136
  %v5558 = vmul.f32 %v3518, %v5141
  %v5559 = vmul.f32 %v3519, %v5141
  %v5560 = vmul.f32 %v3520, %v5146
  %v5561 = vmul.f32 %v3521, %v5146
  %v5562 = vmul.f32 %v3522, %v5151
  %v5563 = vmul.f32 %v3523, %v5151
  %v5564 = vmul.f32 %v3524, %v5156
  %v5565 = vmul.f32 %v3525, %v5156
  %v5566 = vmul.f32 %v3526, %v5161
  %v5567 = vmul.f32 %v3527, %v5161
  %v5568 = vmul.f32 %v3528, %v5166
  %v5569 = vmul.f32 %v3529, %v5166
  %v5570 = vmul.f32 %v3530, %v5171
  %v5571 = vmul.f32 %v3531, %v5171
  %v5572 = vmul.f32 %v3532, %v5176
  %v5573 = vmul.f32 %v3533, %v5176
  %v5574 = vmul.f32 %v3534, %v5181
  %v5575 = vmul.f32 %v3535, %v5181
  %v5576 = vmul.f32 %v3536, %v5186
  %v5577 = vmul.f32 %v3537, %v5186
  %v5578 = vmul.f32 %v3538, %v5191
  %v5579 = vmul.f32 %v3539, %v5191
  %v5580 = vmul.f32 %v3540, %v5196
  %v5581 = vmul.f32 %v3541, %v5196
  %v5582 = vmul.f32 %v3542, %v5201
  %v5583 = vmul.f32 %v3543, %v5201
  %v5584 = vmul.f32 %v3544, %v5206
  %v5585 = vmul.f32 %v3545, %v5206
  %v5586 = vmul.f32 %v3546, %v5211
  %v5587 = vmul.f32 %v3547, %v5211
  %v5588 = vmul.f32 %v3548, %v5216
  %v5589 = vmul.f32 %v3549, %v5216
  %v5590 = vmul.f32 %v3550, %v5221
  %v5591 = vmul.f32 %v3551, %v5221
  %v5592 = vmul.f32 %v3552, %v5226
  %v5593 = vmul.f32 %v3553, %v5226
  %v5594 = vmul.f32 %v3554, %v5231
  %v5595 = vmul.f32 %v3555, %v5231
  %v5596 = vmul.f32 %v3556, %v5236
  %v5597 = vmul.f32 %v3557, %v5236
  %v5598 = vmul.f32 %v3558, %v5241
  %v5599 = vmul.f32 %v3559, %v5241
  %v5600 = vmul.f32 %v3560, %v5246
  %v5601 = vmul.f32 %v3561, %v5246
  %v5602 = vmul.f32 %v3562, %v5251
  %v5603 = vmul.f32 %v3563, %v5251
  %v5604 = vmul.f32 %v3564, %v5256
  %v5605 = vmul.f32 %v3565, %v5256
  %v5606 = vmul.f32 %v3566, %v5261
  %v5607 = vmul.f32 %v3567, %v5261
  %v5608 = vmul.f32 %v3568, %v5266
  %v5609 = vmul.f32 %v3569, %v5266
  %v5610 = vmul.f32 %v3570, %v5271
  %v5611 = vmul.f32 %v3571, %v5271
  %v5612 = vmul.f32 %v3572, %v5276
  %v5613 = vmul.f32 %v3573, %v5276
  %v5614 = vmul.f32 %v3574, %v5281
  %v5615 = vmul.f32 %v3575, %v5281
  %v5616 = vmul.f32 %v3576, %v5286
  %v5617 = vmul.f32 %v3577, %v5286
  %v5618 = vmul.f32 %v3578, %v5291
  %v5619 = vmul.f32 %v3579, %v5291
  %v5620 = vmul.f32 %v3580, %v5296
  %v5621 = vmul.f32 %v3581, %v5296
  %v5622 = vmul.f32 %v3582, %v5301
  %v5623 = vmul.f32 %v3583, %v5301
  %v5624 = vmul.f32 %v3584, %v5306
  %v5625 = vmul.f32 %v3585, %v5306
  %v5626 = vmul.f32 %v3586, %v5311
  %v5627 = vmul.f32 %v3587, %v5311
  %v5628 = vmul.f32 %v3588, %v5316
  %v5629 = vmul.f32 %v3589, %v5316
  %v5630 = vmul.f32 %v3590, %v5321
  %v5631 = vmul.f32 %v3591, %v5321
  %v5632 = vmul.f32 %v3592, %v5326
  %v5633 = vmul.f32 %v3593, %v5326
  %v5634 = vmul.f32 %v3594, %v5331
  %v5635 = vmul.f32 %v3595, %v5331
  %v5636 = vmul.f32 %v3596, %v5336
  %v5637 = vmul.f32 %v3597, %v5336
  %v5638 = vmul.f32 %v3598, %v5341
  %v5639 = vmul.f32 %v3599, %v5341
  %v5640 = vmul.f32 %v3600, %v5346
  %v5641 = vmul.f32 %v3601, %v5346
  %v5642 = vmul.f32 %v3602, %v5351
  %v5643 = vmul.f32 %v3603, %v5351
  %v5644 = vmul.f32 %v3604, %v5356
  %v5645 = vmul.f32 %v3605, %v5356
  %v5646 = vmul.f32 %v3606, %v5361
  %v5647 = vmul.f32 %v3607, %v5361
  %v5648 = vmul.f32 %v3608, %v5366
  %v5649 = vmul.f32 %v3609, %v5366
  %v5650 = vmul.f32 %v3610, %v5371
  %v5651 = vmul.f32 %v3611, %v5371
  %v5652 = vmul.f32 %v3612, %v5376
  %v5653 = vmul.f32 %v3613, %v5376
  %v5654 = vmul.f32 %v3614, %v5381
  %v5655 = vmul.f32 %v3615, %v5381
  %v5656 = vmul.f32 %v3616, %v5386
  %v5657 = vmul.f32 %v3617, %v5386
  %v5658 = vmul.f32 %v3618, %v5391
  %v5659 = vmul.f32 %v3619, %v5391
  %v5660 = vmul.f32 %v3620, %v5396
  %v5661 = vmul.f32 %v3621, %v5396
  %v5662 = vmul.f32 %v3622, %v5401
  %v5663 = vmul.f32 %v3623, %v5401
  %v5664 = vmul.f32 %v3624, %v5406
  %v5665 = vmul.f32 %v3625, %v5406
  %v5666 = vmul.f32 %v3626, %v5411
  %v5667 = vmul.f32 %v3627, %v5411
  %v5668 = vmul.f32 %v3628, %v5416
  %v5669 = vmul.f32 %v3629, %v5416
  %v5670 = vmul.f32 %v3630, %v5421
  %v5671 = vmul.f32 %v3631, %v5421
  %v5672 = vmul.f32 %v3632, %v5426
  %v5673 = vmul.f32 %v3633, %v5426
  %v5674 = vmul.f32 %v3634, %v5431
  %v5675 = vmul.f32 %v3635, %v5431
  %v5676 = vmul.f32 %v3636, %v5436
  %v5677 = vmul.f32 %v3637, %v5436
  %5679 = vset.pattern.permute.xlu0 1
  %5680 = vperm.xlu0 %5679, %v2678
  %v5681 = vpop.permute.xlu0 %5680
  %5684 = vset.pattern.permute.xlu0 1
  %5685 = vperm.xlu0 %5684, %v2679
  %v5686 = vpop.permute.xlu0 %5685
  %5689 = vset.pattern.permute.xlu0 1
  %5690 = vperm.xlu0 %5689, %v2680
  %v5691 = vpop.permute.xlu0 %5690
  %5694 = vset.pattern.permute.xlu0 1
  %5695 = vperm.xlu0 %5694, %v2681
  %v5696 = vpop.permute.xlu0 %5695
  %5699 = vset.pattern.permute.xlu0 1
  %5700 = vperm.xlu0 %5699, %v2682
  %v5701 = vpop.permute.xlu0 %5700
  %5704 = vset.pattern.permute.xlu0 1
  %5705 = vperm.xlu0 %5704, %v2683
  %v5706 = vpop.permute.xlu0 %5705
  %5709 = vset.pattern.permute.xlu0 1
  %5710 = vperm.xlu0 %5709, %v2684
  %v5711 = vpop.permute.xlu0 %5710
  %5714 = vset.pattern.permute.xlu0 1
  %5715 = vperm.xlu0 %5714, %v2685
  %v5716 = vpop.permute.xlu0 %5715
  %5719 = vset.pattern.permute.xlu0 1
  %5720 = vperm.xlu0 %5719, %v2686
  %v5721 = vpop.permute.xlu0 %5720
  %5724 = vset.pattern.permute.xlu0 1
  %5725 = vperm.xlu0 %5724, %v2687
  %v5726 = vpop.permute.xlu0 %5725
  %5729 = vset.pattern.permute.xlu0 1
  %5730 = vperm.xlu0 %5729, %v2688
  %v5731 = vpop.permute.xlu0 %5730
  %5734 = vset.pattern.permute.xlu0 1
  %5735 = vperm.xlu0 %5734, %v2689
  %v5736 = vpop.permute.xlu0 %5735
  %5739 = vset.pattern.permute.xlu0 1
  %5740 = vperm.xlu0 %5739, %v2690
  %v5741 = vpop.permute.xlu0 %5740
  %5744 = vset.pattern.permute.xlu0 1
  %5745 = vperm.xlu0 %5744, %v2691
  %v5746 = vpop.permute.xlu0 %5745
  %5749 = vset.pattern.permute.xlu0 1
  %5750 = vperm.xlu0 %5749, %v2692
  %v5751 = vpop.permute.xlu0 %5750
  %5754 = vset.pattern.permute.xlu0 1
  %5755 = vperm.xlu0 %5754, %v2693
  %v5756 = vpop.permute.xlu0 %5755
  %5759 = vset.pattern.permute.xlu0 1
  %5760 = vperm.xlu0 %5759, %v2694
  %v5761 = vpop.permute.xlu0 %5760
  %5764 = vset.pattern.permute.xlu0 1
  %5765 = vperm.xlu0 %5764, %v2695
  %v5766 = vpop.permute.xlu0 %5765
  %5769 = vset.pattern.permute.xlu0 1
  %5770 = vperm.xlu0 %5769, %v2696
  %v5771 = vpop.permute.xlu0 %5770
  %5774 = vset.pattern.permute.xlu0 1
  %5775 = vperm.xlu0 %5774, %v2697
  %v5776 = vpop.permute.xlu0 %5775
  %5779 = vset.pattern.permute.xlu0 1
  %5780 = vperm.xlu0 %5779, %v2698
  %v5781 = vpop.permute.xlu0 %5780
  %5784 = vset.pattern.permute.xlu0 1
  %5785 = vperm.xlu0 %5784, %v2699
  %v5786 = vpop.permute.xlu0 %5785
  %5789 = vset.pattern.permute.xlu0 1
  %5790 = vperm.xlu0 %5789, %v2700
  %v5791 = vpop.permute.xlu0 %5790
  %5794 = vset.pattern.permute.xlu0 1
  %5795 = vperm.xlu0 %5794, %v2701
  %v5796 = vpop.permute.xlu0 %5795
  %5799 = vset.pattern.permute.xlu0 1
  %5800 = vperm.xlu0 %5799, %v2702
  %v5801 = vpop.permute.xlu0 %5800
  %5804 = vset.pattern.permute.xlu0 1
  %5805 = vperm.xlu0 %5804, %v2703
  %v5806 = vpop.permute.xlu0 %5805
  %5809 = vset.pattern.permute.xlu0 1
  %5810 = vperm.xlu0 %5809, %v2704
  %v5811 = vpop.permute.xlu0 %5810
  %5814 = vset.pattern.permute.xlu0 1
  %5815 = vperm.xlu0 %5814, %v2705
  %v5816 = vpop.permute.xlu0 %5815
  %5819 = vset.pattern.permute.xlu0 1
  %5820 = vperm.xlu0 %5819, %v2706
  %v5821 = vpop.permute.xlu0 %5820
  %5824 = vset.pattern.permute.xlu0 1
  %5825 = vperm.xlu0 %5824, %v2707
  %v5826 = vpop.permute.xlu0 %5825
  %5829 = vset.pattern.permute.xlu0 1
  %5830 = vperm.xlu0 %5829, %v2708
  %v5831 = vpop.permute.xlu0 %5830
  %5834 = vset.pattern.permute.xlu0 1
  %5835 = vperm.xlu0 %5834, %v2709
  %v5836 = vpop.permute.xlu0 %5835
  %5839 = vset.pattern.permute.xlu0 1
  %5840 = vperm.xlu0 %5839, %v2710
  %v5841 = vpop.permute.xlu0 %5840
  %5844 = vset.pattern.permute.xlu0 1
  %5845 = vperm.xlu0 %5844, %v2711
  %v5846 = vpop.permute.xlu0 %5845
  %5849 = vset.pattern.permute.xlu0 1
  %5850 = vperm.xlu0 %5849, %v2712
  %v5851 = vpop.permute.xlu0 %5850
  %5854 = vset.pattern.permute.xlu0 1
  %5855 = vperm.xlu0 %5854, %v2713
  %v5856 = vpop.permute.xlu0 %5855
  %5859 = vset.pattern.permute.xlu0 1
  %5860 = vperm.xlu0 %5859, %v2714
  %v5861 = vpop.permute.xlu0 %5860
  %5864 = vset.pattern.permute.xlu0 1
  %5865 = vperm.xlu0 %5864, %v2715
  %v5866 = vpop.permute.xlu0 %5865
  %5869 = vset.pattern.permute.xlu0 1
  %5870 = vperm.xlu0 %5869, %v2716
  %v5871 = vpop.permute.xlu0 %5870
  %5874 = vset.pattern.permute.xlu0 1
  %5875 = vperm.xlu0 %5874, %v2717
  %v5876 = vpop.permute.xlu0 %5875
  %5879 = vset.pattern.permute.xlu0 1
  %5880 = vperm.xlu0 %5879, %v2718
  %v5881 = vpop.permute.xlu0 %5880
  %5884 = vset.pattern.permute.xlu0 1
  %5885 = vperm.xlu0 %5884, %v2719
  %v5886 = vpop.permute.xlu0 %5885
  %5889 = vset.pattern.permute.xlu0 1
  %5890 = vperm.xlu0 %5889, %v2720
  %v5891 = vpop.permute.xlu0 %5890
  %5894 = vset.pattern.permute.xlu0 1
  %5895 = vperm.xlu0 %5894, %v2721
  %v5896 = vpop.permute.xlu0 %5895
  %5899 = vset.pattern.permute.xlu0 1
  %5900 = vperm.xlu0 %5899, %v2722
  %v5901 = vpop.permute.xlu0 %5900
  %5904 = vset.pattern.permute.xlu0 1
  %5905 = vperm.xlu0 %5904, %v2723
  %v5906 = vpop.permute.xlu0 %5905
  %5909 = vset.pattern.permute.xlu0 1
  %5910 = vperm.xlu0 %5909, %v2724
  %v5911 = vpop.permute.xlu0 %5910
  %5914 = vset.pattern.permute.xlu0 1
  %5915 = vperm.xlu0 %5914, %v2725
  %v5916 = vpop.permute.xlu0 %5915
  %5919 = vset.pattern.permute.xlu0 1
  %5920 = vperm.xlu0 %5919, %v2726
  %v5921 = vpop.permute.xlu0 %5920
  %5924 = vset.pattern.permute.xlu0 1
  %5925 = vperm.xlu0 %5924, %v2727
  %v5926 = vpop.permute.xlu0 %5925
  %5929 = vset.pattern.permute.xlu0 1
  %5930 = vperm.xlu0 %5929, %v2728
  %v5931 = vpop.permute.xlu0 %5930
  %5934 = vset.pattern.permute.xlu0 1
  %5935 = vperm.xlu0 %5934, %v2729
  %v5936 = vpop.permute.xlu0 %5935
  %5939 = vset.pattern.permute.xlu0 1
  %5940 = vperm.xlu0 %5939, %v2730
  %v5941 = vpop.permute.xlu0 %5940
  %5944 = vset.pattern.permute.xlu0 1
  %5945 = vperm.xlu0 %5944, %v2731
  %v5946 = vpop.permute.xlu0 %5945
  %5949 = vset.pattern.permute.xlu0 1
  %5950 = vperm.xlu0 %5949, %v2732
  %v5951 = vpop.permute.xlu0 %5950
  %5954 = vset.pattern.permute.xlu0 1
  %5955 = vperm.xlu0 %5954, %v2733
  %v5956 = vpop.permute.xlu0 %5955
  %5959 = vset.pattern.permute.xlu0 1
  %5960 = vperm.xlu0 %5959, %v2734
  %v5961 = vpop.permute.xlu0 %5960
  %5964 = vset.pattern.permute.xlu0 1
  %5965 = vperm.xlu0 %5964, %v2735
  %v5966 = vpop.permute.xlu0 %5965
  %5969 = vset.pattern.permute.xlu0 1
  %5970 = vperm.xlu0 %5969, %v2736
  %v5971 = vpop.permute.xlu0 %5970
  %5974 = vset.pattern.permute.xlu0 1
  %5975 = vperm.xlu0 %5974, %v2737
  %v5976 = vpop.permute.xlu0 %5975
  %5979 = vset.pattern.permute.xlu0 1
  %5980 = vperm.xlu0 %5979, %v2738
  %v5981 = vpop.permute.xlu0 %5980
  %5984 = vset.pattern.permute.xlu0 1
  %5985 = vperm.xlu0 %5984, %v2739
  %v5986 = vpop.permute.xlu0 %5985
  %5989 = vset.pattern.permute.xlu0 1
  %5990 = vperm.xlu0 %5989, %v2740
  %v5991 = vpop.permute.xlu0 %5990
  %5994 = vset.pattern.permute.xlu0 1
  %5995 = vperm.xlu0 %5994, %v2741
  %v5996 = vpop.permute.xlu0 %5995
  %5999 = vset.pattern.permute.xlu0 1
  %6000 = vperm.xlu0 %5999, %v2742
  %v6001 = vpop.permute.xlu0 %6000
  %6004 = vset.pattern.permute.xlu0 1
  %6005 = vperm.xlu0 %6004, %v2743
  %v6006 = vpop.permute.xlu0 %6005
  %6009 = vset.pattern.permute.xlu0 1
  %6010 = vperm.xlu0 %6009, %v2744
  %v6011 = vpop.permute.xlu0 %6010
  %6014 = vset.pattern.permute.xlu0 1
  %6015 = vperm.xlu0 %6014, %v2745
  %v6016 = vpop.permute.xlu0 %6015
  %6019 = vset.pattern.permute.xlu0 1
  %6020 = vperm.xlu0 %6019, %v2746
  %v6021 = vpop.permute.xlu0 %6020
  %6024 = vset.pattern.permute.xlu0 1
  %6025 = vperm.xlu0 %6024, %v2747
  %v6026 = vpop.permute.xlu0 %6025
  %6029 = vset.pattern.permute.xlu0 1
  %6030 = vperm.xlu0 %6029, %v2748
  %v6031 = vpop.permute.xlu0 %6030
  %6034 = vset.pattern.permute.xlu0 1
  %6035 = vperm.xlu0 %6034, %v2749
  %v6036 = vpop.permute.xlu0 %6035
  %6039 = vset.pattern.permute.xlu0 1
  %6040 = vperm.xlu0 %6039, %v2750
  %v6041 = vpop.permute.xlu0 %6040
  %6044 = vset.pattern.permute.xlu0 1
  %6045 = vperm.xlu0 %6044, %v2751
  %v6046 = vpop.permute.xlu0 %6045
  %6049 = vset.pattern.permute.xlu0 1
  %6050 = vperm.xlu0 %6049, %v2752
  %v6051 = vpop.permute.xlu0 %6050
  %6054 = vset.pattern.permute.xlu0 1
  %6055 = vperm.xlu0 %6054, %v2753
  %v6056 = vpop.permute.xlu0 %6055
  %6059 = vset.pattern.permute.xlu0 1
  %6060 = vperm.xlu0 %6059, %v2754
  %v6061 = vpop.permute.xlu0 %6060
  %6064 = vset.pattern.permute.xlu0 1
  %6065 = vperm.xlu0 %6064, %v2755
  %v6066 = vpop.permute.xlu0 %6065
  %6069 = vset.pattern.permute.xlu0 1
  %6070 = vperm.xlu0 %6069, %v2756
  %v6071 = vpop.permute.xlu0 %6070
  %6074 = vset.pattern.permute.xlu0 1
  %6075 = vperm.xlu0 %6074, %v2757
  %v6076 = vpop.permute.xlu0 %6075
  %6079 = vset.pattern.permute.xlu0 1
  %6080 = vperm.xlu0 %6079, %v2758
  %v6081 = vpop.permute.xlu0 %6080
  %6084 = vset.pattern.permute.xlu0 1
  %6085 = vperm.xlu0 %6084, %v2759
  %v6086 = vpop.permute.xlu0 %6085
  %6089 = vset.pattern.permute.xlu0 1
  %6090 = vperm.xlu0 %6089, %v2760
  %v6091 = vpop.permute.xlu0 %6090
  %6094 = vset.pattern.permute.xlu0 1
  %6095 = vperm.xlu0 %6094, %v2761
  %v6096 = vpop.permute.xlu0 %6095
  %6099 = vset.pattern.permute.xlu0 1
  %6100 = vperm.xlu0 %6099, %v2762
  %v6101 = vpop.permute.xlu0 %6100
  %6104 = vset.pattern.permute.xlu0 1
  %6105 = vperm.xlu0 %6104, %v2763
  %v6106 = vpop.permute.xlu0 %6105
  %6109 = vset.pattern.permute.xlu0 1
  %6110 = vperm.xlu0 %6109, %v2764
  %v6111 = vpop.permute.xlu0 %6110
  %6114 = vset.pattern.permute.xlu0 1
  %6115 = vperm.xlu0 %6114, %v2765
  %v6116 = vpop.permute.xlu0 %6115
  %6119 = vset.pattern.permute.xlu0 1
  %6120 = vperm.xlu0 %6119, %v2766
  %v6121 = vpop.permute.xlu0 %6120
  %6124 = vset.pattern.permute.xlu0 1
  %6125 = vperm.xlu0 %6124, %v2767
  %v6126 = vpop.permute.xlu0 %6125
  %6129 = vset.pattern.permute.xlu0 1
  %6130 = vperm.xlu0 %6129, %v2768
  %v6131 = vpop.permute.xlu0 %6130
  %6134 = vset.pattern.permute.xlu0 1
  %6135 = vperm.xlu0 %6134, %v2769
  %v6136 = vpop.permute.xlu0 %6135
  %6139 = vset.pattern.permute.xlu0 1
  %6140 = vperm.xlu0 %6139, %v2770
  %v6141 = vpop.permute.xlu0 %6140
  %6144 = vset.pattern.permute.xlu0 1
  %6145 = vperm.xlu0 %6144, %v2771
  %v6146 = vpop.permute.xlu0 %6145
  %6149 = vset.pattern.permute.xlu0 1
  %6150 = vperm.xlu0 %6149, %v2772
  %v6151 = vpop.permute.xlu0 %6150
  %6154 = vset.pattern.permute.xlu0 1
  %6155 = vperm.xlu0 %6154, %v2773
  %v6156 = vpop.permute.xlu0 %6155
  %6159 = vset.pattern.permute.xlu0 1
  %6160 = vperm.xlu0 %6159, %v2774
  %v6161 = vpop.permute.xlu0 %6160
  %6164 = vset.pattern.permute.xlu0 1
  %6165 = vperm.xlu0 %6164, %v2775
  %v6166 = vpop.permute.xlu0 %6165
  %6169 = vset.pattern.permute.xlu0 1
  %6170 = vperm.xlu0 %6169, %v2776
  %v6171 = vpop.permute.xlu0 %6170
  %6174 = vset.pattern.permute.xlu0 1
  %6175 = vperm.xlu0 %6174, %v2777
  %v6176 = vpop.permute.xlu0 %6175
  %6179 = vset.pattern.permute.xlu0 1
  %6180 = vperm.xlu0 %6179, %v2778
  %v6181 = vpop.permute.xlu0 %6180
  %6184 = vset.pattern.permute.xlu0 1
  %6185 = vperm.xlu0 %6184, %v2779
  %v6186 = vpop.permute.xlu0 %6185
  %6189 = vset.pattern.permute.xlu0 1
  %6190 = vperm.xlu0 %6189, %v2780
  %v6191 = vpop.permute.xlu0 %6190
  %6194 = vset.pattern.permute.xlu0 1
  %6195 = vperm.xlu0 %6194, %v2781
  %v6196 = vpop.permute.xlu0 %6195
  %6199 = vset.pattern.permute.xlu0 1
  %6200 = vperm.xlu0 %6199, %v2782
  %v6201 = vpop.permute.xlu0 %6200
  %6204 = vset.pattern.permute.xlu0 1
  %6205 = vperm.xlu0 %6204, %v2783
  %v6206 = vpop.permute.xlu0 %6205
  %6209 = vset.pattern.permute.xlu0 1
  %6210 = vperm.xlu0 %6209, %v2784
  %v6211 = vpop.permute.xlu0 %6210
  %6214 = vset.pattern.permute.xlu0 1
  %6215 = vperm.xlu0 %6214, %v2785
  %v6216 = vpop.permute.xlu0 %6215
  %6219 = vset.pattern.permute.xlu0 1
  %6220 = vperm.xlu0 %6219, %v2786
  %v6221 = vpop.permute.xlu0 %6220
  %6224 = vset.pattern.permute.xlu0 1
  %6225 = vperm.xlu0 %6224, %v2787
  %v6226 = vpop.permute.xlu0 %6225
  %6229 = vset.pattern.permute.xlu0 1
  %6230 = vperm.xlu0 %6229, %v2788
  %v6231 = vpop.permute.xlu0 %6230
  %6234 = vset.pattern.permute.xlu0 1
  %6235 = vperm.xlu0 %6234, %v2789
  %v6236 = vpop.permute.xlu0 %6235
  %6239 = vset.pattern.permute.xlu0 1
  %6240 = vperm.xlu0 %6239, %v2790
  %v6241 = vpop.permute.xlu0 %6240
  %6244 = vset.pattern.permute.xlu0 1
  %6245 = vperm.xlu0 %6244, %v2791
  %v6246 = vpop.permute.xlu0 %6245
  %6249 = vset.pattern.permute.xlu0 1
  %6250 = vperm.xlu0 %6249, %v2792
  %v6251 = vpop.permute.xlu0 %6250
  %6254 = vset.pattern.permute.xlu0 1
  %6255 = vperm.xlu0 %6254, %v2793
  %v6256 = vpop.permute.xlu0 %6255
  %6259 = vset.pattern.permute.xlu0 1
  %6260 = vperm.xlu0 %6259, %v2794
  %v6261 = vpop.permute.xlu0 %6260
  %6264 = vset.pattern.permute.xlu0 1
  %6265 = vperm.xlu0 %6264, %v2795
  %v6266 = vpop.permute.xlu0 %6265
  %6269 = vset.pattern.permute.xlu0 1
  %6270 = vperm.xlu0 %6269, %v2796
  %v6271 = vpop.permute.xlu0 %6270
  %6274 = vset.pattern.permute.xlu0 1
  %6275 = vperm.xlu0 %6274, %v2797
  %v6276 = vpop.permute.xlu0 %6275
  %v6278 = vadd.f32 %v5438, %v5681
  %v6279 = vadd.f32 %v5439, %v5681
  %v6280 = vadd.f32 %v5440, %v5686
  %v6281 = vadd.f32 %v5441, %v5686
  %v6282 = vadd.f32 %v5442, %v5691
  %v6283 = vadd.f32 %v5443, %v5691
  %v6284 = vadd.f32 %v5444, %v5696
  %v6285 = vadd.f32 %v5445, %v5696
  %v6286 = vadd.f32 %v5446, %v5701
  %v6287 = vadd.f32 %v5447, %v5701
  %v6288 = vadd.f32 %v5448, %v5706
  %v6289 = vadd.f32 %v5449, %v5706
  %v6290 = vadd.f32 %v5450, %v5711
  %v6291 = vadd.f32 %v5451, %v5711
  %v6292 = vadd.f32 %v5452, %v5716
  %v6293 = vadd.f32 %v5453, %v5716
  %v6294 = vadd.f32 %v5454, %v5721
  %v6295 = vadd.f32 %v5455, %v5721
  %v6296 = vadd.f32 %v5456, %v5726
  %v6297 = vadd.f32 %v5457, %v5726
  %v6298 = vadd.f32 %v5458, %v5731
  %v6299 = vadd.f32 %v5459, %v5731
  %v6300 = vadd.f32 %v5460, %v5736
  %v6301 = vadd.f32 %v5461, %v5736
  %v6302 = vadd.f32 %v5462, %v5741
  %v6303 = vadd.f32 %v5463, %v5741
  %v6304 = vadd.f32 %v5464, %v5746
  %v6305 = vadd.f32 %v5465, %v5746
  %v6306 = vadd.f32 %v5466, %v5751
  %v6307 = vadd.f32 %v5467, %v5751
  %v6308 = vadd.f32 %v5468, %v5756
  %v6309 = vadd.f32 %v5469, %v5756
  %v6310 = vadd.f32 %v5470, %v5761
  %v6311 = vadd.f32 %v5471, %v5761
  %v6312 = vadd.f32 %v5472, %v5766
  %v6313 = vadd.f32 %v5473, %v5766
  %v6314 = vadd.f32 %v5474, %v5771
  %v6315 = vadd.f32 %v5475, %v5771
  %v6316 = vadd.f32 %v5476, %v5776
  %v6317 = vadd.f32 %v5477, %v5776
  %v6318 = vadd.f32 %v5478, %v5781
  %v6319 = vadd.f32 %v5479, %v5781
  %v6320 = vadd.f32 %v5480, %v5786
  %v6321 = vadd.f32 %v5481, %v5786
  %v6322 = vadd.f32 %v5482, %v5791
  %v6323 = vadd.f32 %v5483, %v5791
  %v6324 = vadd.f32 %v5484, %v5796
  %v6325 = vadd.f32 %v5485, %v5796
  %v6326 = vadd.f32 %v5486, %v5801
  %v6327 = vadd.f32 %v5487, %v5801
  %v6328 = vadd.f32 %v5488, %v5806
  %v6329 = vadd.f32 %v5489, %v5806
  %v6330 = vadd.f32 %v5490, %v5811
  %v6331 = vadd.f32 %v5491, %v5811
  %v6332 = vadd.f32 %v5492, %v5816
  %v6333 = vadd.f32 %v5493, %v5816
  %v6334 = vadd.f32 %v5494, %v5821
  %v6335 = vadd.f32 %v5495, %v5821
  %v6336 = vadd.f32 %v5496, %v5826
  %v6337 = vadd.f32 %v5497, %v5826
  %v6338 = vadd.f32 %v5498, %v5831
  %v6339 = vadd.f32 %v5499, %v5831
  %v6340 = vadd.f32 %v5500, %v5836
  %v6341 = vadd.f32 %v5501, %v5836
  %v6342 = vadd.f32 %v5502, %v5841
  %v6343 = vadd.f32 %v5503, %v5841
  %v6344 = vadd.f32 %v5504, %v5846
  %v6345 = vadd.f32 %v5505, %v5846
  %v6346 = vadd.f32 %v5506, %v5851
  %v6347 = vadd.f32 %v5507, %v5851
  %v6348 = vadd.f32 %v5508, %v5856
  %v6349 = vadd.f32 %v5509, %v5856
  %v6350 = vadd.f32 %v5510, %v5861
  %v6351 = vadd.f32 %v5511, %v5861
  %v6352 = vadd.f32 %v5512, %v5866
  %v6353 = vadd.f32 %v5513, %v5866
  %v6354 = vadd.f32 %v5514, %v5871
  %v6355 = vadd.f32 %v5515, %v5871
  %v6356 = vadd.f32 %v5516, %v5876
  %v6357 = vadd.f32 %v5517, %v5876
  %v6358 = vadd.f32 %v5518, %v5881
  %v6359 = vadd.f32 %v5519, %v5881
  %v6360 = vadd.f32 %v5520, %v5886
  %v6361 = vadd.f32 %v5521, %v5886
  %v6362 = vadd.f32 %v5522, %v5891
  %v6363 = vadd.f32 %v5523, %v5891
  %v6364 = vadd.f32 %v5524, %v5896
  %v6365 = vadd.f32 %v5525, %v5896
  %v6366 = vadd.f32 %v5526, %v5901
  %v6367 = vadd.f32 %v5527, %v5901
  %v6368 = vadd.f32 %v5528, %v5906
  %v6369 = vadd.f32 %v5529, %v5906
  %v6370 = vadd.f32 %v5530, %v5911
  %v6371 = vadd.f32 %v5531, %v5911
  %v6372 = vadd.f32 %v5532, %v5916
  %v6373 = vadd.f32 %v5533, %v5916
  %v6374 = vadd.f32 %v5534, %v5921
  %v6375 = vadd.f32 %v5535, %v5921
  %v6376 = vadd.f32 %v5536, %v5926
  %v6377 = vadd.f32 %v5537, %v5926
  %v6378 = vadd.f32 %v5538, %v5931
  %v6379 = vadd.f32 %v5539, %v5931
  %v6380 = vadd.f32 %v5540, %v5936
  %v6381 = vadd.f32 %v5541, %v5936
  %v6382 = vadd.f32 %v5542, %v5941
  %v6383 = vadd.f32 %v5543, %v5941
  %v6384 = vadd.f32 %v5544, %v5946
  %v6385 = vadd.f32 %v5545, %v5946
  %v6386 = vadd.f32 %v5546, %v5951
  %v6387 = vadd.f32 %v5547, %v5951
  %v6388 = vadd.f32 %v5548, %v5956
  %v6389 = vadd.f32 %v5549, %v5956
  %v6390 = vadd.f32 %v5550, %v5961
  %v6391 = vadd.f32 %v5551, %v5961
  %v6392 = vadd.f32 %v5552, %v5966
  %v6393 = vadd.f32 %v5553, %v5966
  %v6394 = vadd.f32 %v5554, %v5971
  %v6395 = vadd.f32 %v5555, %v5971
  %v6396 = vadd.f32 %v5556, %v5976
  %v6397 = vadd.f32 %v5557, %v5976
  %v6398 = vadd.f32 %v5558, %v5981
  %v6399 = vadd.f32 %v5559, %v5981
  %v6400 = vadd.f32 %v5560, %v5986
  %v6401 = vadd.f32 %v5561, %v5986
  %v6402 = vadd.f32 %v5562, %v5991
  %v6403 = vadd.f32 %v5563, %v5991
  %v6404 = vadd.f32 %v5564, %v5996
  %v6405 = vadd.f32 %v5565, %v5996
  %v6406 = vadd.f32 %v5566, %v6001
  %v6407 = vadd.f32 %v5567, %v6001
  %v6408 = vadd.f32 %v5568, %v6006
  %v6409 = vadd.f32 %v5569, %v6006
  %v6410 = vadd.f32 %v5570, %v6011
  %v6411 = vadd.f32 %v5571, %v6011
  %v6412 = vadd.f32 %v5572, %v6016
  %v6413 = vadd.f32 %v5573, %v6016
  %v6414 = vadd.f32 %v5574, %v6021
  %v6415 = vadd.f32 %v5575, %v6021
  %v6416 = vadd.f32 %v5576, %v6026
  %v6417 = vadd.f32 %v5577, %v6026
  %v6418 = vadd.f32 %v5578, %v6031
  %v6419 = vadd.f32 %v5579, %v6031
  %v6420 = vadd.f32 %v5580, %v6036
  %v6421 = vadd.f32 %v5581, %v6036
  %v6422 = vadd.f32 %v5582, %v6041
  %v6423 = vadd.f32 %v5583, %v6041
  %v6424 = vadd.f32 %v5584, %v6046
  %v6425 = vadd.f32 %v5585, %v6046
  %v6426 = vadd.f32 %v5586, %v6051
  %v6427 = vadd.f32 %v5587, %v6051
  %v6428 = vadd.f32 %v5588, %v6056
  %v6429 = vadd.f32 %v5589, %v6056
  %v6430 = vadd.f32 %v5590, %v6061
  %v6431 = vadd.f32 %v5591, %v6061
  %v6432 = vadd.f32 %v5592, %v6066
  %v6433 = vadd.f32 %v5593, %v6066
  %v6434 = vadd.f32 %v5594, %v6071
  %v6435 = vadd.f32 %v5595, %v6071
  %v6436 = vadd.f32 %v5596, %v6076
  %v6437 = vadd.f32 %v5597, %v6076
  %v6438 = vadd.f32 %v5598, %v6081
  %v6439 = vadd.f32 %v5599, %v6081
  %v6440 = vadd.f32 %v5600, %v6086
  %v6441 = vadd.f32 %v5601, %v6086
  %v6442 = vadd.f32 %v5602, %v6091
  %v6443 = vadd.f32 %v5603, %v6091
  %v6444 = vadd.f32 %v5604, %v6096
  %v6445 = vadd.f32 %v5605, %v6096
  %v6446 = vadd.f32 %v5606, %v6101
  %v6447 = vadd.f32 %v5607, %v6101
  %v6448 = vadd.f32 %v5608, %v6106
  %v6449 = vadd.f32 %v5609, %v6106
  %v6450 = vadd.f32 %v5610, %v6111
  %v6451 = vadd.f32 %v5611, %v6111
  %v6452 = vadd.f32 %v5612, %v6116
  %v6453 = vadd.f32 %v5613, %v6116
  %v6454 = vadd.f32 %v5614, %v6121
  %v6455 = vadd.f32 %v5615, %v6121
  %v6456 = vadd.f32 %v5616, %v6126
  %v6457 = vadd.f32 %v5617, %v6126
  %v6458 = vadd.f32 %v5618, %v6131
  %v6459 = vadd.f32 %v5619, %v6131
  %v6460 = vadd.f32 %v5620, %v6136
  %v6461 = vadd.f32 %v5621, %v6136
  %v6462 = vadd.f32 %v5622, %v6141
  %v6463 = vadd.f32 %v5623, %v6141
  %v6464 = vadd.f32 %v5624, %v6146
  %v6465 = vadd.f32 %v5625, %v6146
  %v6466 = vadd.f32 %v5626, %v6151
  %v6467 = vadd.f32 %v5627, %v6151
  %v6468 = vadd.f32 %v5628, %v6156
  %v6469 = vadd.f32 %v5629, %v6156
  %v6470 = vadd.f32 %v5630, %v6161
  %v6471 = vadd.f32 %v5631, %v6161
  %v6472 = vadd.f32 %v5632, %v6166
  %v6473 = vadd.f32 %v5633, %v6166
  %v6474 = vadd.f32 %v5634, %v6171
  %v6475 = vadd.f32 %v5635, %v6171
  %v6476 = vadd.f32 %v5636, %v6176
  %v6477 = vadd.f32 %v5637, %v6176
  %v6478 = vadd.f32 %v5638, %v6181
  %v6479 = vadd.f32 %v5639, %v6181
  %v6480 = vadd.f32 %v5640, %v6186
  %v6481 = vadd.f32 %v5641, %v6186
  %v6482 = vadd.f32 %v5642, %v6191
  %v6483 = vadd.f32 %v5643, %v6191
  %v6484 = vadd.f32 %v5644, %v6196
  %v6485 = vadd.f32 %v5645, %v6196
  %v6486 = vadd.f32 %v5646, %v6201
  %v6487 = vadd.f32 %v5647, %v6201
  %v6488 = vadd.f32 %v5648, %v6206
  %v6489 = vadd.f32 %v5649, %v6206
  %v6490 = vadd.f32 %v5650, %v6211
  %v6491 = vadd.f32 %v5651, %v6211
  %v6492 = vadd.f32 %v5652, %v6216
  %v6493 = vadd.f32 %v5653, %v6216
  %v6494 = vadd.f32 %v5654, %v6221
  %v6495 = vadd.f32 %v5655, %v6221
  %v6496 = vadd.f32 %v5656, %v6226
  %v6497 = vadd.f32 %v5657, %v6226
  %v6498 = vadd.f32 %v5658, %v6231
  %v6499 = vadd.f32 %v5659, %v6231
  %v6500 = vadd.f32 %v5660, %v6236
  %v6501 = vadd.f32 %v5661, %v6236
  %v6502 = vadd.f32 %v5662, %v6241
  %v6503 = vadd.f32 %v5663, %v6241
  %v6504 = vadd.f32 %v5664, %v6246
  %v6505 = vadd.f32 %v5665, %v6246
  %v6506 = vadd.f32 %v5666, %v6251
  %v6507 = vadd.f32 %v5667, %v6251
  %v6508 = vadd.f32 %v5668, %v6256
  %v6509 = vadd.f32 %v5669, %v6256
  %v6510 = vadd.f32 %v5670, %v6261
  %v6511 = vadd.f32 %v5671, %v6261
  %v6512 = vadd.f32 %v5672, %v6266
  %v6513 = vadd.f32 %v5673, %v6266
  %v6514 = vadd.f32 %v5674, %v6271
  %v6515 = vadd.f32 %v5675, %v6271
  %v6516 = vadd.f32 %v5676, %v6276
  %v6517 = vadd.f32 %v5677, %v6276
  %6518 = vst [vmem:[%s5] sm:$0xff] %v6278
  %6519 = vst.msk [vmem:[%s5 + $0x8] sm:$0xff] %vm671, %v6279
  %6520 = vst [vmem:[%s5 + $0x10] sm:$0xff] %v6280
  %6521 = vst.msk [vmem:[%s5 + $0x18] sm:$0xff] %vm671, %v6281
  %6522 = vst [vmem:[%s5 + $0x20] sm:$0xff] %v6282
  %6523 = vst.msk [vmem:[%s5 + $0x28] sm:$0xff] %vm671, %v6283
  %6524 = vst [vmem:[%s5 + $0x30] sm:$0xff] %v6284
  %6525 = vst.msk [vmem:[%s5 + $0x38] sm:$0xff] %vm671, %v6285
  %6526 = vst [vmem:[%s5 + $0x40] sm:$0xff] %v6286
  %6527 = vst.msk [vmem:[%s5 + $0x48] sm:$0xff] %vm671, %v6287
  %6528 = vst [vmem:[%s5 + $0x50] sm:$0xff] %v6288
  %6529 = vst.msk [vmem:[%s5 + $0x58] sm:$0xff] %vm671, %v6289
  %6530 = vst [vmem:[%s5 + $0x60] sm:$0xff] %v6290
  %6531 = vst.msk [vmem:[%s5 + $0x68] sm:$0xff] %vm671, %v6291
  %6532 = vst [vmem:[%s5 + $0x70] sm:$0xff] %v6292
  %6533 = vst.msk [vmem:[%s5 + $0x78] sm:$0xff] %vm671, %v6293
  %6534 = vst [vmem:[%s5 + $0x80] sm:$0xff] %v6294
  %6535 = vst.msk [vmem:[%s5 + $0x88] sm:$0xff] %vm671, %v6295
  %6536 = vst [vmem:[%s5 + $0x90] sm:$0xff] %v6296
  %6537 = vst.msk [vmem:[%s5 + $0x98] sm:$0xff] %vm671, %v6297
  %6538 = vst [vmem:[%s5 + $0xa0] sm:$0xff] %v6298
  %6539 = vst.msk [vmem:[%s5 + $0xa8] sm:$0xff] %vm671, %v6299
  %6540 = vst [vmem:[%s5 + $0xb0] sm:$0xff] %v6300
  %6541 = vst.msk [vmem:[%s5 + $0xb8] sm:$0xff] %vm671, %v6301
  %6542 = vst [vmem:[%s5 + $0xc0] sm:$0xff] %v6302
  %6543 = vst.msk [vmem:[%s5 + $0xc8] sm:$0xff] %vm671, %v6303
  %6544 = vst [vmem:[%s5 + $0xd0] sm:$0xff] %v6304
  %6545 = vst.msk [vmem:[%s5 + $0xd8] sm:$0xff] %vm671, %v6305
  %6546 = vst [vmem:[%s5 + $0xe0] sm:$0xff] %v6306
  %6547 = vst.msk [vmem:[%s5 + $0xe8] sm:$0xff] %vm671, %v6307
  %6548 = vst [vmem:[%s5 + $0xf0] sm:$0xff] %v6308
  %6549 = vst.msk [vmem:[%s5 + $0xf8] sm:$0xff] %vm671, %v6309
  %6550 = vst [vmem:[%s5 + $0x100] sm:$0xff] %v6310
  %6551 = vst.msk [vmem:[%s5 + $0x108] sm:$0xff] %vm671, %v6311
  %6552 = vst [vmem:[%s5 + $0x110] sm:$0xff] %v6312
  %6553 = vst.msk [vmem:[%s5 + $0x118] sm:$0xff] %vm671, %v6313
  %6554 = vst [vmem:[%s5 + $0x120] sm:$0xff] %v6314
  %6555 = vst.msk [vmem:[%s5 + $0x128] sm:$0xff] %vm671, %v6315
  %6556 = vst [vmem:[%s5 + $0x130] sm:$0xff] %v6316
  %6557 = vst.msk [vmem:[%s5 + $0x138] sm:$0xff] %vm671, %v6317
  %6558 = vst [vmem:[%s5 + $0x140] sm:$0xff] %v6318
  %6559 = vst.msk [vmem:[%s5 + $0x148] sm:$0xff] %vm671, %v6319
  %6560 = vst [vmem:[%s5 + $0x150] sm:$0xff] %v6320
  %6561 = vst.msk [vmem:[%s5 + $0x158] sm:$0xff] %vm671, %v6321
  %6562 = vst [vmem:[%s5 + $0x160] sm:$0xff] %v6322
  %6563 = vst.msk [vmem:[%s5 + $0x168] sm:$0xff] %vm671, %v6323
  %6564 = vst [vmem:[%s5 + $0x170] sm:$0xff] %v6324
  %6565 = vst.msk [vmem:[%s5 + $0x178] sm:$0xff] %vm671, %v6325
  %6566 = vst [vmem:[%s5 + $0x180] sm:$0xff] %v6326
  %6567 = vst.msk [vmem:[%s5 + $0x188] sm:$0xff] %vm671, %v6327
  %6568 = vst [vmem:[%s5 + $0x190] sm:$0xff] %v6328
  %6569 = vst.msk [vmem:[%s5 + $0x198] sm:$0xff] %vm671, %v6329
  %6570 = vst [vmem:[%s5 + $0x1a0] sm:$0xff] %v6330
  %6571 = vst.msk [vmem:[%s5 + $0x1a8] sm:$0xff] %vm671, %v6331
  %6572 = vst [vmem:[%s5 + $0x1b0] sm:$0xff] %v6332
  %6573 = vst.msk [vmem:[%s5 + $0x1b8] sm:$0xff] %vm671, %v6333
  %6574 = vst [vmem:[%s5 + $0x1c0] sm:$0xff] %v6334
  %6575 = vst.msk [vmem:[%s5 + $0x1c8] sm:$0xff] %vm671, %v6335
  %6576 = vst [vmem:[%s5 + $0x1d0] sm:$0xff] %v6336
  %6577 = vst.msk [vmem:[%s5 + $0x1d8] sm:$0xff] %vm671, %v6337
  %6578 = vst [vmem:[%s5 + $0x1e0] sm:$0xff] %v6338
  %6579 = vst.msk [vmem:[%s5 + $0x1e8] sm:$0xff] %vm671, %v6339
  %6580 = vst [vmem:[%s5 + $0x1f0] sm:$0xff] %v6340
  %6581 = vst.msk [vmem:[%s5 + $0x1f8] sm:$0xff] %vm671, %v6341
  %6582 = vst [vmem:[%s5 + $0x200] sm:$0xff] %v6342
  %6583 = vst.msk [vmem:[%s5 + $0x208] sm:$0xff] %vm671, %v6343
  %6584 = vst [vmem:[%s5 + $0x210] sm:$0xff] %v6344
  %6585 = vst.msk [vmem:[%s5 + $0x218] sm:$0xff] %vm671, %v6345
  %6586 = vst [vmem:[%s5 + $0x220] sm:$0xff] %v6346
  %6587 = vst.msk [vmem:[%s5 + $0x228] sm:$0xff] %vm671, %v6347
  %6588 = vst [vmem:[%s5 + $0x230] sm:$0xff] %v6348
  %6589 = vst.msk [vmem:[%s5 + $0x238] sm:$0xff] %vm671, %v6349
  %6590 = vst [vmem:[%s5 + $0x240] sm:$0xff] %v6350
  %6591 = vst.msk [vmem:[%s5 + $0x248] sm:$0xff] %vm671, %v6351
  %6592 = vst [vmem:[%s5 + $0x250] sm:$0xff] %v6352
  %6593 = vst.msk [vmem:[%s5 + $0x258] sm:$0xff] %vm671, %v6353
  %6594 = vst [vmem:[%s5 + $0x260] sm:$0xff] %v6354
  %6595 = vst.msk [vmem:[%s5 + $0x268] sm:$0xff] %vm671, %v6355
  %6596 = vst [vmem:[%s5 + $0x270] sm:$0xff] %v6356
  %6597 = vst.msk [vmem:[%s5 + $0x278] sm:$0xff] %vm671, %v6357
  %6598 = vst [vmem:[%s5 + $0x280] sm:$0xff] %v6358
  %6599 = vst.msk [vmem:[%s5 + $0x288] sm:$0xff] %vm671, %v6359
  %6600 = vst [vmem:[%s5 + $0x290] sm:$0xff] %v6360
  %6601 = vst.msk [vmem:[%s5 + $0x298] sm:$0xff] %vm671, %v6361
  %6602 = vst [vmem:[%s5 + $0x2a0] sm:$0xff] %v6362
  %6603 = vst.msk [vmem:[%s5 + $0x2a8] sm:$0xff] %vm671, %v6363
  %6604 = vst [vmem:[%s5 + $0x2b0] sm:$0xff] %v6364
  %6605 = vst.msk [vmem:[%s5 + $0x2b8] sm:$0xff] %vm671, %v6365
  %6606 = vst [vmem:[%s5 + $0x2c0] sm:$0xff] %v6366
  %6607 = vst.msk [vmem:[%s5 + $0x2c8] sm:$0xff] %vm671, %v6367
  %6608 = vst [vmem:[%s5 + $0x2d0] sm:$0xff] %v6368
  %6609 = vst.msk [vmem:[%s5 + $0x2d8] sm:$0xff] %vm671, %v6369
  %6610 = vst [vmem:[%s5 + $0x2e0] sm:$0xff] %v6370
  %6611 = vst.msk [vmem:[%s5 + $0x2e8] sm:$0xff] %vm671, %v6371
  %6612 = vst [vmem:[%s5 + $0x2f0] sm:$0xff] %v6372
  %6613 = vst.msk [vmem:[%s5 + $0x2f8] sm:$0xff] %vm671, %v6373
  %6614 = vst [vmem:[%s5 + $0x300] sm:$0xff] %v6374
  %6615 = vst.msk [vmem:[%s5 + $0x308] sm:$0xff] %vm671, %v6375
  %6616 = vst [vmem:[%s5 + $0x310] sm:$0xff] %v6376
  %6617 = vst.msk [vmem:[%s5 + $0x318] sm:$0xff] %vm671, %v6377
  %6618 = vst [vmem:[%s5 + $0x320] sm:$0xff] %v6378
  %6619 = vst.msk [vmem:[%s5 + $0x328] sm:$0xff] %vm671, %v6379
  %6620 = vst [vmem:[%s5 + $0x330] sm:$0xff] %v6380
  %6621 = vst.msk [vmem:[%s5 + $0x338] sm:$0xff] %vm671, %v6381
  %6622 = vst [vmem:[%s5 + $0x340] sm:$0xff] %v6382
  %6623 = vst.msk [vmem:[%s5 + $0x348] sm:$0xff] %vm671, %v6383
  %6624 = vst [vmem:[%s5 + $0x350] sm:$0xff] %v6384
  %6625 = vst.msk [vmem:[%s5 + $0x358] sm:$0xff] %vm671, %v6385
  %6626 = vst [vmem:[%s5 + $0x360] sm:$0xff] %v6386
  %6627 = vst.msk [vmem:[%s5 + $0x368] sm:$0xff] %vm671, %v6387
  %6628 = vst [vmem:[%s5 + $0x370] sm:$0xff] %v6388
  %6629 = vst.msk [vmem:[%s5 + $0x378] sm:$0xff] %vm671, %v6389
  %6630 = vst [vmem:[%s5 + $0x380] sm:$0xff] %v6390
  %6631 = vst.msk [vmem:[%s5 + $0x388] sm:$0xff] %vm671, %v6391
  %6632 = vst [vmem:[%s5 + $0x390] sm:$0xff] %v6392
  %6633 = vst.msk [vmem:[%s5 + $0x398] sm:$0xff] %vm671, %v6393
  %6634 = vst [vmem:[%s5 + $0x3a0] sm:$0xff] %v6394
  %6635 = vst.msk [vmem:[%s5 + $0x3a8] sm:$0xff] %vm671, %v6395
  %6636 = vst [vmem:[%s5 + $0x3b0] sm:$0xff] %v6396
  %6637 = vst.msk [vmem:[%s5 + $0x3b8] sm:$0xff] %vm671, %v6397
  %6638 = vst [vmem:[%s5 + $0x3c0] sm:$0xff] %v6398
  %6639 = vst.msk [vmem:[%s5 + $0x3c8] sm:$0xff] %vm671, %v6399
  %6640 = vst [vmem:[%s5 + $0x3d0] sm:$0xff] %v6400
  %6641 = vst.msk [vmem:[%s5 + $0x3d8] sm:$0xff] %vm671, %v6401
  %6642 = vst [vmem:[%s5 + $0x3e0] sm:$0xff] %v6402
  %6643 = vst.msk [vmem:[%s5 + $0x3e8] sm:$0xff] %vm671, %v6403
  %6644 = vst [vmem:[%s5 + $0x3f0] sm:$0xff] %v6404
  %6645 = vst.msk [vmem:[%s5 + $0x3f8] sm:$0xff] %vm671, %v6405
  %6646 = vst [vmem:[%s5 + $0x400] sm:$0xff] %v6406
  %6647 = vst.msk [vmem:[%s5 + $0x408] sm:$0xff] %vm671, %v6407
  %6648 = vst [vmem:[%s5 + $0x410] sm:$0xff] %v6408
  %6649 = vst.msk [vmem:[%s5 + $0x418] sm:$0xff] %vm671, %v6409
  %6650 = vst [vmem:[%s5 + $0x420] sm:$0xff] %v6410
  %6651 = vst.msk [vmem:[%s5 + $0x428] sm:$0xff] %vm671, %v6411
  %6652 = vst [vmem:[%s5 + $0x430] sm:$0xff] %v6412
  %6653 = vst.msk [vmem:[%s5 + $0x438] sm:$0xff] %vm671, %v6413
  %6654 = vst [vmem:[%s5 + $0x440] sm:$0xff] %v6414
  %6655 = vst.msk [vmem:[%s5 + $0x448] sm:$0xff] %vm671, %v6415
  %6656 = vst [vmem:[%s5 + $0x450] sm:$0xff] %v6416
  %6657 = vst.msk [vmem:[%s5 + $0x458] sm:$0xff] %vm671, %v6417
  %6658 = vst [vmem:[%s5 + $0x460] sm:$0xff] %v6418
  %6659 = vst.msk [vmem:[%s5 + $0x468] sm:$0xff] %vm671, %v6419
  %6660 = vst [vmem:[%s5 + $0x470] sm:$0xff] %v6420
  %6661 = vst.msk [vmem:[%s5 + $0x478] sm:$0xff] %vm671, %v6421
  %6662 = vst [vmem:[%s5 + $0x480] sm:$0xff] %v6422
  %6663 = vst.msk [vmem:[%s5 + $0x488] sm:$0xff] %vm671, %v6423
  %6664 = vst [vmem:[%s5 + $0x490] sm:$0xff] %v6424
  %6665 = vst.msk [vmem:[%s5 + $0x498] sm:$0xff] %vm671, %v6425
  %6666 = vst [vmem:[%s5 + $0x4a0] sm:$0xff] %v6426
  %6667 = vst.msk [vmem:[%s5 + $0x4a8] sm:$0xff] %vm671, %v6427
  %6668 = vst [vmem:[%s5 + $0x4b0] sm:$0xff] %v6428
  %6669 = vst.msk [vmem:[%s5 + $0x4b8] sm:$0xff] %vm671, %v6429
  %6670 = vst [vmem:[%s5 + $0x4c0] sm:$0xff] %v6430
  %6671 = vst.msk [vmem:[%s5 + $0x4c8] sm:$0xff] %vm671, %v6431
  %6672 = vst [vmem:[%s5 + $0x4d0] sm:$0xff] %v6432
  %6673 = vst.msk [vmem:[%s5 + $0x4d8] sm:$0xff] %vm671, %v6433
  %6674 = vst [vmem:[%s5 + $0x4e0] sm:$0xff] %v6434
  %6675 = vst.msk [vmem:[%s5 + $0x4e8] sm:$0xff] %vm671, %v6435
  %6676 = vst [vmem:[%s5 + $0x4f0] sm:$0xff] %v6436
  %6677 = vst.msk [vmem:[%s5 + $0x4f8] sm:$0xff] %vm671, %v6437
  %6678 = vst [vmem:[%s5 + $0x500] sm:$0xff] %v6438
  %6679 = vst.msk [vmem:[%s5 + $0x508] sm:$0xff] %vm671, %v6439
  %6680 = vst [vmem:[%s5 + $0x510] sm:$0xff] %v6440
  %6681 = vst.msk [vmem:[%s5 + $0x518] sm:$0xff] %vm671, %v6441
  %6682 = vst [vmem:[%s5 + $0x520] sm:$0xff] %v6442
  %6683 = vst.msk [vmem:[%s5 + $0x528] sm:$0xff] %vm671, %v6443
  %6684 = vst [vmem:[%s5 + $0x530] sm:$0xff] %v6444
  %6685 = vst.msk [vmem:[%s5 + $0x538] sm:$0xff] %vm671, %v6445
  %6686 = vst [vmem:[%s5 + $0x540] sm:$0xff] %v6446
  %6687 = vst.msk [vmem:[%s5 + $0x548] sm:$0xff] %vm671, %v6447
  %6688 = vst [vmem:[%s5 + $0x550] sm:$0xff] %v6448
  %6689 = vst.msk [vmem:[%s5 + $0x558] sm:$0xff] %vm671, %v6449
  %6690 = vst [vmem:[%s5 + $0x560] sm:$0xff] %v6450
  %6691 = vst.msk [vmem:[%s5 + $0x568] sm:$0xff] %vm671, %v6451
  %6692 = vst [vmem:[%s5 + $0x570] sm:$0xff] %v6452
  %6693 = vst.msk [vmem:[%s5 + $0x578] sm:$0xff] %vm671, %v6453
  %6694 = vst [vmem:[%s5 + $0x580] sm:$0xff] %v6454
  %6695 = vst.msk [vmem:[%s5 + $0x588] sm:$0xff] %vm671, %v6455
  %6696 = vst [vmem:[%s5 + $0x590] sm:$0xff] %v6456
  %6697 = vst.msk [vmem:[%s5 + $0x598] sm:$0xff] %vm671, %v6457
  %6698 = vst [vmem:[%s5 + $0x5a0] sm:$0xff] %v6458
  %6699 = vst.msk [vmem:[%s5 + $0x5a8] sm:$0xff] %vm671, %v6459
  %6700 = vst [vmem:[%s5 + $0x5b0] sm:$0xff] %v6460
  %6701 = vst.msk [vmem:[%s5 + $0x5b8] sm:$0xff] %vm671, %v6461
  %6702 = vst [vmem:[%s5 + $0x5c0] sm:$0xff] %v6462
  %6703 = vst.msk [vmem:[%s5 + $0x5c8] sm:$0xff] %vm671, %v6463
  %6704 = vst [vmem:[%s5 + $0x5d0] sm:$0xff] %v6464
  %6705 = vst.msk [vmem:[%s5 + $0x5d8] sm:$0xff] %vm671, %v6465
  %6706 = vst [vmem:[%s5 + $0x5e0] sm:$0xff] %v6466
  %6707 = vst.msk [vmem:[%s5 + $0x5e8] sm:$0xff] %vm671, %v6467
  %6708 = vst [vmem:[%s5 + $0x5f0] sm:$0xff] %v6468
  %6709 = vst.msk [vmem:[%s5 + $0x5f8] sm:$0xff] %vm671, %v6469
  %6710 = vst [vmem:[%s5 + $0x600] sm:$0xff] %v6470
  %6711 = vst.msk [vmem:[%s5 + $0x608] sm:$0xff] %vm671, %v6471
  %6712 = vst [vmem:[%s5 + $0x610] sm:$0xff] %v6472
  %6713 = vst.msk [vmem:[%s5 + $0x618] sm:$0xff] %vm671, %v6473
  %6714 = vst [vmem:[%s5 + $0x620] sm:$0xff] %v6474
  %6715 = vst.msk [vmem:[%s5 + $0x628] sm:$0xff] %vm671, %v6475
  %6716 = vst [vmem:[%s5 + $0x630] sm:$0xff] %v6476
  %6717 = vst.msk [vmem:[%s5 + $0x638] sm:$0xff] %vm671, %v6477
  %6718 = vst [vmem:[%s5 + $0x640] sm:$0xff] %v6478
  %6719 = vst.msk [vmem:[%s5 + $0x648] sm:$0xff] %vm671, %v6479
  %6720 = vst [vmem:[%s5 + $0x650] sm:$0xff] %v6480
  %6721 = vst.msk [vmem:[%s5 + $0x658] sm:$0xff] %vm671, %v6481
  %6722 = vst [vmem:[%s5 + $0x660] sm:$0xff] %v6482
  %6723 = vst.msk [vmem:[%s5 + $0x668] sm:$0xff] %vm671, %v6483
  %6724 = vst [vmem:[%s5 + $0x670] sm:$0xff] %v6484
  %6725 = vst.msk [vmem:[%s5 + $0x678] sm:$0xff] %vm671, %v6485
  %6726 = vst [vmem:[%s5 + $0x680] sm:$0xff] %v6486
  %6727 = vst.msk [vmem:[%s5 + $0x688] sm:$0xff] %vm671, %v6487
  %6728 = vst [vmem:[%s5 + $0x690] sm:$0xff] %v6488
  %6729 = vst.msk [vmem:[%s5 + $0x698] sm:$0xff] %vm671, %v6489
  %6730 = vst [vmem:[%s5 + $0x6a0] sm:$0xff] %v6490
  %6731 = vst.msk [vmem:[%s5 + $0x6a8] sm:$0xff] %vm671, %v6491
  %6732 = vst [vmem:[%s5 + $0x6b0] sm:$0xff] %v6492
  %6733 = vst.msk [vmem:[%s5 + $0x6b8] sm:$0xff] %vm671, %v6493
  %6734 = vst [vmem:[%s5 + $0x6c0] sm:$0xff] %v6494
  %6735 = vst.msk [vmem:[%s5 + $0x6c8] sm:$0xff] %vm671, %v6495
  %6736 = vst [vmem:[%s5 + $0x6d0] sm:$0xff] %v6496
  %6737 = vst.msk [vmem:[%s5 + $0x6d8] sm:$0xff] %vm671, %v6497
  %6738 = vst [vmem:[%s5 + $0x6e0] sm:$0xff] %v6498
  %6739 = vst.msk [vmem:[%s5 + $0x6e8] sm:$0xff] %vm671, %v6499
  %6740 = vst [vmem:[%s5 + $0x6f0] sm:$0xff] %v6500
  %6741 = vst.msk [vmem:[%s5 + $0x6f8] sm:$0xff] %vm671, %v6501
  %6742 = vst [vmem:[%s5 + $0x700] sm:$0xff] %v6502
  %6743 = vst.msk [vmem:[%s5 + $0x708] sm:$0xff] %vm671, %v6503
  %6744 = vst [vmem:[%s5 + $0x710] sm:$0xff] %v6504
  %6745 = vst.msk [vmem:[%s5 + $0x718] sm:$0xff] %vm671, %v6505
  %6746 = vst [vmem:[%s5 + $0x720] sm:$0xff] %v6506
  %6747 = vst.msk [vmem:[%s5 + $0x728] sm:$0xff] %vm671, %v6507
  %6748 = vst [vmem:[%s5 + $0x730] sm:$0xff] %v6508
  %6749 = vst.msk [vmem:[%s5 + $0x738] sm:$0xff] %vm671, %v6509
  %6750 = vst [vmem:[%s5 + $0x740] sm:$0xff] %v6510
  %6751 = vst.msk [vmem:[%s5 + $0x748] sm:$0xff] %vm671, %v6511
  %6752 = vst [vmem:[%s5 + $0x750] sm:$0xff] %v6512
  %6753 = vst.msk [vmem:[%s5 + $0x758] sm:$0xff] %vm671, %v6513
  %6754 = vst [vmem:[%s5 + $0x760] sm:$0xff] %v6514
  %6755 = vst.msk [vmem:[%s5 + $0x768] sm:$0xff] %vm671, %v6515
  %6756 = vst [vmem:[%s5 + $0x770] sm:$0xff] %v6516
  %6757 = vst.msk [vmem:[%s5 + $0x778] sm:$0xff] %vm671, %v6517
  // Predicated region
  $region22: #{tpu_custom_call.1} parent=0 // pred_check
    _
  $region23: #{tpu_custom_call.1} parent=0 // pred_check_branch
    %6759 = sbr.rel (0) target = $region25
  $region24: #{tpu_custom_call.1} parent=0 // pred_region
    _
  $region25: #{tpu_custom_call.1} parent=0 // pred_fallthru
    _
  // Predicated region
  $region26: #{tpu_custom_call.1} parent=0 // pred_check
    _
  $region27: #{tpu_custom_call.1} parent=0 // pred_check_branch
    %6761 = sbr.rel (0) target = $region29
  $region28: #{tpu_custom_call.1} parent=0 // pred_region
    _
  $region29: #{tpu_custom_call.1} parent=0 // pred_fallthru
    _

</llo_original>
